<compile_context>
chip_gen: v7x
topology: tpu7x:2x2x1
jax: 0.10.0
libtpu: 0.0.40
codegen_flags: <defaults>
</compile_context>

<pallas_src>
import jax
import jax.numpy as jnp
from jax.experimental import pallas as pl
from jax.experimental.pallas import tpu as pltpu
import numpy as np

LANE = 128  # pad each gate block (and each hidden state) to one full vreg lane width


def lstm_decoder_kernel(x_ref, wih1_ref, wbig_ref, b1_ref, b2_ref,
                        wout_ref, bout_ref, out_ref, hseq_ref):
    P = b2_ref.shape[1] // 4       # padded hidden width (= LANE)
    S = out_ref.shape[0]           # seq_len

    wbig = wbig_ref[...]           # (2P, 8P)  fused [[whh1, wih2], [0, whh2]]
    b2 = b2_ref[...]               # (1, 4P)

    # The same latent is fed at every step -> hoist its rnn1 projection out of
    # the recurrence: one MXU matvec total instead of one per step.
    xg1 = jnp.dot(x_ref[...], wih1_ref[...],
                  preferred_element_type=jnp.float32) + b1_ref[...]    # (1, 4P)

    def cell(pre, c):
        # PyTorch gate order [i, f, g, o]; each slice is a full 128-lane vreg.
        i = jax.nn.sigmoid(pre[:, 0 * P:1 * P])
        f = jax.nn.sigmoid(pre[:, 1 * P:2 * P])
        g = jnp.tanh(pre[:, 2 * P:3 * P])
        o = jax.nn.sigmoid(pre[:, 3 * P:4 * P])
        c_new = f * c + i * g
        return o * jnp.tanh(c_new), c_new

    zeros = jnp.zeros((1, P), jnp.float32)
    # Peeled step 0 of rnn1: h1(-1) = c1(-1) = 0  ->  pre1(0) = xg1, no matmul needed.
    h1, c1 = cell(xg1, zeros)
    h2, c2 = zeros, zeros

    # Fully unrolled time recurrence: exactly ONE fused MXU push per step.
    for t in range(S):
        lhs = jnp.concatenate([h1, h2], axis=1)                         # (1, 2P)
        big = jnp.dot(lhs, wbig, preferred_element_type=jnp.float32)    # (1, 8P)
        # rnn2 cell for step t (bottom-left block of W_big is 0, so at t=0 the
        # zero h2(-1) contributes nothing).
        pre2 = big[:, 4 * P:8 * P] + b2
        h2, c2 = cell(pre2, c2)
        hseq_ref[pl.ds(t, 1), :] = h2          # per-step (1,128) store into VMEM scratch
        # rnn1 cell for step t+1 (skip on the last iteration).
        if t + 1 < S:
            pre1 = big[:, 0:4 * P] + xg1
            h1, c1 = cell(pre1, c1)

    # Lane-dense output head: wout/bout zero-padded to LANE columns, so this is a
    # single full (8,128) tile store (unmasked vst). Real features live in [:, :F].
    hseq = hseq_ref[...]                                                # (S, P)
    out_ref[...] = (jnp.dot(hseq, wout_ref[...],
                            preferred_element_type=jnp.float32)
                    + bout_ref[...])                                    # (S, LANE)


def lstm_decoder_forward(x, packed_params, *, seq_len, n_features):
    vmem = pl.BlockSpec(memory_space=pltpu.MemorySpace.VMEM)
    out_padded = pl.pallas_call(
        lstm_decoder_kernel,
        out_shape=jax.ShapeDtypeStruct((seq_len, LANE), jnp.float32),
        in_specs=[vmem] * 7,
        out_specs=vmem,
        scratch_shapes=[pltpu.VMEM((seq_len, LANE), jnp.float32)],
    )(x, *packed_params)
    # Slice the real feature lanes and do the trivial (S, F) -> (F, S) transpose in
    # plain JAX: keeps masked stores and the XLU out of the kernel.
    return out_padded[:, :n_features].T


# ----------------------------- weight packing --------------------------------

def _pad_gate_cols(w, hid, P):
    """(rows, 4*hid) -> (rows, 4*P): zero-pad each PyTorch gate block [i,f,g,o] to P lanes."""
    parts = [jnp.pad(w[:, k * hid:(k + 1) * hid], ((0, 0), (0, P - hid)))
             for k in range(4)]
    return jnp.concatenate(parts, axis=1)


def _pad_rows(w, P):
    return jnp.pad(w, ((0, P - w.shape[0]), (0, 0)))


def pack_params(params, *, input_dim, hidden_dim, lane=LANE):
    """Pack / pad the PyTorch-shaped (pre-transposed) weights once, at init time."""
    wih1, whh1, b1, wih2, whh2, b2, wout, bout = params
    D, H, P = input_dim, hidden_dim, lane
    F = wout.shape[1]
    wih1_p = _pad_gate_cols(wih1, D, P)                      # (D, 4P)  (rows = real x features)
    whh1_p = _pad_rows(_pad_gate_cols(whh1, D, P), P)        # (P, 4P)
    b1_p = _pad_gate_cols(b1, D, P)                          # (1, 4P)
    wih2_p = _pad_rows(_pad_gate_cols(wih2, H, P), P)        # (P, 4P)
    whh2_p = _pad_rows(_pad_gate_cols(whh2, H, P), P)        # (P, 4P)
    b2_p = _pad_gate_cols(b2, H, P)                          # (1, 4P)
    # Fused recurrent weight: one MXU push per step computes
    #   [pre1(t+1)-recurrent | pre2(t)] = [h1(t), h2(t-1)] @ W_big
    top = jnp.concatenate([whh1_p, wih2_p], axis=1)          # (P, 8P)
    bot = jnp.concatenate([jnp.zeros((P, 4 * P), jnp.float32), whh2_p], axis=1)
    wbig = jnp.concatenate([top, bot], axis=0)               # (2P, 8P)
    # Lane-dense output head: zero-pad wout/bout to LANE output columns.
    wout_p = jnp.pad(_pad_rows(wout, P), ((0, 0), (0, lane - F)))   # (P, LANE)
    bout_p = jnp.pad(bout, ((0, 0), (0, lane - F)))                 # (1, LANE)
    return (wih1_p, wbig, b1_p, b2_p, wout_p, bout_p)


# ----------------------------- reference + init ------------------------------

def _lstm_cell_ref(xt, h, c, wih, whh, b, hid):
    gates = xt @ wih + h @ whh + b
    i = jax.nn.sigmoid(gates[:, 0 * hid:1 * hid])
    f = jax.nn.sigmoid(gates[:, 1 * hid:2 * hid])
    g = jnp.tanh(gates[:, 2 * hid:3 * hid])
    o = jax.nn.sigmoid(gates[:, 3 * hid:4 * hid])
    c_new = f * c + i * g
    return o * jnp.tanh(c_new), c_new


def ref_forward(x, params, *, seq_len, input_dim, hidden_dim):
    """Pure-JAX reference of the PyTorch forward (for correctness check)."""
    wih1, whh1, b1, wih2, whh2, b2, wout, bout = params
    h1 = jnp.zeros((1, input_dim), jnp.float32)
    c1 = jnp.zeros((1, input_dim), jnp.float32)
    h2 = jnp.zeros((1, hidden_dim), jnp.float32)
    c2 = jnp.zeros((1, hidden_dim), jnp.float32)
    hs = []
    for _ in range(seq_len):
        h1, c1 = _lstm_cell_ref(x, h1, c1, wih1, whh1, b1, input_dim)
        h2, c2 = _lstm_cell_ref(h1, h2, c2, wih2, whh2, b2, hidden_dim)
        hs.append(h2)
    hseq = jnp.concatenate(hs, axis=0)                 # (S, H)
    return (hseq @ wout + bout).T                      # (F, S)


def init_params(key, input_dim, hidden_dim, n_features):
    """Deterministic synthetic parameters (PyTorch-shaped, then transposed for x @ W)."""
    ks = jax.random.split(key, 10)
    u = lambda k, shape: jax.random.uniform(k, shape, jnp.float32, -0.2, 0.2)
    # rnn1: hidden = input_dim
    wih1 = u(ks[0], (input_dim, 4 * input_dim))         # = torch weight_ih_l0.T
    whh1 = u(ks[1], (input_dim, 4 * input_dim))         # = torch weight_hh_l0.T
    b1 = u(ks[2], (1, 4 * input_dim)) + u(ks[3], (1, 4 * input_dim))   # bias_ih + bias_hh
    # rnn2: hidden = hidden_dim
    wih2 = u(ks[4], (input_dim, 4 * hidden_dim))
    whh2 = u(ks[5], (hidden_dim, 4 * hidden_dim))
    b2 = u(ks[6], (1, 4 * hidden_dim)) + u(ks[7], (1, 4 * hidden_dim))
    # output layer
    wout = u(ks[8], (hidden_dim, n_features))           # = torch weight.T
    bout = u(ks[9], (1, n_features))
    return (wih1, whh1, b1, wih2, whh2, b2, wout, bout)


if __name__ == "__main__":
    seq_len = 8
    input_dim = 32
    n_features = 1
    hidden_dim = 2 * input_dim

    key = jax.random.PRNGKey(0)
    k_x, k_p = jax.random.split(key)
    x = jax.random.normal(k_x, (1, input_dim), jnp.float32)   # latent from the encoder
    params = init_params(k_p, input_dim, hidden_dim, n_features)
    packed = pack_params(params, input_dim=input_dim, hidden_dim=hidden_dim)

    out = lstm_decoder_forward(x, packed, seq_len=seq_len, n_features=n_features)
    out = jax.block_until_ready(out)

    ref = ref_forward(x, params, seq_len=seq_len,
                      input_dim=input_dim, hidden_dim=hidden_dim)
    assert out.shape == (n_features, seq_len)
    np.testing.assert_allclose(np.asarray(out), np.asarray(ref), rtol=1e-5, atol=1e-5)

    print("KERNEL_OK")
</pallas_src>

<mosaic_0001>
module attributes {stable_mosaic.version = 11 : i64} {
  func.func @lstm_decoder_kernel(%arg0: memref<1x32xf32, #tpu.memory_space<vmem>>, %arg1: memref<32x512xf32, #tpu.memory_space<vmem>>, %arg2: memref<256x1024xf32, #tpu.memory_space<vmem>>, %arg3: memref<1x512xf32, #tpu.memory_space<vmem>>, %arg4: memref<1x512xf32, #tpu.memory_space<vmem>>, %arg5: memref<128x128xf32, #tpu.memory_space<vmem>>, %arg6: memref<1x128xf32, #tpu.memory_space<vmem>>, %arg7: memref<8x128xf32, #tpu.memory_space<vmem>>, %arg8: memref<8x128xf32, #tpu.memory_space<vmem>>) attributes {dimension_semantics = [], scalar_prefetch = 0 : i64, scratch_operands = 1 : i64, tpu.core_type = #tpu.core_type<tc>} {
    %c0 = arith.constant 0 : index
    %c0_0 = arith.constant 0 : index
    %0 = vector.load %arg2[%c0, %c0_0] : memref<256x1024xf32, #tpu.memory_space<vmem>>, vector<256x1024xf32>
    %c0_1 = arith.constant 0 : index
    %c0_2 = arith.constant 0 : index
    %1 = vector.load %arg4[%c0_1, %c0_2] : memref<1x512xf32, #tpu.memory_space<vmem>>, vector<1x512xf32>
    %c0_3 = arith.constant 0 : index
    %c0_4 = arith.constant 0 : index
    %2 = vector.load %arg0[%c0_3, %c0_4] : memref<1x32xf32, #tpu.memory_space<vmem>>, vector<1x32xf32>
    %c0_5 = arith.constant 0 : index
    %c0_6 = arith.constant 0 : index
    %3 = vector.load %arg1[%c0_5, %c0_6] : memref<32x512xf32, #tpu.memory_space<vmem>>, vector<32x512xf32>
    %cst = arith.constant dense<0.000000e+00> : vector<1x512xf32>
    %4 = tpu.matmul %2, %3, %cst {dimension_numbers = #tpu.dot_dimension_numbers<[1], [0], [0], [1], [0, 0, 1, 1], [], []>} : vector<1x32xf32>, vector<32x512xf32>, vector<1x512xf32> -> vector<1x512xf32>
    %c0_7 = arith.constant 0 : index
    %c0_8 = arith.constant 0 : index
    %5 = vector.load %arg3[%c0_7, %c0_8] : memref<1x512xf32, #tpu.memory_space<vmem>>, vector<1x512xf32>
    %6 = arith.addf %4, %5 : vector<1x512xf32>
    %cst_9 = arith.constant 0.000000e+00 : f32
    %7 = vector.broadcast %cst_9 : f32 to vector<1x128xf32>
    %8 = vector.extract_strided_slice %6 {offsets = [0, 0], sizes = [1, 128], strides = [1, 1]} : vector<1x512xf32> to vector<1x128xf32>
    %9 = arith.negf %8 : vector<1x128xf32>
    %10 = math.exp %9 : vector<1x128xf32>
    %cst_10 = arith.constant 1.000000e+00 : f32
    %11 = vector.broadcast %cst_10 : f32 to vector<1x128xf32>
    %12 = arith.addf %11, %10 : vector<1x128xf32>
    %13 = arith.divf %11, %12 : vector<1x128xf32>
    %14 = vector.extract_strided_slice %6 {offsets = [0, 128], sizes = [1, 128], strides = [1, 1]} : vector<1x512xf32> to vector<1x128xf32>
    %15 = arith.negf %14 : vector<1x128xf32>
    %16 = math.exp %15 : vector<1x128xf32>
    %cst_11 = arith.constant 1.000000e+00 : f32
    %17 = vector.broadcast %cst_11 : f32 to vector<1x128xf32>
    %18 = arith.addf %17, %16 : vector<1x128xf32>
    %19 = arith.divf %17, %18 : vector<1x128xf32>
    %20 = vector.extract_strided_slice %6 {offsets = [0, 256], sizes = [1, 128], strides = [1, 1]} : vector<1x512xf32> to vector<1x128xf32>
    %21 = math.tanh %20 : vector<1x128xf32>
    %22 = vector.extract_strided_slice %6 {offsets = [0, 384], sizes = [1, 128], strides = [1, 1]} : vector<1x512xf32> to vector<1x128xf32>
    %23 = arith.negf %22 : vector<1x128xf32>
    %24 = math.exp %23 : vector<1x128xf32>
    %cst_12 = arith.constant 1.000000e+00 : f32
    %25 = vector.broadcast %cst_12 : f32 to vector<1x128xf32>
    %26 = arith.addf %25, %24 : vector<1x128xf32>
    %27 = arith.divf %25, %26 : vector<1x128xf32>
    %28 = arith.mulf %19, %7 : vector<1x128xf32>
    %29 = arith.mulf %13, %21 : vector<1x128xf32>
    %30 = arith.addf %28, %29 : vector<1x128xf32>
    %31 = math.tanh %30 : vector<1x128xf32>
    %32 = arith.mulf %27, %31 : vector<1x128xf32>
    %33 = tpu.concatenate %32, %7 in 1 : vector<1x128xf32>, vector<1x128xf32> -> vector<1x256xf32>
    %cst_13 = arith.constant dense<0.000000e+00> : vector<1x1024xf32>
    %34 = tpu.matmul %33, %0, %cst_13 {dimension_numbers = #tpu.dot_dimension_numbers<[1], [0], [0], [1], [0, 0, 1, 1], [], []>} : vector<1x256xf32>, vector<256x1024xf32>, vector<1x1024xf32> -> vector<1x1024xf32>
    %35 = vector.extract_strided_slice %34 {offsets = [0, 512], sizes = [1, 512], strides = [1, 1]} : vector<1x1024xf32> to vector<1x512xf32>
    %36 = arith.addf %35, %1 : vector<1x512xf32>
    %37 = vector.extract_strided_slice %36 {offsets = [0, 0], sizes = [1, 128], strides = [1, 1]} : vector<1x512xf32> to vector<1x128xf32>
    %38 = arith.negf %37 : vector<1x128xf32>
    %39 = math.exp %38 : vector<1x128xf32>
    %cst_14 = arith.constant 1.000000e+00 : f32
    %40 = vector.broadcast %cst_14 : f32 to vector<1x128xf32>
    %41 = arith.addf %40, %39 : vector<1x128xf32>
    %42 = arith.divf %40, %41 : vector<1x128xf32>
    %43 = vector.extract_strided_slice %36 {offsets = [0, 128], sizes = [1, 128], strides = [1, 1]} : vector<1x512xf32> to vector<1x128xf32>
    %44 = arith.negf %43 : vector<1x128xf32>
    %45 = math.exp %44 : vector<1x128xf32>
    %cst_15 = arith.constant 1.000000e+00 : f32
    %46 = vector.broadcast %cst_15 : f32 to vector<1x128xf32>
    %47 = arith.addf %46, %45 : vector<1x128xf32>
    %48 = arith.divf %46, %47 : vector<1x128xf32>
    %49 = vector.extract_strided_slice %36 {offsets = [0, 256], sizes = [1, 128], strides = [1, 1]} : vector<1x512xf32> to vector<1x128xf32>
    %50 = math.tanh %49 : vector<1x128xf32>
    %51 = vector.extract_strided_slice %36 {offsets = [0, 384], sizes = [1, 128], strides = [1, 1]} : vector<1x512xf32> to vector<1x128xf32>
    %52 = arith.negf %51 : vector<1x128xf32>
    %53 = math.exp %52 : vector<1x128xf32>
    %cst_16 = arith.constant 1.000000e+00 : f32
    %54 = vector.broadcast %cst_16 : f32 to vector<1x128xf32>
    %55 = arith.addf %54, %53 : vector<1x128xf32>
    %56 = arith.divf %54, %55 : vector<1x128xf32>
    %57 = arith.mulf %48, %7 : vector<1x128xf32>
    %58 = arith.mulf %42, %50 : vector<1x128xf32>
    %59 = arith.addf %57, %58 : vector<1x128xf32>
    %60 = math.tanh %59 : vector<1x128xf32>
    %61 = arith.mulf %56, %60 : vector<1x128xf32>
    %c0_17 = arith.constant 0 : index
    %c0_18 = arith.constant 0 : index
    %62 = vector.load %arg8[%c0_17, %c0_18] : memref<8x128xf32, #tpu.memory_space<vmem>>, vector<1x128xf32>
    tpu.vector_store %arg8[%c0_17, %c0_18], %61 {strides = array<i32>} : memref<8x128xf32, #tpu.memory_space<vmem>>, vector<1x128xf32>,
    %63 = vector.extract_strided_slice %34 {offsets = [0, 0], sizes = [1, 512], strides = [1, 1]} : vector<1x1024xf32> to vector<1x512xf32>
    %64 = arith.addf %63, %6 : vector<1x512xf32>
    %65 = vector.extract_strided_slice %64 {offsets = [0, 0], sizes = [1, 128], strides = [1, 1]} : vector<1x512xf32> to vector<1x128xf32>
    %66 = arith.negf %65 : vector<1x128xf32>
    %67 = math.exp %66 : vector<1x128xf32>
    %cst_19 = arith.constant 1.000000e+00 : f32
    %68 = vector.broadcast %cst_19 : f32 to vector<1x128xf32>
    %69 = arith.addf %68, %67 : vector<1x128xf32>
    %70 = arith.divf %68, %69 : vector<1x128xf32>
    %71 = vector.extract_strided_slice %64 {offsets = [0, 128], sizes = [1, 128], strides = [1, 1]} : vector<1x512xf32> to vector<1x128xf32>
    %72 = arith.negf %71 : vector<1x128xf32>
    %73 = math.exp %72 : vector<1x128xf32>
    %cst_20 = arith.constant 1.000000e+00 : f32
    %74 = vector.broadcast %cst_20 : f32 to vector<1x128xf32>
    %75 = arith.addf %74, %73 : vector<1x128xf32>
    %76 = arith.divf %74, %75 : vector<1x128xf32>
    %77 = vector.extract_strided_slice %64 {offsets = [0, 256], sizes = [1, 128], strides = [1, 1]} : vector<1x512xf32> to vector<1x128xf32>
    %78 = math.tanh %77 : vector<1x128xf32>
    %79 = vector.extract_strided_slice %64 {offsets = [0, 384], sizes = [1, 128], strides = [1, 1]} : vector<1x512xf32> to vector<1x128xf32>
    %80 = arith.negf %79 : vector<1x128xf32>
    %81 = math.exp %80 : vector<1x128xf32>
    %cst_21 = arith.constant 1.000000e+00 : f32
    %82 = vector.broadcast %cst_21 : f32 to vector<1x128xf32>
    %83 = arith.addf %82, %81 : vector<1x128xf32>
    %84 = arith.divf %82, %83 : vector<1x128xf32>
    %85 = arith.mulf %76, %30 : vector<1x128xf32>
    %86 = arith.mulf %70, %78 : vector<1x128xf32>
    %87 = arith.addf %85, %86 : vector<1x128xf32>
    %88 = math.tanh %87 : vector<1x128xf32>
    %89 = arith.mulf %84, %88 : vector<1x128xf32>
    %90 = tpu.concatenate %89, %61 in 1 : vector<1x128xf32>, vector<1x128xf32> -> vector<1x256xf32>
    %cst_22 = arith.constant dense<0.000000e+00> : vector<1x1024xf32>
    %91 = tpu.matmul %90, %0, %cst_22 {dimension_numbers = #tpu.dot_dimension_numbers<[1], [0], [0], [1], [0, 0, 1, 1], [], []>} : vector<1x256xf32>, vector<256x1024xf32>, vector<1x1024xf32> -> vector<1x1024xf32>
    %92 = vector.extract_strided_slice %91 {offsets = [0, 512], sizes = [1, 512], strides = [1, 1]} : vector<1x1024xf32> to vector<1x512xf32>
    %93 = arith.addf %92, %1 : vector<1x512xf32>
    %94 = vector.extract_strided_slice %93 {offsets = [0, 0], sizes = [1, 128], strides = [1, 1]} : vector<1x512xf32> to vector<1x128xf32>
    %95 = arith.negf %94 : vector<1x128xf32>
    %96 = math.exp %95 : vector<1x128xf32>
    %cst_23 = arith.constant 1.000000e+00 : f32
    %97 = vector.broadcast %cst_23 : f32 to vector<1x128xf32>
    %98 = arith.addf %97, %96 : vector<1x128xf32>
    %99 = arith.divf %97, %98 : vector<1x128xf32>
    %100 = vector.extract_strided_slice %93 {offsets = [0, 128], sizes = [1, 128], strides = [1, 1]} : vector<1x512xf32> to vector<1x128xf32>
    %101 = arith.negf %100 : vector<1x128xf32>
    %102 = math.exp %101 : vector<1x128xf32>
    %cst_24 = arith.constant 1.000000e+00 : f32
    %103 = vector.broadcast %cst_24 : f32 to vector<1x128xf32>
    %104 = arith.addf %103, %102 : vector<1x128xf32>
    %105 = arith.divf %103, %104 : vector<1x128xf32>
    %106 = vector.extract_strided_slice %93 {offsets = [0, 256], sizes = [1, 128], strides = [1, 1]} : vector<1x512xf32> to vector<1x128xf32>
    %107 = math.tanh %106 : vector<1x128xf32>
    %108 = vector.extract_strided_slice %93 {offsets = [0, 384], sizes = [1, 128], strides = [1, 1]} : vector<1x512xf32> to vector<1x128xf32>
    %109 = arith.negf %108 : vector<1x128xf32>
    %110 = math.exp %109 : vector<1x128xf32>
    %cst_25 = arith.constant 1.000000e+00 : f32
    %111 = vector.broadcast %cst_25 : f32 to vector<1x128xf32>
    %112 = arith.addf %111, %110 : vector<1x128xf32>
    %113 = arith.divf %111, %112 : vector<1x128xf32>
    %114 = arith.mulf %105, %59 : vector<1x128xf32>
    %115 = arith.mulf %99, %107 : vector<1x128xf32>
    %116 = arith.addf %114, %115 : vector<1x128xf32>
    %117 = math.tanh %116 : vector<1x128xf32>
    %118 = arith.mulf %113, %117 : vector<1x128xf32>
    %c1 = arith.constant 1 : index
    %c0_26 = arith.constant 0 : index
    %119 = vector.load %arg8[%c1, %c0_26] : memref<8x128xf32, #tpu.memory_space<vmem>>, vector<1x128xf32>
    tpu.vector_store %arg8[%c1, %c0_26], %118 {strides = array<i32>} : memref<8x128xf32, #tpu.memory_space<vmem>>, vector<1x128xf32>,
    %120 = vector.extract_strided_slice %91 {offsets = [0, 0], sizes = [1, 512], strides = [1, 1]} : vector<1x1024xf32> to vector<1x512xf32>
    %121 = arith.addf %120, %6 : vector<1x512xf32>
    %122 = vector.extract_strided_slice %121 {offsets = [0, 0], sizes = [1, 128], strides = [1, 1]} : vector<1x512xf32> to vector<1x128xf32>
    %123 = arith.negf %122 : vector<1x128xf32>
    %124 = math.exp %123 : vector<1x128xf32>
    %cst_27 = arith.constant 1.000000e+00 : f32
    %125 = vector.broadcast %cst_27 : f32 to vector<1x128xf32>
    %126 = arith.addf %125, %124 : vector<1x128xf32>
    %127 = arith.divf %125, %126 : vector<1x128xf32>
    %128 = vector.extract_strided_slice %121 {offsets = [0, 128], sizes = [1, 128], strides = [1, 1]} : vector<1x512xf32> to vector<1x128xf32>
    %129 = arith.negf %128 : vector<1x128xf32>
    %130 = math.exp %129 : vector<1x128xf32>
    %cst_28 = arith.constant 1.000000e+00 : f32
    %131 = vector.broadcast %cst_28 : f32 to vector<1x128xf32>
    %132 = arith.addf %131, %130 : vector<1x128xf32>
    %133 = arith.divf %131, %132 : vector<1x128xf32>
    %134 = vector.extract_strided_slice %121 {offsets = [0, 256], sizes = [1, 128], strides = [1, 1]} : vector<1x512xf32> to vector<1x128xf32>
    %135 = math.tanh %134 : vector<1x128xf32>
    %136 = vector.extract_strided_slice %121 {offsets = [0, 384], sizes = [1, 128], strides = [1, 1]} : vector<1x512xf32> to vector<1x128xf32>
    %137 = arith.negf %136 : vector<1x128xf32>
    %138 = math.exp %137 : vector<1x128xf32>
    %cst_29 = arith.constant 1.000000e+00 : f32
    %139 = vector.broadcast %cst_29 : f32 to vector<1x128xf32>
    %140 = arith.addf %139, %138 : vector<1x128xf32>
    %141 = arith.divf %139, %140 : vector<1x128xf32>
    %142 = arith.mulf %133, %87 : vector<1x128xf32>
    %143 = arith.mulf %127, %135 : vector<1x128xf32>
    %144 = arith.addf %142, %143 : vector<1x128xf32>
    %145 = math.tanh %144 : vector<1x128xf32>
    %146 = arith.mulf %141, %145 : vector<1x128xf32>
    %147 = tpu.concatenate %146, %118 in 1 : vector<1x128xf32>, vector<1x128xf32> -> vector<1x256xf32>
    %cst_30 = arith.constant dense<0.000000e+00> : vector<1x1024xf32>
    %148 = tpu.matmul %147, %0, %cst_30 {dimension_numbers = #tpu.dot_dimension_numbers<[1], [0], [0], [1], [0, 0, 1, 1], [], []>} : vector<1x256xf32>, vector<256x1024xf32>, vector<1x1024xf32> -> vector<1x1024xf32>
    %149 = vector.extract_strided_slice %148 {offsets = [0, 512], sizes = [1, 512], strides = [1, 1]} : vector<1x1024xf32> to vector<1x512xf32>
    %150 = arith.addf %149, %1 : vector<1x512xf32>
    %151 = vector.extract_strided_slice %150 {offsets = [0, 0], sizes = [1, 128], strides = [1, 1]} : vector<1x512xf32> to vector<1x128xf32>
    %152 = arith.negf %151 : vector<1x128xf32>
    %153 = math.exp %152 : vector<1x128xf32>
    %cst_31 = arith.constant 1.000000e+00 : f32
    %154 = vector.broadcast %cst_31 : f32 to vector<1x128xf32>
    %155 = arith.addf %154, %153 : vector<1x128xf32>
    %156 = arith.divf %154, %155 : vector<1x128xf32>
    %157 = vector.extract_strided_slice %150 {offsets = [0, 128], sizes = [1, 128], strides = [1, 1]} : vector<1x512xf32> to vector<1x128xf32>
    %158 = arith.negf %157 : vector<1x128xf32>
    %159 = math.exp %158 : vector<1x128xf32>
    %cst_32 = arith.constant 1.000000e+00 : f32
    %160 = vector.broadcast %cst_32 : f32 to vector<1x128xf32>
    %161 = arith.addf %160, %159 : vector<1x128xf32>
    %162 = arith.divf %160, %161 : vector<1x128xf32>
    %163 = vector.extract_strided_slice %150 {offsets = [0, 256], sizes = [1, 128], strides = [1, 1]} : vector<1x512xf32> to vector<1x128xf32>
    %164 = math.tanh %163 : vector<1x128xf32>
    %165 = vector.extract_strided_slice %150 {offsets = [0, 384], sizes = [1, 128], strides = [1, 1]} : vector<1x512xf32> to vector<1x128xf32>
    %166 = arith.negf %165 : vector<1x128xf32>
    %167 = math.exp %166 : vector<1x128xf32>
    %cst_33 = arith.constant 1.000000e+00 : f32
    %168 = vector.broadcast %cst_33 : f32 to vector<1x128xf32>
    %169 = arith.addf %168, %167 : vector<1x128xf32>
    %170 = arith.divf %168, %169 : vector<1x128xf32>
    %171 = arith.mulf %162, %116 : vector<1x128xf32>
    %172 = arith.mulf %156, %164 : vector<1x128xf32>
    %173 = arith.addf %171, %172 : vector<1x128xf32>
    %174 = math.tanh %173 : vector<1x128xf32>
    %175 = arith.mulf %170, %174 : vector<1x128xf32>
    %c2 = arith.constant 2 : index
    %c0_34 = arith.constant 0 : index
    %176 = vector.load %arg8[%c2, %c0_34] : memref<8x128xf32, #tpu.memory_space<vmem>>, vector<1x128xf32>
    tpu.vector_store %arg8[%c2, %c0_34], %175 {strides = array<i32>} : memref<8x128xf32, #tpu.memory_space<vmem>>, vector<1x128xf32>,
    %177 = vector.extract_strided_slice %148 {offsets = [0, 0], sizes = [1, 512], strides = [1, 1]} : vector<1x1024xf32> to vector<1x512xf32>
    %178 = arith.addf %177, %6 : vector<1x512xf32>
    %179 = vector.extract_strided_slice %178 {offsets = [0, 0], sizes = [1, 128], strides = [1, 1]} : vector<1x512xf32> to vector<1x128xf32>
    %180 = arith.negf %179 : vector<1x128xf32>
    %181 = math.exp %180 : vector<1x128xf32>
    %cst_35 = arith.constant 1.000000e+00 : f32
    %182 = vector.broadcast %cst_35 : f32 to vector<1x128xf32>
    %183 = arith.addf %182, %181 : vector<1x128xf32>
    %184 = arith.divf %182, %183 : vector<1x128xf32>
    %185 = vector.extract_strided_slice %178 {offsets = [0, 128], sizes = [1, 128], strides = [1, 1]} : vector<1x512xf32> to vector<1x128xf32>
    %186 = arith.negf %185 : vector<1x128xf32>
    %187 = math.exp %186 : vector<1x128xf32>
    %cst_36 = arith.constant 1.000000e+00 : f32
    %188 = vector.broadcast %cst_36 : f32 to vector<1x128xf32>
    %189 = arith.addf %188, %187 : vector<1x128xf32>
    %190 = arith.divf %188, %189 : vector<1x128xf32>
    %191 = vector.extract_strided_slice %178 {offsets = [0, 256], sizes = [1, 128], strides = [1, 1]} : vector<1x512xf32> to vector<1x128xf32>
    %192 = math.tanh %191 : vector<1x128xf32>
    %193 = vector.extract_strided_slice %178 {offsets = [0, 384], sizes = [1, 128], strides = [1, 1]} : vector<1x512xf32> to vector<1x128xf32>
    %194 = arith.negf %193 : vector<1x128xf32>
    %195 = math.exp %194 : vector<1x128xf32>
    %cst_37 = arith.constant 1.000000e+00 : f32
    %196 = vector.broadcast %cst_37 : f32 to vector<1x128xf32>
    %197 = arith.addf %196, %195 : vector<1x128xf32>
    %198 = arith.divf %196, %197 : vector<1x128xf32>
    %199 = arith.mulf %190, %144 : vector<1x128xf32>
    %200 = arith.mulf %184, %192 : vector<1x128xf32>
    %201 = arith.addf %199, %200 : vector<1x128xf32>
    %202 = math.tanh %201 : vector<1x128xf32>
    %203 = arith.mulf %198, %202 : vector<1x128xf32>
    %204 = tpu.concatenate %203, %175 in 1 : vector<1x128xf32>, vector<1x128xf32> -> vector<1x256xf32>
    %cst_38 = arith.constant dense<0.000000e+00> : vector<1x1024xf32>
    %205 = tpu.matmul %204, %0, %cst_38 {dimension_numbers = #tpu.dot_dimension_numbers<[1], [0], [0], [1], [0, 0, 1, 1], [], []>} : vector<1x256xf32>, vector<256x1024xf32>, vector<1x1024xf32> -> vector<1x1024xf32>
    %206 = vector.extract_strided_slice %205 {offsets = [0, 512], sizes = [1, 512], strides = [1, 1]} : vector<1x1024xf32> to vector<1x512xf32>
    %207 = arith.addf %206, %1 : vector<1x512xf32>
    %208 = vector.extract_strided_slice %207 {offsets = [0, 0], sizes = [1, 128], strides = [1, 1]} : vector<1x512xf32> to vector<1x128xf32>
    %209 = arith.negf %208 : vector<1x128xf32>
    %210 = math.exp %209 : vector<1x128xf32>
    %cst_39 = arith.constant 1.000000e+00 : f32
    %211 = vector.broadcast %cst_39 : f32 to vector<1x128xf32>
    %212 = arith.addf %211, %210 : vector<1x128xf32>
    %213 = arith.divf %211, %212 : vector<1x128xf32>
    %214 = vector.extract_strided_slice %207 {offsets = [0, 128], sizes = [1, 128], strides = [1, 1]} : vector<1x512xf32> to vector<1x128xf32>
    %215 = arith.negf %214 : vector<1x128xf32>
    %216 = math.exp %215 : vector<1x128xf32>
    %cst_40 = arith.constant 1.000000e+00 : f32
    %217 = vector.broadcast %cst_40 : f32 to vector<1x128xf32>
    %218 = arith.addf %217, %216 : vector<1x128xf32>
    %219 = arith.divf %217, %218 : vector<1x128xf32>
    %220 = vector.extract_strided_slice %207 {offsets = [0, 256], sizes = [1, 128], strides = [1, 1]} : vector<1x512xf32> to vector<1x128xf32>
    %221 = math.tanh %220 : vector<1x128xf32>
    %222 = vector.extract_strided_slice %207 {offsets = [0, 384], sizes = [1, 128], strides = [1, 1]} : vector<1x512xf32> to vector<1x128xf32>
    %223 = arith.negf %222 : vector<1x128xf32>
    %224 = math.exp %223 : vector<1x128xf32>
    %cst_41 = arith.constant 1.000000e+00 : f32
    %225 = vector.broadcast %cst_41 : f32 to vector<1x128xf32>
    %226 = arith.addf %225, %224 : vector<1x128xf32>
    %227 = arith.divf %225, %226 : vector<1x128xf32>
    %228 = arith.mulf %219, %173 : vector<1x128xf32>
    %229 = arith.mulf %213, %221 : vector<1x128xf32>
    %230 = arith.addf %228, %229 : vector<1x128xf32>
    %231 = math.tanh %230 : vector<1x128xf32>
    %232 = arith.mulf %227, %231 : vector<1x128xf32>
    %c3 = arith.constant 3 : index
    %c0_42 = arith.constant 0 : index
    %233 = vector.load %arg8[%c3, %c0_42] : memref<8x128xf32, #tpu.memory_space<vmem>>, vector<1x128xf32>
    tpu.vector_store %arg8[%c3, %c0_42], %232 {strides = array<i32>} : memref<8x128xf32, #tpu.memory_space<vmem>>, vector<1x128xf32>,
    %234 = vector.extract_strided_slice %205 {offsets = [0, 0], sizes = [1, 512], strides = [1, 1]} : vector<1x1024xf32> to vector<1x512xf32>
    %235 = arith.addf %234, %6 : vector<1x512xf32>
    %236 = vector.extract_strided_slice %235 {offsets = [0, 0], sizes = [1, 128], strides = [1, 1]} : vector<1x512xf32> to vector<1x128xf32>
    %237 = arith.negf %236 : vector<1x128xf32>
    %238 = math.exp %237 : vector<1x128xf32>
    %cst_43 = arith.constant 1.000000e+00 : f32
    %239 = vector.broadcast %cst_43 : f32 to vector<1x128xf32>
    %240 = arith.addf %239, %238 : vector<1x128xf32>
    %241 = arith.divf %239, %240 : vector<1x128xf32>
    %242 = vector.extract_strided_slice %235 {offsets = [0, 128], sizes = [1, 128], strides = [1, 1]} : vector<1x512xf32> to vector<1x128xf32>
    %243 = arith.negf %242 : vector<1x128xf32>
    %244 = math.exp %243 : vector<1x128xf32>
    %cst_44 = arith.constant 1.000000e+00 : f32
    %245 = vector.broadcast %cst_44 : f32 to vector<1x128xf32>
    %246 = arith.addf %245, %244 : vector<1x128xf32>
    %247 = arith.divf %245, %246 : vector<1x128xf32>
    %248 = vector.extract_strided_slice %235 {offsets = [0, 256], sizes = [1, 128], strides = [1, 1]} : vector<1x512xf32> to vector<1x128xf32>
    %249 = math.tanh %248 : vector<1x128xf32>
    %250 = vector.extract_strided_slice %235 {offsets = [0, 384], sizes = [1, 128], strides = [1, 1]} : vector<1x512xf32> to vector<1x128xf32>
    %251 = arith.negf %250 : vector<1x128xf32>
    %252 = math.exp %251 : vector<1x128xf32>
    %cst_45 = arith.constant 1.000000e+00 : f32
    %253 = vector.broadcast %cst_45 : f32 to vector<1x128xf32>
    %254 = arith.addf %253, %252 : vector<1x128xf32>
    %255 = arith.divf %253, %254 : vector<1x128xf32>
    %256 = arith.mulf %247, %201 : vector<1x128xf32>
    %257 = arith.mulf %241, %249 : vector<1x128xf32>
    %258 = arith.addf %256, %257 : vector<1x128xf32>
    %259 = math.tanh %258 : vector<1x128xf32>
    %260 = arith.mulf %255, %259 : vector<1x128xf32>
    %261 = tpu.concatenate %260, %232 in 1 : vector<1x128xf32>, vector<1x128xf32> -> vector<1x256xf32>
    %cst_46 = arith.constant dense<0.000000e+00> : vector<1x1024xf32>
    %262 = tpu.matmul %261, %0, %cst_46 {dimension_numbers = #tpu.dot_dimension_numbers<[1], [0], [0], [1], [0, 0, 1, 1], [], []>} : vector<1x256xf32>, vector<256x1024xf32>, vector<1x1024xf32> -> vector<1x1024xf32>
    %263 = vector.extract_strided_slice %262 {offsets = [0, 512], sizes = [1, 512], strides = [1, 1]} : vector<1x1024xf32> to vector<1x512xf32>
    %264 = arith.addf %263, %1 : vector<1x512xf32>
    %265 = vector.extract_strided_slice %264 {offsets = [0, 0], sizes = [1, 128], strides = [1, 1]} : vector<1x512xf32> to vector<1x128xf32>
    %266 = arith.negf %265 : vector<1x128xf32>
    %267 = math.exp %266 : vector<1x128xf32>
    %cst_47 = arith.constant 1.000000e+00 : f32
    %268 = vector.broadcast %cst_47 : f32 to vector<1x128xf32>
    %269 = arith.addf %268, %267 : vector<1x128xf32>
    %270 = arith.divf %268, %269 : vector<1x128xf32>
    %271 = vector.extract_strided_slice %264 {offsets = [0, 128], sizes = [1, 128], strides = [1, 1]} : vector<1x512xf32> to vector<1x128xf32>
    %272 = arith.negf %271 : vector<1x128xf32>
    %273 = math.exp %272 : vector<1x128xf32>
    %cst_48 = arith.constant 1.000000e+00 : f32
    %274 = vector.broadcast %cst_48 : f32 to vector<1x128xf32>
    %275 = arith.addf %274, %273 : vector<1x128xf32>
    %276 = arith.divf %274, %275 : vector<1x128xf32>
    %277 = vector.extract_strided_slice %264 {offsets = [0, 256], sizes = [1, 128], strides = [1, 1]} : vector<1x512xf32> to vector<1x128xf32>
    %278 = math.tanh %277 : vector<1x128xf32>
    %279 = vector.extract_strided_slice %264 {offsets = [0, 384], sizes = [1, 128], strides = [1, 1]} : vector<1x512xf32> to vector<1x128xf32>
    %280 = arith.negf %279 : vector<1x128xf32>
    %281 = math.exp %280 : vector<1x128xf32>
    %cst_49 = arith.constant 1.000000e+00 : f32
    %282 = vector.broadcast %cst_49 : f32 to vector<1x128xf32>
    %283 = arith.addf %282, %281 : vector<1x128xf32>
    %284 = arith.divf %282, %283 : vector<1x128xf32>
    %285 = arith.mulf %276, %230 : vector<1x128xf32>
    %286 = arith.mulf %270, %278 : vector<1x128xf32>
    %287 = arith.addf %285, %286 : vector<1x128xf32>
    %288 = math.tanh %287 : vector<1x128xf32>
    %289 = arith.mulf %284, %288 : vector<1x128xf32>
    %c4 = arith.constant 4 : index
    %c0_50 = arith.constant 0 : index
    %290 = vector.load %arg8[%c4, %c0_50] : memref<8x128xf32, #tpu.memory_space<vmem>>, vector<1x128xf32>
    tpu.vector_store %arg8[%c4, %c0_50], %289 {strides = array<i32>} : memref<8x128xf32, #tpu.memory_space<vmem>>, vector<1x128xf32>,
    %291 = vector.extract_strided_slice %262 {offsets = [0, 0], sizes = [1, 512], strides = [1, 1]} : vector<1x1024xf32> to vector<1x512xf32>
    %292 = arith.addf %291, %6 : vector<1x512xf32>
    %293 = vector.extract_strided_slice %292 {offsets = [0, 0], sizes = [1, 128], strides = [1, 1]} : vector<1x512xf32> to vector<1x128xf32>
    %294 = arith.negf %293 : vector<1x128xf32>
    %295 = math.exp %294 : vector<1x128xf32>
    %cst_51 = arith.constant 1.000000e+00 : f32
    %296 = vector.broadcast %cst_51 : f32 to vector<1x128xf32>
    %297 = arith.addf %296, %295 : vector<1x128xf32>
    %298 = arith.divf %296, %297 : vector<1x128xf32>
    %299 = vector.extract_strided_slice %292 {offsets = [0, 128], sizes = [1, 128], strides = [1, 1]} : vector<1x512xf32> to vector<1x128xf32>
    %300 = arith.negf %299 : vector<1x128xf32>
    %301 = math.exp %300 : vector<1x128xf32>
    %cst_52 = arith.constant 1.000000e+00 : f32
    %302 = vector.broadcast %cst_52 : f32 to vector<1x128xf32>
    %303 = arith.addf %302, %301 : vector<1x128xf32>
    %304 = arith.divf %302, %303 : vector<1x128xf32>
    %305 = vector.extract_strided_slice %292 {offsets = [0, 256], sizes = [1, 128], strides = [1, 1]} : vector<1x512xf32> to vector<1x128xf32>
    %306 = math.tanh %305 : vector<1x128xf32>
    %307 = vector.extract_strided_slice %292 {offsets = [0, 384], sizes = [1, 128], strides = [1, 1]} : vector<1x512xf32> to vector<1x128xf32>
    %308 = arith.negf %307 : vector<1x128xf32>
    %309 = math.exp %308 : vector<1x128xf32>
    %cst_53 = arith.constant 1.000000e+00 : f32
    %310 = vector.broadcast %cst_53 : f32 to vector<1x128xf32>
    %311 = arith.addf %310, %309 : vector<1x128xf32>
    %312 = arith.divf %310, %311 : vector<1x128xf32>
    %313 = arith.mulf %304, %258 : vector<1x128xf32>
    %314 = arith.mulf %298, %306 : vector<1x128xf32>
    %315 = arith.addf %313, %314 : vector<1x128xf32>
    %316 = math.tanh %315 : vector<1x128xf32>
    %317 = arith.mulf %312, %316 : vector<1x128xf32>
    %318 = tpu.concatenate %317, %289 in 1 : vector<1x128xf32>, vector<1x128xf32> -> vector<1x256xf32>
    %cst_54 = arith.constant dense<0.000000e+00> : vector<1x1024xf32>
    %319 = tpu.matmul %318, %0, %cst_54 {dimension_numbers = #tpu.dot_dimension_numbers<[1], [0], [0], [1], [0, 0, 1, 1], [], []>} : vector<1x256xf32>, vector<256x1024xf32>, vector<1x1024xf32> -> vector<1x1024xf32>
    %320 = vector.extract_strided_slice %319 {offsets = [0, 512], sizes = [1, 512], strides = [1, 1]} : vector<1x1024xf32> to vector<1x512xf32>
    %321 = arith.addf %320, %1 : vector<1x512xf32>
    %322 = vector.extract_strided_slice %321 {offsets = [0, 0], sizes = [1, 128], strides = [1, 1]} : vector<1x512xf32> to vector<1x128xf32>
    %323 = arith.negf %322 : vector<1x128xf32>
    %324 = math.exp %323 : vector<1x128xf32>
    %cst_55 = arith.constant 1.000000e+00 : f32
    %325 = vector.broadcast %cst_55 : f32 to vector<1x128xf32>
    %326 = arith.addf %325, %324 : vector<1x128xf32>
    %327 = arith.divf %325, %326 : vector<1x128xf32>
    %328 = vector.extract_strided_slice %321 {offsets = [0, 128], sizes = [1, 128], strides = [1, 1]} : vector<1x512xf32> to vector<1x128xf32>
    %329 = arith.negf %328 : vector<1x128xf32>
    %330 = math.exp %329 : vector<1x128xf32>
    %cst_56 = arith.constant 1.000000e+00 : f32
    %331 = vector.broadcast %cst_56 : f32 to vector<1x128xf32>
    %332 = arith.addf %331, %330 : vector<1x128xf32>
    %333 = arith.divf %331, %332 : vector<1x128xf32>
    %334 = vector.extract_strided_slice %321 {offsets = [0, 256], sizes = [1, 128], strides = [1, 1]} : vector<1x512xf32> to vector<1x128xf32>
    %335 = math.tanh %334 : vector<1x128xf32>
    %336 = vector.extract_strided_slice %321 {offsets = [0, 384], sizes = [1, 128], strides = [1, 1]} : vector<1x512xf32> to vector<1x128xf32>
    %337 = arith.negf %336 : vector<1x128xf32>
    %338 = math.exp %337 : vector<1x128xf32>
    %cst_57 = arith.constant 1.000000e+00 : f32
    %339 = vector.broadcast %cst_57 : f32 to vector<1x128xf32>
    %340 = arith.addf %339, %338 : vector<1x128xf32>
    %341 = arith.divf %339, %340 : vector<1x128xf32>
    %342 = arith.mulf %333, %287 : vector<1x128xf32>
    %343 = arith.mulf %327, %335 : vector<1x128xf32>
    %344 = arith.addf %342, %343 : vector<1x128xf32>
    %345 = math.tanh %344 : vector<1x128xf32>
    %346 = arith.mulf %341, %345 : vector<1x128xf32>
    %c5 = arith.constant 5 : index
    %c0_58 = arith.constant 0 : index
    %347 = vector.load %arg8[%c5, %c0_58] : memref<8x128xf32, #tpu.memory_space<vmem>>, vector<1x128xf32>
    tpu.vector_store %arg8[%c5, %c0_58], %346 {strides = array<i32>} : memref<8x128xf32, #tpu.memory_space<vmem>>, vector<1x128xf32>,
    %348 = vector.extract_strided_slice %319 {offsets = [0, 0], sizes = [1, 512], strides = [1, 1]} : vector<1x1024xf32> to vector<1x512xf32>
    %349 = arith.addf %348, %6 : vector<1x512xf32>
    %350 = vector.extract_strided_slice %349 {offsets = [0, 0], sizes = [1, 128], strides = [1, 1]} : vector<1x512xf32> to vector<1x128xf32>
    %351 = arith.negf %350 : vector<1x128xf32>
    %352 = math.exp %351 : vector<1x128xf32>
    %cst_59 = arith.constant 1.000000e+00 : f32
    %353 = vector.broadcast %cst_59 : f32 to vector<1x128xf32>
    %354 = arith.addf %353, %352 : vector<1x128xf32>
    %355 = arith.divf %353, %354 : vector<1x128xf32>
    %356 = vector.extract_strided_slice %349 {offsets = [0, 128], sizes = [1, 128], strides = [1, 1]} : vector<1x512xf32> to vector<1x128xf32>
    %357 = arith.negf %356 : vector<1x128xf32>
    %358 = math.exp %357 : vector<1x128xf32>
    %cst_60 = arith.constant 1.000000e+00 : f32
    %359 = vector.broadcast %cst_60 : f32 to vector<1x128xf32>
    %360 = arith.addf %359, %358 : vector<1x128xf32>
    %361 = arith.divf %359, %360 : vector<1x128xf32>
    %362 = vector.extract_strided_slice %349 {offsets = [0, 256], sizes = [1, 128], strides = [1, 1]} : vector<1x512xf32> to vector<1x128xf32>
    %363 = math.tanh %362 : vector<1x128xf32>
    %364 = vector.extract_strided_slice %349 {offsets = [0, 384], sizes = [1, 128], strides = [1, 1]} : vector<1x512xf32> to vector<1x128xf32>
    %365 = arith.negf %364 : vector<1x128xf32>
    %366 = math.exp %365 : vector<1x128xf32>
    %cst_61 = arith.constant 1.000000e+00 : f32
    %367 = vector.broadcast %cst_61 : f32 to vector<1x128xf32>
    %368 = arith.addf %367, %366 : vector<1x128xf32>
    %369 = arith.divf %367, %368 : vector<1x128xf32>
    %370 = arith.mulf %361, %315 : vector<1x128xf32>
    %371 = arith.mulf %355, %363 : vector<1x128xf32>
    %372 = arith.addf %370, %371 : vector<1x128xf32>
    %373 = math.tanh %372 : vector<1x128xf32>
    %374 = arith.mulf %369, %373 : vector<1x128xf32>
    %375 = tpu.concatenate %374, %346 in 1 : vector<1x128xf32>, vector<1x128xf32> -> vector<1x256xf32>
    %cst_62 = arith.constant dense<0.000000e+00> : vector<1x1024xf32>
    %376 = tpu.matmul %375, %0, %cst_62 {dimension_numbers = #tpu.dot_dimension_numbers<[1], [0], [0], [1], [0, 0, 1, 1], [], []>} : vector<1x256xf32>, vector<256x1024xf32>, vector<1x1024xf32> -> vector<1x1024xf32>
    %377 = vector.extract_strided_slice %376 {offsets = [0, 512], sizes = [1, 512], strides = [1, 1]} : vector<1x1024xf32> to vector<1x512xf32>
    %378 = arith.addf %377, %1 : vector<1x512xf32>
    %379 = vector.extract_strided_slice %378 {offsets = [0, 0], sizes = [1, 128], strides = [1, 1]} : vector<1x512xf32> to vector<1x128xf32>
    %380 = arith.negf %379 : vector<1x128xf32>
    %381 = math.exp %380 : vector<1x128xf32>
    %cst_63 = arith.constant 1.000000e+00 : f32
    %382 = vector.broadcast %cst_63 : f32 to vector<1x128xf32>
    %383 = arith.addf %382, %381 : vector<1x128xf32>
    %384 = arith.divf %382, %383 : vector<1x128xf32>
    %385 = vector.extract_strided_slice %378 {offsets = [0, 128], sizes = [1, 128], strides = [1, 1]} : vector<1x512xf32> to vector<1x128xf32>
    %386 = arith.negf %385 : vector<1x128xf32>
    %387 = math.exp %386 : vector<1x128xf32>
    %cst_64 = arith.constant 1.000000e+00 : f32
    %388 = vector.broadcast %cst_64 : f32 to vector<1x128xf32>
    %389 = arith.addf %388, %387 : vector<1x128xf32>
    %390 = arith.divf %388, %389 : vector<1x128xf32>
    %391 = vector.extract_strided_slice %378 {offsets = [0, 256], sizes = [1, 128], strides = [1, 1]} : vector<1x512xf32> to vector<1x128xf32>
    %392 = math.tanh %391 : vector<1x128xf32>
    %393 = vector.extract_strided_slice %378 {offsets = [0, 384], sizes = [1, 128], strides = [1, 1]} : vector<1x512xf32> to vector<1x128xf32>
    %394 = arith.negf %393 : vector<1x128xf32>
    %395 = math.exp %394 : vector<1x128xf32>
    %cst_65 = arith.constant 1.000000e+00 : f32
    %396 = vector.broadcast %cst_65 : f32 to vector<1x128xf32>
    %397 = arith.addf %396, %395 : vector<1x128xf32>
    %398 = arith.divf %396, %397 : vector<1x128xf32>
    %399 = arith.mulf %390, %344 : vector<1x128xf32>
    %400 = arith.mulf %384, %392 : vector<1x128xf32>
    %401 = arith.addf %399, %400 : vector<1x128xf32>
    %402 = math.tanh %401 : vector<1x128xf32>
    %403 = arith.mulf %398, %402 : vector<1x128xf32>
    %c6 = arith.constant 6 : index
    %c0_66 = arith.constant 0 : index
    %404 = vector.load %arg8[%c6, %c0_66] : memref<8x128xf32, #tpu.memory_space<vmem>>, vector<1x128xf32>
    tpu.vector_store %arg8[%c6, %c0_66], %403 {strides = array<i32>} : memref<8x128xf32, #tpu.memory_space<vmem>>, vector<1x128xf32>,
    %405 = vector.extract_strided_slice %376 {offsets = [0, 0], sizes = [1, 512], strides = [1, 1]} : vector<1x1024xf32> to vector<1x512xf32>
    %406 = arith.addf %405, %6 : vector<1x512xf32>
    %407 = vector.extract_strided_slice %406 {offsets = [0, 0], sizes = [1, 128], strides = [1, 1]} : vector<1x512xf32> to vector<1x128xf32>
    %408 = arith.negf %407 : vector<1x128xf32>
    %409 = math.exp %408 : vector<1x128xf32>
    %cst_67 = arith.constant 1.000000e+00 : f32
    %410 = vector.broadcast %cst_67 : f32 to vector<1x128xf32>
    %411 = arith.addf %410, %409 : vector<1x128xf32>
    %412 = arith.divf %410, %411 : vector<1x128xf32>
    %413 = vector.extract_strided_slice %406 {offsets = [0, 128], sizes = [1, 128], strides = [1, 1]} : vector<1x512xf32> to vector<1x128xf32>
    %414 = arith.negf %413 : vector<1x128xf32>
    %415 = math.exp %414 : vector<1x128xf32>
    %cst_68 = arith.constant 1.000000e+00 : f32
    %416 = vector.broadcast %cst_68 : f32 to vector<1x128xf32>
    %417 = arith.addf %416, %415 : vector<1x128xf32>
    %418 = arith.divf %416, %417 : vector<1x128xf32>
    %419 = vector.extract_strided_slice %406 {offsets = [0, 256], sizes = [1, 128], strides = [1, 1]} : vector<1x512xf32> to vector<1x128xf32>
    %420 = math.tanh %419 : vector<1x128xf32>
    %421 = vector.extract_strided_slice %406 {offsets = [0, 384], sizes = [1, 128], strides = [1, 1]} : vector<1x512xf32> to vector<1x128xf32>
    %422 = arith.negf %421 : vector<1x128xf32>
    %423 = math.exp %422 : vector<1x128xf32>
    %cst_69 = arith.constant 1.000000e+00 : f32
    %424 = vector.broadcast %cst_69 : f32 to vector<1x128xf32>
    %425 = arith.addf %424, %423 : vector<1x128xf32>
    %426 = arith.divf %424, %425 : vector<1x128xf32>
    %427 = arith.mulf %418, %372 : vector<1x128xf32>
    %428 = arith.mulf %412, %420 : vector<1x128xf32>
    %429 = arith.addf %427, %428 : vector<1x128xf32>
    %430 = math.tanh %429 : vector<1x128xf32>
    %431 = arith.mulf %426, %430 : vector<1x128xf32>
    %432 = tpu.concatenate %431, %403 in 1 : vector<1x128xf32>, vector<1x128xf32> -> vector<1x256xf32>
    %cst_70 = arith.constant dense<0.000000e+00> : vector<1x1024xf32>
    %433 = tpu.matmul %432, %0, %cst_70 {dimension_numbers = #tpu.dot_dimension_numbers<[1], [0], [0], [1], [0, 0, 1, 1], [], []>} : vector<1x256xf32>, vector<256x1024xf32>, vector<1x1024xf32> -> vector<1x1024xf32>
    %434 = vector.extract_strided_slice %433 {offsets = [0, 512], sizes = [1, 512], strides = [1, 1]} : vector<1x1024xf32> to vector<1x512xf32>
    %435 = arith.addf %434, %1 : vector<1x512xf32>
    %436 = vector.extract_strided_slice %435 {offsets = [0, 0], sizes = [1, 128], strides = [1, 1]} : vector<1x512xf32> to vector<1x128xf32>
    %437 = arith.negf %436 : vector<1x128xf32>
    %438 = math.exp %437 : vector<1x128xf32>
    %cst_71 = arith.constant 1.000000e+00 : f32
    %439 = vector.broadcast %cst_71 : f32 to vector<1x128xf32>
    %440 = arith.addf %439, %438 : vector<1x128xf32>
    %441 = arith.divf %439, %440 : vector<1x128xf32>
    %442 = vector.extract_strided_slice %435 {offsets = [0, 128], sizes = [1, 128], strides = [1, 1]} : vector<1x512xf32> to vector<1x128xf32>
    %443 = arith.negf %442 : vector<1x128xf32>
    %444 = math.exp %443 : vector<1x128xf32>
    %cst_72 = arith.constant 1.000000e+00 : f32
    %445 = vector.broadcast %cst_72 : f32 to vector<1x128xf32>
    %446 = arith.addf %445, %444 : vector<1x128xf32>
    %447 = arith.divf %445, %446 : vector<1x128xf32>
    %448 = vector.extract_strided_slice %435 {offsets = [0, 256], sizes = [1, 128], strides = [1, 1]} : vector<1x512xf32> to vector<1x128xf32>
    %449 = math.tanh %448 : vector<1x128xf32>
    %450 = vector.extract_strided_slice %435 {offsets = [0, 384], sizes = [1, 128], strides = [1, 1]} : vector<1x512xf32> to vector<1x128xf32>
    %451 = arith.negf %450 : vector<1x128xf32>
    %452 = math.exp %451 : vector<1x128xf32>
    %cst_73 = arith.constant 1.000000e+00 : f32
    %453 = vector.broadcast %cst_73 : f32 to vector<1x128xf32>
    %454 = arith.addf %453, %452 : vector<1x128xf32>
    %455 = arith.divf %453, %454 : vector<1x128xf32>
    %456 = arith.mulf %447, %401 : vector<1x128xf32>
    %457 = arith.mulf %441, %449 : vector<1x128xf32>
    %458 = arith.addf %456, %457 : vector<1x128xf32>
    %459 = math.tanh %458 : vector<1x128xf32>
    %460 = arith.mulf %455, %459 : vector<1x128xf32>
    %c7 = arith.constant 7 : index
    %c0_74 = arith.constant 0 : index
    %461 = vector.load %arg8[%c7, %c0_74] : memref<8x128xf32, #tpu.memory_space<vmem>>, vector<1x128xf32>
    tpu.vector_store %arg8[%c7, %c0_74], %460 {strides = array<i32>} : memref<8x128xf32, #tpu.memory_space<vmem>>, vector<1x128xf32>,
    %c0_75 = arith.constant 0 : index
    %c0_76 = arith.constant 0 : index
    %462 = vector.load %arg8[%c0_75, %c0_76] : memref<8x128xf32, #tpu.memory_space<vmem>>, vector<8x128xf32>
    %c0_77 = arith.constant 0 : index
    %c0_78 = arith.constant 0 : index
    %463 = vector.load %arg5[%c0_77, %c0_78] : memref<128x128xf32, #tpu.memory_space<vmem>>, vector<128x128xf32>
    %cst_79 = arith.constant dense<0.000000e+00> : vector<8x128xf32>
    %464 = tpu.matmul %462, %463, %cst_79 {dimension_numbers = #tpu.dot_dimension_numbers<[1], [0], [0], [1], [0, 0, 1, 1], [], []>} : vector<8x128xf32>, vector<128x128xf32>, vector<8x128xf32> -> vector<8x128xf32>
    %c0_80 = arith.constant 0 : index
    %c0_81 = arith.constant 0 : index
    %465 = vector.load %arg6[%c0_80, %c0_81] : memref<1x128xf32, #tpu.memory_space<vmem>>, vector<1x128xf32>
    %466 = vector.broadcast %465 : vector<1x128xf32> to vector<8x128xf32>
    %467 = arith.addf %464, %466 : vector<8x128xf32>
    %c0_82 = arith.constant 0 : index
    %c0_83 = arith.constant 0 : index
    %468 = vector.load %arg7[%c0_82, %c0_83] : memref<8x128xf32, #tpu.memory_space<vmem>>, vector<8x128xf32>
    tpu.vector_store %arg7[%c0_82, %c0_83], %467 {strides = array<i32>} : memref<8x128xf32, #tpu.memory_space<vmem>>, vector<8x128xf32>,
    return
  }
}

</mosaic_0001>

<llo_original>
// kernel: tpu_custom_call.1
$region0: #{tpu_custom_call.1}
  #allocation0 [shape = 'u32[]', space=smem, size = 0x4, offset = 0x4, fixed_abs, tag = 'smem constant byte address 0x4 - core index']
  #allocation1 [shape = 'u32[144,128]{1,0:T(1,128)}', space=vmem, size = 0x12000, scoped, tag = 'internal scratch']
  #allocation2 [shape = 'f32[8,128]{1,0:T(8,128)}', space=vmem, size = 0x1000, scoped, tag = 'scratch operand']
  %s0 = inlined_call_operand.hbm [shape: f32[1,32], index: 0, kind: input, shape index: {}]
  %s1 = inlined_call_operand.hbm [shape: f32[32,512], index: 1, kind: input, shape index: {}]
  %s2 = inlined_call_operand.hbm [shape: f32[256,1024], index: 2, kind: input, shape index: {}]
  %s3 = inlined_call_operand.vmem [shape: f32[1,512], index: 3, kind: input, shape index: {}]
  %s4 = inlined_call_operand.vmem [shape: f32[1,512], index: 4, kind: input, shape index: {}]
  %s5 = inlined_call_operand.hbm [shape: f32[128,128], index: 5, kind: input, shape index: {}]
  %s6 = inlined_call_operand.vmem [shape: f32[1,128], index: 6, kind: input, shape index: {}]
  %s7 = inlined_call_operand.hbm [shape: f32[8,128], index: 7, kind: output, shape index: {}]
  %s8 = sld [smem:[#allocation0]]
  $region54: #{tpu_custom_call.1} parent=0
    _
  %s10 = ssub.s32 1, %s8
  %s11 = scalar_select 0, %s10, %s8
  $region1: #{tpu_custom_call.1} parent=0
    #allocation3 [shape = 'u8[512]{0}', space=vmem, size = 0x400, scoped, tag = 'input window, operand 0, single buffered']
    #allocation4 [shape = 's32[1]{0}', space=sflag, size = 0x4, scoped, tag = 'scoped memory for tpu_custom_call.1']
    #allocation5 [shape = 's32[1]{0}', space=sflag, size = 0x4, scoped, tag = 'scoped memory for tpu_custom_call.1']
    #allocation6 [shape = 'u8[65536]{0}', space=vmem, size = 0x10000, scoped, tag = 'input window, operand 1, single buffered']
    #allocation7 [shape = 's32[1]{0}', space=sflag, size = 0x4, scoped, tag = 'scoped memory for tpu_custom_call.1']
    #allocation8 [shape = 'u8[1048576]{0}', space=vmem, size = 0x100000, scoped, tag = 'input window, operand 2, single buffered']
    #allocation9 [shape = 'u8[65536]{0}', space=vmem, size = 0x10000, scoped, tag = 'input window, operand 5, single buffered']
    #allocation10 [shape = 's32[1]{0}', space=sflag, size = 0x4, scoped, tag = 'scoped memory for tpu_custom_call.1']
    #allocation11 [shape = 'u8[4096]{0}', space=vmem, size = 0x1000, scoped, tag = 'output window, operand 0, single buffered']
    %12 = vsyncpa [#allocation4], 0
    %13 = vsyncpa [#allocation7], 0
    %14 = vsyncpa [#allocation10], 0
    %15 = vsyncpa [#allocation5], 0
    // Predicated region
    $region2: #{tpu_custom_call.1} parent=1 // pred_check
      _
    $region3: #{tpu_custom_call.1} parent=1 // pred_check_branch
      %17 = sbr.rel (0) target = $region5
    $region4: #{tpu_custom_call.1} parent=1 // pred_region
      %s19 = ssub.s32 16, 16
      %20 = vsyncadd [#allocation4], %s19
      %s22 = sshll.u32 [#allocation3], 4
      %s23 = int_to_ptr.vmem [resolvable:$true] %s22
      %25 = dma.hbm_to_vmem [thread:$0]  %s0, 16, %s23, [#allocation4]
    $region5: #{tpu_custom_call.1} parent=1 // pred_fallthru
      _
    // Predicated region
    $region6: #{tpu_custom_call.1} parent=1 // pred_check
      _
    $region7: #{tpu_custom_call.1} parent=1 // pred_check_branch
      %27 = sbr.rel (0) target = $region9
    $region8: #{tpu_custom_call.1} parent=1 // pred_region
      %s29 = ssub.s32 2048, 2048
      %30 = vsyncadd [#allocation7], %s29
      %s31 = sshll.u32 [#allocation6], 4
      %s32 = int_to_ptr.vmem [resolvable:$true] %s31
      %37 = dma.hbm_to_vmem [thread:$0]  %s1, 2048, %s32, [#allocation7], 512, 512, 32
    $region9: #{tpu_custom_call.1} parent=1 // pred_fallthru
      _
    // Predicated region
    $region10: #{tpu_custom_call.1} parent=1 // pred_check
      _
    $region11: #{tpu_custom_call.1} parent=1 // pred_check_branch
      %39 = sbr.rel (0) target = $region13
    $region12: #{tpu_custom_call.1} parent=1 // pred_region
      %s41 = ssub.s32 32768, 32768
      %42 = vsyncadd [#allocation7], %s41
      %s43 = sshll.u32 [#allocation8], 4
      %s44 = int_to_ptr.vmem [resolvable:$true] %s43
      %49 = dma.hbm_to_vmem [thread:$0]  %s2, 32768, %s44, [#allocation7], 1024, 1024, 64
    $region13: #{tpu_custom_call.1} parent=1 // pred_fallthru
      _
    // Predicated region
    $region14: #{tpu_custom_call.1} parent=1 // pred_check
      _
    $region15: #{tpu_custom_call.1} parent=1 // pred_check_branch
      %51 = sbr.rel (0) target = $region17
    $region16: #{tpu_custom_call.1} parent=1 // pred_region
      _
    $region17: #{tpu_custom_call.1} parent=1 // pred_fallthru
      _
    // Predicated region
    $region18: #{tpu_custom_call.1} parent=1 // pred_check
      _
    $region19: #{tpu_custom_call.1} parent=1 // pred_check_branch
      %53 = sbr.rel (0) target = $region21
    $region20: #{tpu_custom_call.1} parent=1 // pred_region
      _
    $region21: #{tpu_custom_call.1} parent=1 // pred_fallthru
      _
    // Predicated region
    $region22: #{tpu_custom_call.1} parent=1 // pred_check
      _
    $region23: #{tpu_custom_call.1} parent=1 // pred_check_branch
      %55 = sbr.rel (0) target = $region25
    $region24: #{tpu_custom_call.1} parent=1 // pred_region
      %s57 = ssub.s32 2048, 2048
      %58 = vsyncadd [#allocation10], %s57
      %s59 = sshll.u32 [#allocation9], 4
      %s60 = int_to_ptr.vmem [resolvable:$true] %s59
      %65 = dma.hbm_to_vmem [thread:$0]  %s5, 2048, %s60, [#allocation10], 128, 128, 8
    $region25: #{tpu_custom_call.1} parent=1 // pred_fallthru
      _
    // Predicated region
    $region26: #{tpu_custom_call.1} parent=1 // pred_check
      _
    $region27: #{tpu_custom_call.1} parent=1 // pred_check_branch
      %67 = sbr.rel (0) target = $region29
    $region28: #{tpu_custom_call.1} parent=1 // pred_region
      _
    $region29: #{tpu_custom_call.1} parent=1 // pred_fallthru
      _
    // Predicated region
    $region30: #{tpu_custom_call.1} parent=1 // pred_check
      _
    $region31: #{tpu_custom_call.1} parent=1 // pred_check_branch
      %69 = sbr.rel (0) target = $region33
    $region32: #{tpu_custom_call.1} parent=1 // pred_region
      %70 = dma.done [#allocation4], 16
    $region33: #{tpu_custom_call.1} parent=1 // pred_fallthru
      _
    // Predicated region
    $region34: #{tpu_custom_call.1} parent=1 // pred_check
      _
    $region35: #{tpu_custom_call.1} parent=1 // pred_check_branch
      %72 = sbr.rel (0) target = $region37
    $region36: #{tpu_custom_call.1} parent=1 // pred_region
      %73 = dma.done [#allocation7], 2048
    $region37: #{tpu_custom_call.1} parent=1 // pred_fallthru
      _
    // Predicated region
    $region38: #{tpu_custom_call.1} parent=1 // pred_check
      _
    $region39: #{tpu_custom_call.1} parent=1 // pred_check_branch
      %75 = sbr.rel (0) target = $region41
    $region40: #{tpu_custom_call.1} parent=1 // pred_region
      %76 = dma.done [#allocation7], 32768
    $region41: #{tpu_custom_call.1} parent=1 // pred_fallthru
      _
    // Predicated region
    $region42: #{tpu_custom_call.1} parent=1 // pred_check
      _
    $region43: #{tpu_custom_call.1} parent=1 // pred_check_branch
      %78 = sbr.rel (0) target = $region45
    $region44: #{tpu_custom_call.1} parent=1 // pred_region
      %79 = dma.done [#allocation10], 2048
    $region45: #{tpu_custom_call.1} parent=1 // pred_fallthru
      _
    %v80 = vld [vmem:[#allocation8] sm:$0xff]
    %v81 = vld [vmem:[#allocation8 + $0x8] sm:$0xff]
    %v82 = vld [vmem:[#allocation8 + $0x10] sm:$0xff]
    %v83 = vld [vmem:[#allocation8 + $0x18] sm:$0xff]
    %v84 = vld [vmem:[#allocation8 + $0x20] sm:$0xff]
    %v85 = vld [vmem:[#allocation8 + $0x28] sm:$0xff]
    %v86 = vld [vmem:[#allocation8 + $0x30] sm:$0xff]
    %v87 = vld [vmem:[#allocation8 + $0x38] sm:$0xff]
    %v88 = vld [vmem:[#allocation8 + $0x40] sm:$0xff]
    %v89 = vld [vmem:[#allocation8 + $0x48] sm:$0xff]
    %v90 = vld [vmem:[#allocation8 + $0x50] sm:$0xff]
    %v91 = vld [vmem:[#allocation8 + $0x58] sm:$0xff]
    %v92 = vld [vmem:[#allocation8 + $0x60] sm:$0xff]
    %v93 = vld [vmem:[#allocation8 + $0x68] sm:$0xff]
    %v94 = vld [vmem:[#allocation8 + $0x70] sm:$0xff]
    %v95 = vld [vmem:[#allocation8 + $0x78] sm:$0xff]
    %v96 = vld [vmem:[#allocation8 + $0x80] sm:$0xff]
    %v97 = vld [vmem:[#allocation8 + $0x88] sm:$0xff]
    %v98 = vld [vmem:[#allocation8 + $0x90] sm:$0xff]
    %v99 = vld [vmem:[#allocation8 + $0x98] sm:$0xff]
    %v100 = vld [vmem:[#allocation8 + $0xa0] sm:$0xff]
    %v101 = vld [vmem:[#allocation8 + $0xa8] sm:$0xff]
    %v102 = vld [vmem:[#allocation8 + $0xb0] sm:$0xff]
    %v103 = vld [vmem:[#allocation8 + $0xb8] sm:$0xff]
    %v104 = vld [vmem:[#allocation8 + $0xc0] sm:$0xff]
    %v105 = vld [vmem:[#allocation8 + $0xc8] sm:$0xff]
    %v106 = vld [vmem:[#allocation8 + $0xd0] sm:$0xff]
    %v107 = vld [vmem:[#allocation8 + $0xd8] sm:$0xff]
    %v108 = vld [vmem:[#allocation8 + $0xe0] sm:$0xff]
    %v109 = vld [vmem:[#allocation8 + $0xe8] sm:$0xff]
    %v110 = vld [vmem:[#allocation8 + $0xf0] sm:$0xff]
    %v111 = vld [vmem:[#allocation8 + $0xf8] sm:$0xff]
    %v112 = vld [vmem:[#allocation8 + $0x100] sm:$0xff]
    %v113 = vld [vmem:[#allocation8 + $0x108] sm:$0xff]
    %v114 = vld [vmem:[#allocation8 + $0x110] sm:$0xff]
    %v115 = vld [vmem:[#allocation8 + $0x118] sm:$0xff]
    %v116 = vld [vmem:[#allocation8 + $0x120] sm:$0xff]
    %v117 = vld [vmem:[#allocation8 + $0x128] sm:$0xff]
    %v118 = vld [vmem:[#allocation8 + $0x130] sm:$0xff]
    %v119 = vld [vmem:[#allocation8 + $0x138] sm:$0xff]
    %v120 = vld [vmem:[#allocation8 + $0x140] sm:$0xff]
    %v121 = vld [vmem:[#allocation8 + $0x148] sm:$0xff]
    %v122 = vld [vmem:[#allocation8 + $0x150] sm:$0xff]
    %v123 = vld [vmem:[#allocation8 + $0x158] sm:$0xff]
    %v124 = vld [vmem:[#allocation8 + $0x160] sm:$0xff]
    %v125 = vld [vmem:[#allocation8 + $0x168] sm:$0xff]
    %v126 = vld [vmem:[#allocation8 + $0x170] sm:$0xff]
    %v127 = vld [vmem:[#allocation8 + $0x178] sm:$0xff]
    %v128 = vld [vmem:[#allocation8 + $0x180] sm:$0xff]
    %v129 = vld [vmem:[#allocation8 + $0x188] sm:$0xff]
    %v130 = vld [vmem:[#allocation8 + $0x190] sm:$0xff]
    %v131 = vld [vmem:[#allocation8 + $0x198] sm:$0xff]
    %v132 = vld [vmem:[#allocation8 + $0x1a0] sm:$0xff]
    %v133 = vld [vmem:[#allocation8 + $0x1a8] sm:$0xff]
    %v134 = vld [vmem:[#allocation8 + $0x1b0] sm:$0xff]
    %v135 = vld [vmem:[#allocation8 + $0x1b8] sm:$0xff]
    %v136 = vld [vmem:[#allocation8 + $0x1c0] sm:$0xff]
    %v137 = vld [vmem:[#allocation8 + $0x1c8] sm:$0xff]
    %v138 = vld [vmem:[#allocation8 + $0x1d0] sm:$0xff]
    %v139 = vld [vmem:[#allocation8 + $0x1d8] sm:$0xff]
    %v140 = vld [vmem:[#allocation8 + $0x1e0] sm:$0xff]
    %v141 = vld [vmem:[#allocation8 + $0x1e8] sm:$0xff]
    %v142 = vld [vmem:[#allocation8 + $0x1f0] sm:$0xff]
    %v143 = vld [vmem:[#allocation8 + $0x1f8] sm:$0xff]
    %v144 = vld [vmem:[#allocation8 + $0x200] sm:$0xff]
    %v145 = vld [vmem:[#allocation8 + $0x208] sm:$0xff]
    %v146 = vld [vmem:[#allocation8 + $0x210] sm:$0xff]
    %v147 = vld [vmem:[#allocation8 + $0x218] sm:$0xff]
    %v148 = vld [vmem:[#allocation8 + $0x220] sm:$0xff]
    %v149 = vld [vmem:[#allocation8 + $0x228] sm:$0xff]
    %v150 = vld [vmem:[#allocation8 + $0x230] sm:$0xff]
    %v151 = vld [vmem:[#allocation8 + $0x238] sm:$0xff]
    %v152 = vld [vmem:[#allocation8 + $0x240] sm:$0xff]
    %v153 = vld [vmem:[#allocation8 + $0x248] sm:$0xff]
    %v154 = vld [vmem:[#allocation8 + $0x250] sm:$0xff]
    %v155 = vld [vmem:[#allocation8 + $0x258] sm:$0xff]
    %v156 = vld [vmem:[#allocation8 + $0x260] sm:$0xff]
    %v157 = vld [vmem:[#allocation8 + $0x268] sm:$0xff]
    %v158 = vld [vmem:[#allocation8 + $0x270] sm:$0xff]
    %v159 = vld [vmem:[#allocation8 + $0x278] sm:$0xff]
    %v160 = vld [vmem:[#allocation8 + $0x280] sm:$0xff]
    %v161 = vld [vmem:[#allocation8 + $0x288] sm:$0xff]
    %v162 = vld [vmem:[#allocation8 + $0x290] sm:$0xff]
    %v163 = vld [vmem:[#allocation8 + $0x298] sm:$0xff]
    %v164 = vld [vmem:[#allocation8 + $0x2a0] sm:$0xff]
    %v165 = vld [vmem:[#allocation8 + $0x2a8] sm:$0xff]
    %v166 = vld [vmem:[#allocation8 + $0x2b0] sm:$0xff]
    %v167 = vld [vmem:[#allocation8 + $0x2b8] sm:$0xff]
    %v168 = vld [vmem:[#allocation8 + $0x2c0] sm:$0xff]
    %v169 = vld [vmem:[#allocation8 + $0x2c8] sm:$0xff]
    %v170 = vld [vmem:[#allocation8 + $0x2d0] sm:$0xff]
    %v171 = vld [vmem:[#allocation8 + $0x2d8] sm:$0xff]
    %v172 = vld [vmem:[#allocation8 + $0x2e0] sm:$0xff]
    %v173 = vld [vmem:[#allocation8 + $0x2e8] sm:$0xff]
    %v174 = vld [vmem:[#allocation8 + $0x2f0] sm:$0xff]
    %v175 = vld [vmem:[#allocation8 + $0x2f8] sm:$0xff]
    %v176 = vld [vmem:[#allocation8 + $0x300] sm:$0xff]
    %v177 = vld [vmem:[#allocation8 + $0x308] sm:$0xff]
    %v178 = vld [vmem:[#allocation8 + $0x310] sm:$0xff]
    %v179 = vld [vmem:[#allocation8 + $0x318] sm:$0xff]
    %v180 = vld [vmem:[#allocation8 + $0x320] sm:$0xff]
    %v181 = vld [vmem:[#allocation8 + $0x328] sm:$0xff]
    %v182 = vld [vmem:[#allocation8 + $0x330] sm:$0xff]
    %v183 = vld [vmem:[#allocation8 + $0x338] sm:$0xff]
    %v184 = vld [vmem:[#allocation8 + $0x340] sm:$0xff]
    %v185 = vld [vmem:[#allocation8 + $0x348] sm:$0xff]
    %v186 = vld [vmem:[#allocation8 + $0x350] sm:$0xff]
    %v187 = vld [vmem:[#allocation8 + $0x358] sm:$0xff]
    %v188 = vld [vmem:[#allocation8 + $0x360] sm:$0xff]
    %v189 = vld [vmem:[#allocation8 + $0x368] sm:$0xff]
    %v190 = vld [vmem:[#allocation8 + $0x370] sm:$0xff]
    %v191 = vld [vmem:[#allocation8 + $0x378] sm:$0xff]
    %v192 = vld [vmem:[#allocation8 + $0x380] sm:$0xff]
    %v193 = vld [vmem:[#allocation8 + $0x388] sm:$0xff]
    %v194 = vld [vmem:[#allocation8 + $0x390] sm:$0xff]
    %v195 = vld [vmem:[#allocation8 + $0x398] sm:$0xff]
    %v196 = vld [vmem:[#allocation8 + $0x3a0] sm:$0xff]
    %v197 = vld [vmem:[#allocation8 + $0x3a8] sm:$0xff]
    %v198 = vld [vmem:[#allocation8 + $0x3b0] sm:$0xff]
    %v199 = vld [vmem:[#allocation8 + $0x3b8] sm:$0xff]
    %v200 = vld [vmem:[#allocation8 + $0x3c0] sm:$0xff]
    %v201 = vld [vmem:[#allocation8 + $0x3c8] sm:$0xff]
    %v202 = vld [vmem:[#allocation8 + $0x3d0] sm:$0xff]
    %v203 = vld [vmem:[#allocation8 + $0x3d8] sm:$0xff]
    %v204 = vld [vmem:[#allocation8 + $0x3e0] sm:$0xff]
    %v205 = vld [vmem:[#allocation8 + $0x3e8] sm:$0xff]
    %v206 = vld [vmem:[#allocation8 + $0x3f0] sm:$0xff]
    %v207 = vld [vmem:[#allocation8 + $0x3f8] sm:$0xff]
    %v208 = vld [vmem:[#allocation8 + $0x400] sm:$0xff]
    %v209 = vld [vmem:[#allocation8 + $0x408] sm:$0xff]
    %v210 = vld [vmem:[#allocation8 + $0x410] sm:$0xff]
    %v211 = vld [vmem:[#allocation8 + $0x418] sm:$0xff]
    %v212 = vld [vmem:[#allocation8 + $0x420] sm:$0xff]
    %v213 = vld [vmem:[#allocation8 + $0x428] sm:$0xff]
    %v214 = vld [vmem:[#allocation8 + $0x430] sm:$0xff]
    %v215 = vld [vmem:[#allocation8 + $0x438] sm:$0xff]
    %v216 = vld [vmem:[#allocation8 + $0x440] sm:$0xff]
    %v217 = vld [vmem:[#allocation8 + $0x448] sm:$0xff]
    %v218 = vld [vmem:[#allocation8 + $0x450] sm:$0xff]
    %v219 = vld [vmem:[#allocation8 + $0x458] sm:$0xff]
    %v220 = vld [vmem:[#allocation8 + $0x460] sm:$0xff]
    %v221 = vld [vmem:[#allocation8 + $0x468] sm:$0xff]
    %v222 = vld [vmem:[#allocation8 + $0x470] sm:$0xff]
    %v223 = vld [vmem:[#allocation8 + $0x478] sm:$0xff]
    %v224 = vld [vmem:[#allocation8 + $0x480] sm:$0xff]
    %v225 = vld [vmem:[#allocation8 + $0x488] sm:$0xff]
    %v226 = vld [vmem:[#allocation8 + $0x490] sm:$0xff]
    %v227 = vld [vmem:[#allocation8 + $0x498] sm:$0xff]
    %v228 = vld [vmem:[#allocation8 + $0x4a0] sm:$0xff]
    %v229 = vld [vmem:[#allocation8 + $0x4a8] sm:$0xff]
    %v230 = vld [vmem:[#allocation8 + $0x4b0] sm:$0xff]
    %v231 = vld [vmem:[#allocation8 + $0x4b8] sm:$0xff]
    %v232 = vld [vmem:[#allocation8 + $0x4c0] sm:$0xff]
    %v233 = vld [vmem:[#allocation8 + $0x4c8] sm:$0xff]
    %v234 = vld [vmem:[#allocation8 + $0x4d0] sm:$0xff]
    %v235 = vld [vmem:[#allocation8 + $0x4d8] sm:$0xff]
    %v236 = vld [vmem:[#allocation8 + $0x4e0] sm:$0xff]
    %v237 = vld [vmem:[#allocation8 + $0x4e8] sm:$0xff]
    %v238 = vld [vmem:[#allocation8 + $0x4f0] sm:$0xff]
    %v239 = vld [vmem:[#allocation8 + $0x4f8] sm:$0xff]
    %v240 = vld [vmem:[#allocation8 + $0x500] sm:$0xff]
    %v241 = vld [vmem:[#allocation8 + $0x508] sm:$0xff]
    %v242 = vld [vmem:[#allocation8 + $0x510] sm:$0xff]
    %v243 = vld [vmem:[#allocation8 + $0x518] sm:$0xff]
    %v244 = vld [vmem:[#allocation8 + $0x520] sm:$0xff]
    %v245 = vld [vmem:[#allocation8 + $0x528] sm:$0xff]
    %v246 = vld [vmem:[#allocation8 + $0x530] sm:$0xff]
    %v247 = vld [vmem:[#allocation8 + $0x538] sm:$0xff]
    %v248 = vld [vmem:[#allocation8 + $0x540] sm:$0xff]
    %v249 = vld [vmem:[#allocation8 + $0x548] sm:$0xff]
    %v250 = vld [vmem:[#allocation8 + $0x550] sm:$0xff]
    %v251 = vld [vmem:[#allocation8 + $0x558] sm:$0xff]
    %v252 = vld [vmem:[#allocation8 + $0x560] sm:$0xff]
    %v253 = vld [vmem:[#allocation8 + $0x568] sm:$0xff]
    %v254 = vld [vmem:[#allocation8 + $0x570] sm:$0xff]
    %v255 = vld [vmem:[#allocation8 + $0x578] sm:$0xff]
    %v256 = vld [vmem:[#allocation8 + $0x580] sm:$0xff]
    %v257 = vld [vmem:[#allocation8 + $0x588] sm:$0xff]
    %v258 = vld [vmem:[#allocation8 + $0x590] sm:$0xff]
    %v259 = vld [vmem:[#allocation8 + $0x598] sm:$0xff]
    %v260 = vld [vmem:[#allocation8 + $0x5a0] sm:$0xff]
    %v261 = vld [vmem:[#allocation8 + $0x5a8] sm:$0xff]
    %v262 = vld [vmem:[#allocation8 + $0x5b0] sm:$0xff]
    %v263 = vld [vmem:[#allocation8 + $0x5b8] sm:$0xff]
    %v264 = vld [vmem:[#allocation8 + $0x5c0] sm:$0xff]
    %v265 = vld [vmem:[#allocation8 + $0x5c8] sm:$0xff]
    %v266 = vld [vmem:[#allocation8 + $0x5d0] sm:$0xff]
    %v267 = vld [vmem:[#allocation8 + $0x5d8] sm:$0xff]
    %v268 = vld [vmem:[#allocation8 + $0x5e0] sm:$0xff]
    %v269 = vld [vmem:[#allocation8 + $0x5e8] sm:$0xff]
    %v270 = vld [vmem:[#allocation8 + $0x5f0] sm:$0xff]
    %v271 = vld [vmem:[#allocation8 + $0x5f8] sm:$0xff]
    %v272 = vld [vmem:[#allocation8 + $0x600] sm:$0xff]
    %v273 = vld [vmem:[#allocation8 + $0x608] sm:$0xff]
    %v274 = vld [vmem:[#allocation8 + $0x610] sm:$0xff]
    %v275 = vld [vmem:[#allocation8 + $0x618] sm:$0xff]
    %v276 = vld [vmem:[#allocation8 + $0x620] sm:$0xff]
    %v277 = vld [vmem:[#allocation8 + $0x628] sm:$0xff]
    %v278 = vld [vmem:[#allocation8 + $0x630] sm:$0xff]
    %v279 = vld [vmem:[#allocation8 + $0x638] sm:$0xff]
    %v280 = vld [vmem:[#allocation8 + $0x640] sm:$0xff]
    %v281 = vld [vmem:[#allocation8 + $0x648] sm:$0xff]
    %v282 = vld [vmem:[#allocation8 + $0x650] sm:$0xff]
    %v283 = vld [vmem:[#allocation8 + $0x658] sm:$0xff]
    %v284 = vld [vmem:[#allocation8 + $0x660] sm:$0xff]
    %v285 = vld [vmem:[#allocation8 + $0x668] sm:$0xff]
    %v286 = vld [vmem:[#allocation8 + $0x670] sm:$0xff]
    %v287 = vld [vmem:[#allocation8 + $0x678] sm:$0xff]
    %v288 = vld [vmem:[#allocation8 + $0x680] sm:$0xff]
    %v289 = vld [vmem:[#allocation8 + $0x688] sm:$0xff]
    %v290 = vld [vmem:[#allocation8 + $0x690] sm:$0xff]
    %v291 = vld [vmem:[#allocation8 + $0x698] sm:$0xff]
    %v292 = vld [vmem:[#allocation8 + $0x6a0] sm:$0xff]
    %v293 = vld [vmem:[#allocation8 + $0x6a8] sm:$0xff]
    %v294 = vld [vmem:[#allocation8 + $0x6b0] sm:$0xff]
    %v295 = vld [vmem:[#allocation8 + $0x6b8] sm:$0xff]
    %v296 = vld [vmem:[#allocation8 + $0x6c0] sm:$0xff]
    %v297 = vld [vmem:[#allocation8 + $0x6c8] sm:$0xff]
    %v298 = vld [vmem:[#allocation8 + $0x6d0] sm:$0xff]
    %v299 = vld [vmem:[#allocation8 + $0x6d8] sm:$0xff]
    %v300 = vld [vmem:[#allocation8 + $0x6e0] sm:$0xff]
    %v301 = vld [vmem:[#allocation8 + $0x6e8] sm:$0xff]
    %v302 = vld [vmem:[#allocation8 + $0x6f0] sm:$0xff]
    %v303 = vld [vmem:[#allocation8 + $0x6f8] sm:$0xff]
    %v304 = vld [vmem:[#allocation8 + $0x700] sm:$0xff]
    %v305 = vld [vmem:[#allocation8 + $0x708] sm:$0xff]
    %v306 = vld [vmem:[#allocation8 + $0x710] sm:$0xff]
    %v307 = vld [vmem:[#allocation8 + $0x718] sm:$0xff]
    %v308 = vld [vmem:[#allocation8 + $0x720] sm:$0xff]
    %v309 = vld [vmem:[#allocation8 + $0x728] sm:$0xff]
    %v310 = vld [vmem:[#allocation8 + $0x730] sm:$0xff]
    %v311 = vld [vmem:[#allocation8 + $0x738] sm:$0xff]
    %v312 = vld [vmem:[#allocation8 + $0x740] sm:$0xff]
    %v313 = vld [vmem:[#allocation8 + $0x748] sm:$0xff]
    %v314 = vld [vmem:[#allocation8 + $0x750] sm:$0xff]
    %v315 = vld [vmem:[#allocation8 + $0x758] sm:$0xff]
    %v316 = vld [vmem:[#allocation8 + $0x760] sm:$0xff]
    %v317 = vld [vmem:[#allocation8 + $0x768] sm:$0xff]
    %v318 = vld [vmem:[#allocation8 + $0x770] sm:$0xff]
    %v319 = vld [vmem:[#allocation8 + $0x778] sm:$0xff]
    %v320 = vld [vmem:[#allocation8 + $0x780] sm:$0xff]
    %v321 = vld [vmem:[#allocation8 + $0x788] sm:$0xff]
    %v322 = vld [vmem:[#allocation8 + $0x790] sm:$0xff]
    %v323 = vld [vmem:[#allocation8 + $0x798] sm:$0xff]
    %v324 = vld [vmem:[#allocation8 + $0x7a0] sm:$0xff]
    %v325 = vld [vmem:[#allocation8 + $0x7a8] sm:$0xff]
    %v326 = vld [vmem:[#allocation8 + $0x7b0] sm:$0xff]
    %v327 = vld [vmem:[#allocation8 + $0x7b8] sm:$0xff]
    %v328 = vld [vmem:[#allocation8 + $0x7c0] sm:$0xff]
    %v329 = vld [vmem:[#allocation8 + $0x7c8] sm:$0xff]
    %v330 = vld [vmem:[#allocation8 + $0x7d0] sm:$0xff]
    %v331 = vld [vmem:[#allocation8 + $0x7d8] sm:$0xff]
    %v332 = vld [vmem:[#allocation8 + $0x7e0] sm:$0xff]
    %v333 = vld [vmem:[#allocation8 + $0x7e8] sm:$0xff]
    %v334 = vld [vmem:[#allocation8 + $0x7f0] sm:$0xff]
    %v335 = vld [vmem:[#allocation8 + $0x7f8] sm:$0xff]
    %v336 = vld [vmem:[%s4] sm:$0xf]
    %v337 = vld [vmem:[#allocation3] sm:$0x1]
    %v338 = vld [vmem:[#allocation6] sm:$0xff]
    %v339 = vld [vmem:[#allocation6 + $0x8] sm:$0xff]
    %v340 = vld [vmem:[#allocation6 + $0x10] sm:$0xff]
    %v341 = vld [vmem:[#allocation6 + $0x18] sm:$0xff]
    %v342 = vld [vmem:[#allocation6 + $0x20] sm:$0xff]
    %v343 = vld [vmem:[#allocation6 + $0x28] sm:$0xff]
    %v344 = vld [vmem:[#allocation6 + $0x30] sm:$0xff]
    %v345 = vld [vmem:[#allocation6 + $0x38] sm:$0xff]
    %v346 = vld [vmem:[#allocation6 + $0x40] sm:$0xff]
    %v347 = vld [vmem:[#allocation6 + $0x48] sm:$0xff]
    %v348 = vld [vmem:[#allocation6 + $0x50] sm:$0xff]
    %v349 = vld [vmem:[#allocation6 + $0x58] sm:$0xff]
    %v350 = vld [vmem:[#allocation6 + $0x60] sm:$0xff]
    %v351 = vld [vmem:[#allocation6 + $0x68] sm:$0xff]
    %v352 = vld [vmem:[#allocation6 + $0x70] sm:$0xff]
    %v353 = vld [vmem:[#allocation6 + $0x78] sm:$0xff]
    %v354 = vld [vmem:[%s3] sm:$0xf]
    %v356 = vlaneseq
    %v357 = vshrl.u32 %v356, 7
    %v358 = vsub.s32 0, %v357
    %v359 = vrot.slane %v354, %v358
    %v360 = vlaneseq
    %v361 = vshrl.u32 %v360, 7
    %v362 = vsub.s32 1, %v361
    %v363 = vrot.slane %v354, %v362
    %v364 = vlaneseq
    %v365 = vshrl.u32 %v364, 7
    %v366 = vsub.s32 2, %v365
    %v367 = vrot.slane %v354, %v366
    %v368 = vlaneseq
    %v369 = vshrl.u32 %v368, 7
    %v370 = vsub.s32 3, %v369
    %v371 = vrot.slane %v354, %v370
    %vm376 = vcmask 261120
    %v378 = vsel %vm376, %v337, 0
    %380 = vmatprep.subr.mxu0 %v339
    %381 = vmatpush1.msra.mxu0 %v338
    %382 = vmatprep.subr.mxu0 %v343
    %383 = vmatpush1.msra.mxu0 %v342
    %384 = vmatprep.subr.mxu0 %v347
    %385 = vmatpush1.msra.mxu0 %v346
    %386 = vmatprep.subr.mxu0 %v351
    %387 = vmatpush1.msra.mxu0 %v350
    %388 = vmatprep.subr.mxu0 0.0
    %389 = vmatpush1.msra.mxu0 0.0
    %390 = vmatprep.subr.mxu0 0.0
    %391 = vmatpush1.msra.mxu0 0.0
    %392 = vmatprep.subr.mxu0 0.0
    %393 = vmatpush1.msra.mxu0 0.0
    %394 = vmatprep.subr.mxu0 0.0
    %395 = vmatpush1.msra.mxu0 0.0
    %396 = vmatprep.subr.mxu0 0.0
    %397 = vmatpush1.msra.mxu0 0.0
    %398 = vmatprep.subr.mxu0 0.0
    %399 = vmatpush1.msra.mxu0 0.0
    %400 = vmatprep.subr.mxu0 0.0
    %401 = vmatpush1.msra.mxu0 0.0
    %402 = vmatprep.subr.mxu0 0.0
    %403 = vmatpush1.msra.mxu0 0.0
    %404 = vmatprep.subr.mxu0 0.0
    %405 = vmatpush1.msra.mxu0 0.0
    %406 = vmatprep.subr.mxu0 0.0
    %407 = vmatpush1.msra.mxu0 0.0
    %408 = vmatprep.subr.mxu0 0.0
    %409 = vmatpush1.msra.mxu0 0.0
    %410 = vmatprep.subr.mxu0 0.0
    %411 = vmatpush1.msra.mxu0 0.0
    %412 = vmatprep.subr.mxu0 0.0
    %413 = vmatpush1.msra.mxu0 0.0
    %414 = vmatprep.subr.mxu0 0.0
    %415 = vmatpush1.msra.mxu0 0.0
    %416 = vmatprep.subr.mxu0 0.0
    %417 = vmatpush1.msra.mxu0 0.0
    %418 = vmatprep.subr.mxu0 0.0
    %419 = vmatpush1.msra.mxu0 0.0
    %420 = vmatprep.subr.mxu0 0.0
    %421 = vmatpush1.msra.mxu0 0.0
    %422 = vmatprep.subr.mxu0 0.0
    %423 = vmatpush1.msra.mxu0 0.0
    %424 = vmatprep.subr.mxu0 0.0
    %425 = vmatpush1.msra.mxu0 0.0
    %426 = vmatprep.subr.mxu0 0.0
    %427 = vmatpush1.msra.mxu0 0.0
    %428 = vmatprep.subr.mxu0 0.0
    %429 = vmatpush1.msra.mxu0 0.0
    %430 = vmatprep.subr.mxu0 0.0
    %431 = vmatpush1.msra.mxu0 0.0
    %432 = vmatprep.subr.mxu0 0.0
    %433 = vmatpush1.msra.mxu0 0.0
    %434 = vmatprep.subr.mxu0 0.0
    %435 = vmatpush1.msra.mxu0 0.0
    %436 = vmatprep.subr.mxu0 0.0
    %437 = vmatpush1.msra.mxu0 0.0
    %438 = vmatprep.subr.mxu0 0.0
    %439 = vmatpush1.msra.mxu0 0.0
    %440 = vmatprep.subr.mxu0 0.0
    %441 = vmatpush1.msra.mxu0 0.0
    %442 = vmatprep.subr.mxu0 0.0
    %443 = vmatpush1.msra.mxu0 0.0
    %444 = vmatprep.mubr.f32.mxu0 0.0
    %445 = vmatmul.mubr.f32.gmra.mrb[0].mxu0 %v378
    %v446 = vpop.f32.mrb[0].mxu0
    %v447 = vadd.f32 %v359, %v446
    %v448 = vpop.f32.mrb[0].mxu0
    %v449 = vadd.f32 %v363, %v448
    %450 = vdwg.mxu0
    %451 = vmatprep.subr.mxu0 %v341
    %452 = vmatpush1.msra.mxu0 %v340
    %453 = vmatprep.subr.mxu0 %v345
    %454 = vmatpush1.msra.mxu0 %v344
    %455 = vmatprep.subr.mxu0 %v349
    %456 = vmatpush1.msra.mxu0 %v348
    %457 = vmatprep.subr.mxu0 %v353
    %458 = vmatpush1.msra.mxu0 %v352
    %459 = vmatprep.subr.mxu0 0.0
    %460 = vmatpush1.msra.mxu0 0.0
    %461 = vmatprep.subr.mxu0 0.0
    %462 = vmatpush1.msra.mxu0 0.0
    %463 = vmatprep.subr.mxu0 0.0
    %464 = vmatpush1.msra.mxu0 0.0
    %465 = vmatprep.subr.mxu0 0.0
    %466 = vmatpush1.msra.mxu0 0.0
    %467 = vmatprep.subr.mxu0 0.0
    %468 = vmatpush1.msra.mxu0 0.0
    %469 = vmatprep.subr.mxu0 0.0
    %470 = vmatpush1.msra.mxu0 0.0
    %471 = vmatprep.subr.mxu0 0.0
    %472 = vmatpush1.msra.mxu0 0.0
    %473 = vmatprep.subr.mxu0 0.0
    %474 = vmatpush1.msra.mxu0 0.0
    %475 = vmatprep.subr.mxu0 0.0
    %476 = vmatpush1.msra.mxu0 0.0
    %477 = vmatprep.subr.mxu0 0.0
    %478 = vmatpush1.msra.mxu0 0.0
    %479 = vmatprep.subr.mxu0 0.0
    %480 = vmatpush1.msra.mxu0 0.0
    %481 = vmatprep.subr.mxu0 0.0
    %482 = vmatpush1.msra.mxu0 0.0
    %483 = vmatprep.subr.mxu0 0.0
    %484 = vmatpush1.msra.mxu0 0.0
    %485 = vmatprep.subr.mxu0 0.0
    %486 = vmatpush1.msra.mxu0 0.0
    %487 = vmatprep.subr.mxu0 0.0
    %488 = vmatpush1.msra.mxu0 0.0
    %489 = vmatprep.subr.mxu0 0.0
    %490 = vmatpush1.msra.mxu0 0.0
    %491 = vmatprep.subr.mxu0 0.0
    %492 = vmatpush1.msra.mxu0 0.0
    %493 = vmatprep.subr.mxu0 0.0
    %494 = vmatpush1.msra.mxu0 0.0
    %495 = vmatprep.subr.mxu0 0.0
    %496 = vmatpush1.msra.mxu0 0.0
    %497 = vmatprep.subr.mxu0 0.0
    %498 = vmatpush1.msra.mxu0 0.0
    %499 = vmatprep.subr.mxu0 0.0
    %500 = vmatpush1.msra.mxu0 0.0
    %501 = vmatprep.subr.mxu0 0.0
    %502 = vmatpush1.msra.mxu0 0.0
    %503 = vmatprep.subr.mxu0 0.0
    %504 = vmatpush1.msra.mxu0 0.0
    %505 = vmatprep.subr.mxu0 0.0
    %506 = vmatpush1.msra.mxu0 0.0
    %507 = vmatprep.subr.mxu0 0.0
    %508 = vmatpush1.msra.mxu0 0.0
    %509 = vmatprep.subr.mxu0 0.0
    %510 = vmatpush1.msra.mxu0 0.0
    %511 = vmatprep.subr.mxu0 0.0
    %512 = vmatpush1.msra.mxu0 0.0
    %513 = vmatprep.subr.mxu0 0.0
    %514 = vmatpush1.msra.mxu0 0.0
    %515 = vmatprep.mubr.f32.mxu0 0.0
    %516 = vmatmul.mubr.f32.gmra.mrb[0].mxu0 %v378
    %v517 = vpop.f32.mrb[0].mxu0
    %v518 = vadd.f32 %v367, %v517
    %v519 = vpop.f32.mrb[0].mxu0
    %v520 = vadd.f32 %v371, %v519
    %521 = vdwg.mxu0
    %v522 = vxor.u32 %v447, 2147483648
    %v523 = vmul.f32 %v522, 1.442695
    %v524 = vpow.pop %v523
    %v525 = vadd.f32 %v524, 1.0
    %v526 = vrcp.pop %v525
    %v527 = vmul.f32 1.0, %v526
    %v528 = vxor.u32 %v449, 2147483648
    %v529 = vmul.f32 %v528, 1.442695
    %v530 = vpow.pop %v529
    %v531 = vadd.f32 %v530, 1.0
    %v532 = vrcp.pop %v531
    %v533 = vmul.f32 1.0, %v532
    %v534 = vtanh.pop %v518
    %v535 = vxor.u32 %v520, 2147483648
    %v536 = vmul.f32 %v535, 1.442695
    %v537 = vpow.pop %v536
    %v538 = vadd.f32 %v537, 1.0
    %v539 = vrcp.pop %v538
    %v540 = vmul.f32 1.0, %v539
    %v541 = vmul.f32 %v533, 0.0
    %v542 = vmul.f32 %v527, %v534
    %v543 = vadd.f32 %v541, %v542
    %v544 = vtanh.pop %v543
    %v545 = vmul.f32 %v540, %v544
    %546 = vmatprep.subr.mxu0 %v81
    %547 = vmatpush1.msra.mxu0 %v80
    %548 = vmatprep.subr.mxu0 %v89
    %549 = vmatpush1.msra.mxu0 %v88
    %550 = vmatprep.subr.mxu0 %v97
    %551 = vmatpush1.msra.mxu0 %v96
    %552 = vmatprep.subr.mxu0 %v105
    %553 = vmatpush1.msra.mxu0 %v104
    %554 = vmatprep.subr.mxu0 %v113
    %555 = vmatpush1.msra.mxu0 %v112
    %556 = vmatprep.subr.mxu0 %v121
    %557 = vmatpush1.msra.mxu0 %v120
    %558 = vmatprep.subr.mxu0 %v129
    %559 = vmatpush1.msra.mxu0 %v128
    %560 = vmatprep.subr.mxu0 %v137
    %561 = vmatpush1.msra.mxu0 %v136
    %562 = vmatprep.subr.mxu0 %v145
    %563 = vmatpush1.msra.mxu0 %v144
    %564 = vmatprep.subr.mxu0 %v153
    %565 = vmatpush1.msra.mxu0 %v152
    %566 = vmatprep.subr.mxu0 %v161
    %567 = vmatpush1.msra.mxu0 %v160
    %568 = vmatprep.subr.mxu0 %v169
    %569 = vmatpush1.msra.mxu0 %v168
    %570 = vmatprep.subr.mxu0 %v177
    %571 = vmatpush1.msra.mxu0 %v176
    %572 = vmatprep.subr.mxu0 %v185
    %573 = vmatpush1.msra.mxu0 %v184
    %574 = vmatprep.subr.mxu0 %v193
    %575 = vmatpush1.msra.mxu0 %v192
    %576 = vmatprep.subr.mxu0 %v201
    %577 = vmatpush1.msra.mxu0 %v200
    %578 = vmatprep.subr.mxu0 %v209
    %579 = vmatpush1.msra.mxu0 %v208
    %580 = vmatprep.subr.mxu0 %v217
    %581 = vmatpush1.msra.mxu0 %v216
    %582 = vmatprep.subr.mxu0 %v225
    %583 = vmatpush1.msra.mxu0 %v224
    %584 = vmatprep.subr.mxu0 %v233
    %585 = vmatpush1.msra.mxu0 %v232
    %586 = vmatprep.subr.mxu0 %v241
    %587 = vmatpush1.msra.mxu0 %v240
    %588 = vmatprep.subr.mxu0 %v249
    %589 = vmatpush1.msra.mxu0 %v248
    %590 = vmatprep.subr.mxu0 %v257
    %591 = vmatpush1.msra.mxu0 %v256
    %592 = vmatprep.subr.mxu0 %v265
    %593 = vmatpush1.msra.mxu0 %v264
    %594 = vmatprep.subr.mxu0 %v273
    %595 = vmatpush1.msra.mxu0 %v272
    %596 = vmatprep.subr.mxu0 %v281
    %597 = vmatpush1.msra.mxu0 %v280
    %598 = vmatprep.subr.mxu0 %v289
    %599 = vmatpush1.msra.mxu0 %v288
    %600 = vmatprep.subr.mxu0 %v297
    %601 = vmatpush1.msra.mxu0 %v296
    %602 = vmatprep.subr.mxu0 %v305
    %603 = vmatpush1.msra.mxu0 %v304
    %604 = vmatprep.subr.mxu0 %v313
    %605 = vmatpush1.msra.mxu0 %v312
    %606 = vmatprep.subr.mxu0 %v321
    %607 = vmatpush1.msra.mxu0 %v320
    %608 = vmatprep.subr.mxu0 %v329
    %609 = vmatpush1.msra.mxu0 %v328
    %610 = vmatprep.mubr.f32.mxu0 0.0
    %611 = vmatmul.mubr.f32.gmra.mrb[0].mxu0 %v545
    %v612 = vpop.f32.mrb[0].mxu0
    %v613 = vadd.f32 0.0, %v612
    %v614 = vpop.f32.mrb[0].mxu0
    %v615 = vadd.f32 0.0, %v614
    %616 = vdwg.mxu0
    %617 = vmatprep.subr.mxu0 %v83
    %618 = vmatpush1.msra.mxu0 %v82
    %619 = vmatprep.subr.mxu0 %v91
    %620 = vmatpush1.msra.mxu0 %v90
    %621 = vmatprep.subr.mxu0 %v99
    %622 = vmatpush1.msra.mxu0 %v98
    %623 = vmatprep.subr.mxu0 %v107
    %624 = vmatpush1.msra.mxu0 %v106
    %625 = vmatprep.subr.mxu0 %v115
    %626 = vmatpush1.msra.mxu0 %v114
    %627 = vmatprep.subr.mxu0 %v123
    %628 = vmatpush1.msra.mxu0 %v122
    %629 = vmatprep.subr.mxu0 %v131
    %630 = vmatpush1.msra.mxu0 %v130
    %631 = vmatprep.subr.mxu0 %v139
    %632 = vmatpush1.msra.mxu0 %v138
    %633 = vmatprep.subr.mxu0 %v147
    %634 = vmatpush1.msra.mxu0 %v146
    %635 = vmatprep.subr.mxu0 %v155
    %636 = vmatpush1.msra.mxu0 %v154
    %637 = vmatprep.subr.mxu0 %v163
    %638 = vmatpush1.msra.mxu0 %v162
    %639 = vmatprep.subr.mxu0 %v171
    %640 = vmatpush1.msra.mxu0 %v170
    %641 = vmatprep.subr.mxu0 %v179
    %642 = vmatpush1.msra.mxu0 %v178
    %643 = vmatprep.subr.mxu0 %v187
    %644 = vmatpush1.msra.mxu0 %v186
    %645 = vmatprep.subr.mxu0 %v195
    %646 = vmatpush1.msra.mxu0 %v194
    %647 = vmatprep.subr.mxu0 %v203
    %648 = vmatpush1.msra.mxu0 %v202
    %649 = vmatprep.subr.mxu0 %v211
    %650 = vmatpush1.msra.mxu0 %v210
    %651 = vmatprep.subr.mxu0 %v219
    %652 = vmatpush1.msra.mxu0 %v218
    %653 = vmatprep.subr.mxu0 %v227
    %654 = vmatpush1.msra.mxu0 %v226
    %655 = vmatprep.subr.mxu0 %v235
    %656 = vmatpush1.msra.mxu0 %v234
    %657 = vmatprep.subr.mxu0 %v243
    %658 = vmatpush1.msra.mxu0 %v242
    %659 = vmatprep.subr.mxu0 %v251
    %660 = vmatpush1.msra.mxu0 %v250
    %661 = vmatprep.subr.mxu0 %v259
    %662 = vmatpush1.msra.mxu0 %v258
    %663 = vmatprep.subr.mxu0 %v267
    %664 = vmatpush1.msra.mxu0 %v266
    %665 = vmatprep.subr.mxu0 %v275
    %666 = vmatpush1.msra.mxu0 %v274
    %667 = vmatprep.subr.mxu0 %v283
    %668 = vmatpush1.msra.mxu0 %v282
    %669 = vmatprep.subr.mxu0 %v291
    %670 = vmatpush1.msra.mxu0 %v290
    %671 = vmatprep.subr.mxu0 %v299
    %672 = vmatpush1.msra.mxu0 %v298
    %673 = vmatprep.subr.mxu0 %v307
    %674 = vmatpush1.msra.mxu0 %v306
    %675 = vmatprep.subr.mxu0 %v315
    %676 = vmatpush1.msra.mxu0 %v314
    %677 = vmatprep.subr.mxu0 %v323
    %678 = vmatpush1.msra.mxu0 %v322
    %679 = vmatprep.subr.mxu0 %v331
    %680 = vmatpush1.msra.mxu0 %v330
    %681 = vmatprep.mubr.f32.mxu0 0.0
    %682 = vmatmul.mubr.f32.gmra.mrb[0].mxu0 %v545
    %v683 = vpop.f32.mrb[0].mxu0
    %v684 = vadd.f32 0.0, %v683
    %v685 = vpop.f32.mrb[0].mxu0
    %v686 = vadd.f32 0.0, %v685
    %687 = vdwg.mxu0
    %688 = vmatprep.subr.mxu0 %v85
    %689 = vmatpush1.msra.mxu0 %v84
    %690 = vmatprep.subr.mxu0 %v93
    %691 = vmatpush1.msra.mxu0 %v92
    %692 = vmatprep.subr.mxu0 %v101
    %693 = vmatpush1.msra.mxu0 %v100
    %694 = vmatprep.subr.mxu0 %v109
    %695 = vmatpush1.msra.mxu0 %v108
    %696 = vmatprep.subr.mxu0 %v117
    %697 = vmatpush1.msra.mxu0 %v116
    %698 = vmatprep.subr.mxu0 %v125
    %699 = vmatpush1.msra.mxu0 %v124
    %700 = vmatprep.subr.mxu0 %v133
    %701 = vmatpush1.msra.mxu0 %v132
    %702 = vmatprep.subr.mxu0 %v141
    %703 = vmatpush1.msra.mxu0 %v140
    %704 = vmatprep.subr.mxu0 %v149
    %705 = vmatpush1.msra.mxu0 %v148
    %706 = vmatprep.subr.mxu0 %v157
    %707 = vmatpush1.msra.mxu0 %v156
    %708 = vmatprep.subr.mxu0 %v165
    %709 = vmatpush1.msra.mxu0 %v164
    %710 = vmatprep.subr.mxu0 %v173
    %711 = vmatpush1.msra.mxu0 %v172
    %712 = vmatprep.subr.mxu0 %v181
    %713 = vmatpush1.msra.mxu0 %v180
    %714 = vmatprep.subr.mxu0 %v189
    %715 = vmatpush1.msra.mxu0 %v188
    %716 = vmatprep.subr.mxu0 %v197
    %717 = vmatpush1.msra.mxu0 %v196
    %718 = vmatprep.subr.mxu0 %v205
    %719 = vmatpush1.msra.mxu0 %v204
    %720 = vmatprep.subr.mxu0 %v213
    %721 = vmatpush1.msra.mxu0 %v212
    %722 = vmatprep.subr.mxu0 %v221
    %723 = vmatpush1.msra.mxu0 %v220
    %724 = vmatprep.subr.mxu0 %v229
    %725 = vmatpush1.msra.mxu0 %v228
    %726 = vmatprep.subr.mxu0 %v237
    %727 = vmatpush1.msra.mxu0 %v236
    %728 = vmatprep.subr.mxu0 %v245
    %729 = vmatpush1.msra.mxu0 %v244
    %730 = vmatprep.subr.mxu0 %v253
    %731 = vmatpush1.msra.mxu0 %v252
    %732 = vmatprep.subr.mxu0 %v261
    %733 = vmatpush1.msra.mxu0 %v260
    %734 = vmatprep.subr.mxu0 %v269
    %735 = vmatpush1.msra.mxu0 %v268
    %736 = vmatprep.subr.mxu0 %v277
    %737 = vmatpush1.msra.mxu0 %v276
    %738 = vmatprep.subr.mxu0 %v285
    %739 = vmatpush1.msra.mxu0 %v284
    %740 = vmatprep.subr.mxu0 %v293
    %741 = vmatpush1.msra.mxu0 %v292
    %742 = vmatprep.subr.mxu0 %v301
    %743 = vmatpush1.msra.mxu0 %v300
    %744 = vmatprep.subr.mxu0 %v309
    %745 = vmatpush1.msra.mxu0 %v308
    %746 = vmatprep.subr.mxu0 %v317
    %747 = vmatpush1.msra.mxu0 %v316
    %748 = vmatprep.subr.mxu0 %v325
    %749 = vmatpush1.msra.mxu0 %v324
    %750 = vmatprep.subr.mxu0 %v333
    %751 = vmatpush1.msra.mxu0 %v332
    %752 = vmatprep.mubr.f32.mxu0 0.0
    %753 = vmatmul.mubr.f32.gmra.mrb[0].mxu0 %v545
    %v754 = vpop.f32.mrb[0].mxu0
    %v755 = vadd.f32 0.0, %v754
    %v756 = vpop.f32.mrb[0].mxu0
    %v757 = vadd.f32 0.0, %v756
    %758 = vdwg.mxu0
    %759 = vmatprep.subr.mxu0 %v87
    %760 = vmatpush1.msra.mxu0 %v86
    %761 = vmatprep.subr.mxu0 %v95
    %762 = vmatpush1.msra.mxu0 %v94
    %763 = vmatprep.subr.mxu0 %v103
    %764 = vmatpush1.msra.mxu0 %v102
    %765 = vmatprep.subr.mxu0 %v111
    %766 = vmatpush1.msra.mxu0 %v110
    %767 = vmatprep.subr.mxu0 %v119
    %768 = vmatpush1.msra.mxu0 %v118
    %769 = vmatprep.subr.mxu0 %v127
    %770 = vmatpush1.msra.mxu0 %v126
    %771 = vmatprep.subr.mxu0 %v135
    %772 = vmatpush1.msra.mxu0 %v134
    %773 = vmatprep.subr.mxu0 %v143
    %774 = vmatpush1.msra.mxu0 %v142
    %775 = vmatprep.subr.mxu0 %v151
    %776 = vmatpush1.msra.mxu0 %v150
    %777 = vmatprep.subr.mxu0 %v159
    %778 = vmatpush1.msra.mxu0 %v158
    %779 = vmatprep.subr.mxu0 %v167
    %780 = vmatpush1.msra.mxu0 %v166
    %781 = vmatprep.subr.mxu0 %v175
    %782 = vmatpush1.msra.mxu0 %v174
    %783 = vmatprep.subr.mxu0 %v183
    %784 = vmatpush1.msra.mxu0 %v182
    %785 = vmatprep.subr.mxu0 %v191
    %786 = vmatpush1.msra.mxu0 %v190
    %787 = vmatprep.subr.mxu0 %v199
    %788 = vmatpush1.msra.mxu0 %v198
    %789 = vmatprep.subr.mxu0 %v207
    %790 = vmatpush1.msra.mxu0 %v206
    %791 = vmatprep.subr.mxu0 %v215
    %792 = vmatpush1.msra.mxu0 %v214
    %793 = vmatprep.subr.mxu0 %v223
    %794 = vmatpush1.msra.mxu0 %v222
    %795 = vmatprep.subr.mxu0 %v231
    %796 = vmatpush1.msra.mxu0 %v230
    %797 = vmatprep.subr.mxu0 %v239
    %798 = vmatpush1.msra.mxu0 %v238
    %799 = vmatprep.subr.mxu0 %v247
    %800 = vmatpush1.msra.mxu0 %v246
    %801 = vmatprep.subr.mxu0 %v255
    %802 = vmatpush1.msra.mxu0 %v254
    %803 = vmatprep.subr.mxu0 %v263
    %804 = vmatpush1.msra.mxu0 %v262
    %805 = vmatprep.subr.mxu0 %v271
    %806 = vmatpush1.msra.mxu0 %v270
    %807 = vmatprep.subr.mxu0 %v279
    %808 = vmatpush1.msra.mxu0 %v278
    %809 = vmatprep.subr.mxu0 %v287
    %810 = vmatpush1.msra.mxu0 %v286
    %811 = vmatprep.subr.mxu0 %v295
    %812 = vmatpush1.msra.mxu0 %v294
    %813 = vmatprep.subr.mxu0 %v303
    %814 = vmatpush1.msra.mxu0 %v302
    %815 = vmatprep.subr.mxu0 %v311
    %816 = vmatpush1.msra.mxu0 %v310
    %817 = vmatprep.subr.mxu0 %v319
    %818 = vmatpush1.msra.mxu0 %v318
    %819 = vmatprep.subr.mxu0 %v327
    %820 = vmatpush1.msra.mxu0 %v326
    %821 = vmatprep.subr.mxu0 %v335
    %822 = vmatpush1.msra.mxu0 %v334
    %823 = vmatprep.mubr.f32.mxu0 0.0
    %824 = vmatmul.mubr.f32.gmra.mrb[0].mxu0 %v545
    %v825 = vpop.f32.mrb[0].mxu0
    %v826 = vadd.f32 0.0, %v825
    %v827 = vpop.f32.mrb[0].mxu0
    %v828 = vadd.f32 0.0, %v827
    %829 = vdwg.mxu0
    %v831 = vlaneseq
    %v832 = vshrl.u32 %v831, 7
    %v833 = vsub.s32 0, %v832
    %v834 = vrot.slane %v336, %v833
    %v835 = vlaneseq
    %v836 = vshrl.u32 %v835, 7
    %v837 = vsub.s32 1, %v836
    %v838 = vrot.slane %v336, %v837
    %v839 = vlaneseq
    %v840 = vshrl.u32 %v839, 7
    %v841 = vsub.s32 2, %v840
    %v842 = vrot.slane %v336, %v841
    %v843 = vlaneseq
    %v844 = vshrl.u32 %v843, 7
    %v845 = vsub.s32 3, %v844
    %v846 = vrot.slane %v336, %v845
    %v851 = vadd.f32 %v755, %v834
    %v852 = vadd.f32 %v757, %v838
    %v853 = vadd.f32 %v826, %v842
    %v854 = vadd.f32 %v828, %v846
    %v855 = vxor.u32 %v851, 2147483648
    %v856 = vmul.f32 %v855, 1.442695
    %v857 = vpow.pop %v856
    %v858 = vadd.f32 %v857, 1.0
    %v859 = vrcp.pop %v858
    %v860 = vmul.f32 1.0, %v859
    %v861 = vxor.u32 %v852, 2147483648
    %v862 = vmul.f32 %v861, 1.442695
    %v863 = vpow.pop %v862
    %v864 = vadd.f32 %v863, 1.0
    %v865 = vrcp.pop %v864
    %v866 = vmul.f32 1.0, %v865
    %v867 = vtanh.pop %v853
    %v868 = vxor.u32 %v854, 2147483648
    %v869 = vmul.f32 %v868, 1.442695
    %v870 = vpow.pop %v869
    %v871 = vadd.f32 %v870, 1.0
    %v872 = vrcp.pop %v871
    %v873 = vmul.f32 1.0, %v872
    %v874 = vmul.f32 %v866, 0.0
    %v875 = vmul.f32 %v860, %v867
    %v876 = vadd.f32 %v874, %v875
    %v877 = vtanh.pop %v876
    %v878 = vmul.f32 %v873, %v877
    %879 = vst [vmem:[#allocation2] sm:$0x1] %v878
    %v880 = vadd.f32 %v613, %v447
    %v881 = vadd.f32 %v615, %v449
    %v882 = vadd.f32 %v684, %v518
    %v883 = vadd.f32 %v686, %v520
    %v884 = vxor.u32 %v880, 2147483648
    %v885 = vmul.f32 %v884, 1.442695
    %v886 = vpow.pop %v885
    %v887 = vadd.f32 %v886, 1.0
    %v888 = vrcp.pop %v887
    %v889 = vmul.f32 1.0, %v888
    %v890 = vxor.u32 %v881, 2147483648
    %v891 = vmul.f32 %v890, 1.442695
    %v892 = vpow.pop %v891
    %v893 = vadd.f32 %v892, 1.0
    %v894 = vrcp.pop %v893
    %v895 = vmul.f32 1.0, %v894
    %v896 = vtanh.pop %v882
    %v897 = vxor.u32 %v883, 2147483648
    %v898 = vmul.f32 %v897, 1.442695
    %v899 = vpow.pop %v898
    %v900 = vadd.f32 %v899, 1.0
    %v901 = vrcp.pop %v900
    %v902 = vmul.f32 1.0, %v901
    %v903 = vmul.f32 %v895, %v543
    %v904 = vmul.f32 %v889, %v896
    %v905 = vadd.f32 %v903, %v904
    %v906 = vtanh.pop %v905
    %v907 = vmul.f32 %v902, %v906
    %908 = vmatprep.subr.mxu0 %v81
    %909 = vmatpush1.msra.mxu0 %v80
    %910 = vmatprep.subr.mxu0 %v89
    %911 = vmatpush1.msra.mxu0 %v88
    %912 = vmatprep.subr.mxu0 %v97
    %913 = vmatpush1.msra.mxu0 %v96
    %914 = vmatprep.subr.mxu0 %v105
    %915 = vmatpush1.msra.mxu0 %v104
    %916 = vmatprep.subr.mxu0 %v113
    %917 = vmatpush1.msra.mxu0 %v112
    %918 = vmatprep.subr.mxu0 %v121
    %919 = vmatpush1.msra.mxu0 %v120
    %920 = vmatprep.subr.mxu0 %v129
    %921 = vmatpush1.msra.mxu0 %v128
    %922 = vmatprep.subr.mxu0 %v137
    %923 = vmatpush1.msra.mxu0 %v136
    %924 = vmatprep.subr.mxu0 %v145
    %925 = vmatpush1.msra.mxu0 %v144
    %926 = vmatprep.subr.mxu0 %v153
    %927 = vmatpush1.msra.mxu0 %v152
    %928 = vmatprep.subr.mxu0 %v161
    %929 = vmatpush1.msra.mxu0 %v160
    %930 = vmatprep.subr.mxu0 %v169
    %931 = vmatpush1.msra.mxu0 %v168
    %932 = vmatprep.subr.mxu0 %v177
    %933 = vmatpush1.msra.mxu0 %v176
    %934 = vmatprep.subr.mxu0 %v185
    %935 = vmatpush1.msra.mxu0 %v184
    %936 = vmatprep.subr.mxu0 %v193
    %937 = vmatpush1.msra.mxu0 %v192
    %938 = vmatprep.subr.mxu0 %v201
    %939 = vmatpush1.msra.mxu0 %v200
    %940 = vmatprep.subr.mxu0 %v209
    %941 = vmatpush1.msra.mxu0 %v208
    %942 = vmatprep.subr.mxu0 %v217
    %943 = vmatpush1.msra.mxu0 %v216
    %944 = vmatprep.subr.mxu0 %v225
    %945 = vmatpush1.msra.mxu0 %v224
    %946 = vmatprep.subr.mxu0 %v233
    %947 = vmatpush1.msra.mxu0 %v232
    %948 = vmatprep.subr.mxu0 %v241
    %949 = vmatpush1.msra.mxu0 %v240
    %950 = vmatprep.subr.mxu0 %v249
    %951 = vmatpush1.msra.mxu0 %v248
    %952 = vmatprep.subr.mxu0 %v257
    %953 = vmatpush1.msra.mxu0 %v256
    %954 = vmatprep.subr.mxu0 %v265
    %955 = vmatpush1.msra.mxu0 %v264
    %956 = vmatprep.subr.mxu0 %v273
    %957 = vmatpush1.msra.mxu0 %v272
    %958 = vmatprep.subr.mxu0 %v281
    %959 = vmatpush1.msra.mxu0 %v280
    %960 = vmatprep.subr.mxu0 %v289
    %961 = vmatpush1.msra.mxu0 %v288
    %962 = vmatprep.subr.mxu0 %v297
    %963 = vmatpush1.msra.mxu0 %v296
    %964 = vmatprep.subr.mxu0 %v305
    %965 = vmatpush1.msra.mxu0 %v304
    %966 = vmatprep.subr.mxu0 %v313
    %967 = vmatpush1.msra.mxu0 %v312
    %968 = vmatprep.subr.mxu0 %v321
    %969 = vmatpush1.msra.mxu0 %v320
    %970 = vmatprep.subr.mxu0 %v329
    %971 = vmatpush1.msra.mxu0 %v328
    %972 = vmatprep.mubr.f32.mxu0 %v878
    %973 = vmatmul.mubr.f32.gmra.mrb[0].mxu0 %v907
    %v974 = vpop.f32.mrb[0].mxu0
    %v975 = vadd.f32 0.0, %v974
    %v976 = vpop.f32.mrb[0].mxu0
    %v977 = vadd.f32 0.0, %v976
    %978 = vdwg.mxu0
    %979 = vmatprep.subr.mxu0 %v83
    %980 = vmatpush1.msra.mxu0 %v82
    %981 = vmatprep.subr.mxu0 %v91
    %982 = vmatpush1.msra.mxu0 %v90
    %983 = vmatprep.subr.mxu0 %v99
    %984 = vmatpush1.msra.mxu0 %v98
    %985 = vmatprep.subr.mxu0 %v107
    %986 = vmatpush1.msra.mxu0 %v106
    %987 = vmatprep.subr.mxu0 %v115
    %988 = vmatpush1.msra.mxu0 %v114
    %989 = vmatprep.subr.mxu0 %v123
    %990 = vmatpush1.msra.mxu0 %v122
    %991 = vmatprep.subr.mxu0 %v131
    %992 = vmatpush1.msra.mxu0 %v130
    %993 = vmatprep.subr.mxu0 %v139
    %994 = vmatpush1.msra.mxu0 %v138
    %995 = vmatprep.subr.mxu0 %v147
    %996 = vmatpush1.msra.mxu0 %v146
    %997 = vmatprep.subr.mxu0 %v155
    %998 = vmatpush1.msra.mxu0 %v154
    %999 = vmatprep.subr.mxu0 %v163
    %1000 = vmatpush1.msra.mxu0 %v162
    %1001 = vmatprep.subr.mxu0 %v171
    %1002 = vmatpush1.msra.mxu0 %v170
    %1003 = vmatprep.subr.mxu0 %v179
    %1004 = vmatpush1.msra.mxu0 %v178
    %1005 = vmatprep.subr.mxu0 %v187
    %1006 = vmatpush1.msra.mxu0 %v186
    %1007 = vmatprep.subr.mxu0 %v195
    %1008 = vmatpush1.msra.mxu0 %v194
    %1009 = vmatprep.subr.mxu0 %v203
    %1010 = vmatpush1.msra.mxu0 %v202
    %1011 = vmatprep.subr.mxu0 %v211
    %1012 = vmatpush1.msra.mxu0 %v210
    %1013 = vmatprep.subr.mxu0 %v219
    %1014 = vmatpush1.msra.mxu0 %v218
    %1015 = vmatprep.subr.mxu0 %v227
    %1016 = vmatpush1.msra.mxu0 %v226
    %1017 = vmatprep.subr.mxu0 %v235
    %1018 = vmatpush1.msra.mxu0 %v234
    %1019 = vmatprep.subr.mxu0 %v243
    %1020 = vmatpush1.msra.mxu0 %v242
    %1021 = vmatprep.subr.mxu0 %v251
    %1022 = vmatpush1.msra.mxu0 %v250
    %1023 = vmatprep.subr.mxu0 %v259
    %1024 = vmatpush1.msra.mxu0 %v258
    %1025 = vmatprep.subr.mxu0 %v267
    %1026 = vmatpush1.msra.mxu0 %v266
    %1027 = vmatprep.subr.mxu0 %v275
    %1028 = vmatpush1.msra.mxu0 %v274
    %1029 = vmatprep.subr.mxu0 %v283
    %1030 = vmatpush1.msra.mxu0 %v282
    %1031 = vmatprep.subr.mxu0 %v291
    %1032 = vmatpush1.msra.mxu0 %v290
    %1033 = vmatprep.subr.mxu0 %v299
    %1034 = vmatpush1.msra.mxu0 %v298
    %1035 = vmatprep.subr.mxu0 %v307
    %1036 = vmatpush1.msra.mxu0 %v306
    %1037 = vmatprep.subr.mxu0 %v315
    %1038 = vmatpush1.msra.mxu0 %v314
    %1039 = vmatprep.subr.mxu0 %v323
    %1040 = vmatpush1.msra.mxu0 %v322
    %1041 = vmatprep.subr.mxu0 %v331
    %1042 = vmatpush1.msra.mxu0 %v330
    %1043 = vmatprep.mubr.f32.mxu0 %v878
    %1044 = vmatmul.mubr.f32.gmra.mrb[0].mxu0 %v907
    %v1045 = vpop.f32.mrb[0].mxu0
    %v1046 = vadd.f32 0.0, %v1045
    %v1047 = vpop.f32.mrb[0].mxu0
    %v1048 = vadd.f32 0.0, %v1047
    %1049 = vdwg.mxu0
    %1050 = vmatprep.subr.mxu0 %v85
    %1051 = vmatpush1.msra.mxu0 %v84
    %1052 = vmatprep.subr.mxu0 %v93
    %1053 = vmatpush1.msra.mxu0 %v92
    %1054 = vmatprep.subr.mxu0 %v101
    %1055 = vmatpush1.msra.mxu0 %v100
    %1056 = vmatprep.subr.mxu0 %v109
    %1057 = vmatpush1.msra.mxu0 %v108
    %1058 = vmatprep.subr.mxu0 %v117
    %1059 = vmatpush1.msra.mxu0 %v116
    %1060 = vmatprep.subr.mxu0 %v125
    %1061 = vmatpush1.msra.mxu0 %v124
    %1062 = vmatprep.subr.mxu0 %v133
    %1063 = vmatpush1.msra.mxu0 %v132
    %1064 = vmatprep.subr.mxu0 %v141
    %1065 = vmatpush1.msra.mxu0 %v140
    %1066 = vmatprep.subr.mxu0 %v149
    %1067 = vmatpush1.msra.mxu0 %v148
    %1068 = vmatprep.subr.mxu0 %v157
    %1069 = vmatpush1.msra.mxu0 %v156
    %1070 = vmatprep.subr.mxu0 %v165
    %1071 = vmatpush1.msra.mxu0 %v164
    %1072 = vmatprep.subr.mxu0 %v173
    %1073 = vmatpush1.msra.mxu0 %v172
    %1074 = vmatprep.subr.mxu0 %v181
    %1075 = vmatpush1.msra.mxu0 %v180
    %1076 = vmatprep.subr.mxu0 %v189
    %1077 = vmatpush1.msra.mxu0 %v188
    %1078 = vmatprep.subr.mxu0 %v197
    %1079 = vmatpush1.msra.mxu0 %v196
    %1080 = vmatprep.subr.mxu0 %v205
    %1081 = vmatpush1.msra.mxu0 %v204
    %1082 = vmatprep.subr.mxu0 %v213
    %1083 = vmatpush1.msra.mxu0 %v212
    %1084 = vmatprep.subr.mxu0 %v221
    %1085 = vmatpush1.msra.mxu0 %v220
    %1086 = vmatprep.subr.mxu0 %v229
    %1087 = vmatpush1.msra.mxu0 %v228
    %1088 = vmatprep.subr.mxu0 %v237
    %1089 = vmatpush1.msra.mxu0 %v236
    %1090 = vmatprep.subr.mxu0 %v245
    %1091 = vmatpush1.msra.mxu0 %v244
    %1092 = vmatprep.subr.mxu0 %v253
    %1093 = vmatpush1.msra.mxu0 %v252
    %1094 = vmatprep.subr.mxu0 %v261
    %1095 = vmatpush1.msra.mxu0 %v260
    %1096 = vmatprep.subr.mxu0 %v269
    %1097 = vmatpush1.msra.mxu0 %v268
    %1098 = vmatprep.subr.mxu0 %v277
    %1099 = vmatpush1.msra.mxu0 %v276
    %1100 = vmatprep.subr.mxu0 %v285
    %1101 = vmatpush1.msra.mxu0 %v284
    %1102 = vmatprep.subr.mxu0 %v293
    %1103 = vmatpush1.msra.mxu0 %v292
    %1104 = vmatprep.subr.mxu0 %v301
    %1105 = vmatpush1.msra.mxu0 %v300
    %1106 = vmatprep.subr.mxu0 %v309
    %1107 = vmatpush1.msra.mxu0 %v308
    %1108 = vmatprep.subr.mxu0 %v317
    %1109 = vmatpush1.msra.mxu0 %v316
    %1110 = vmatprep.subr.mxu0 %v325
    %1111 = vmatpush1.msra.mxu0 %v324
    %1112 = vmatprep.subr.mxu0 %v333
    %1113 = vmatpush1.msra.mxu0 %v332
    %1114 = vmatprep.mubr.f32.mxu0 %v878
    %1115 = vmatmul.mubr.f32.gmra.mrb[0].mxu0 %v907
    %v1116 = vpop.f32.mrb[0].mxu0
    %v1117 = vadd.f32 0.0, %v1116
    %v1118 = vpop.f32.mrb[0].mxu0
    %v1119 = vadd.f32 0.0, %v1118
    %1120 = vdwg.mxu0
    %1121 = vmatprep.subr.mxu0 %v87
    %1122 = vmatpush1.msra.mxu0 %v86
    %1123 = vmatprep.subr.mxu0 %v95
    %1124 = vmatpush1.msra.mxu0 %v94
    %1125 = vmatprep.subr.mxu0 %v103
    %1126 = vmatpush1.msra.mxu0 %v102
    %1127 = vmatprep.subr.mxu0 %v111
    %1128 = vmatpush1.msra.mxu0 %v110
    %1129 = vmatprep.subr.mxu0 %v119
    %1130 = vmatpush1.msra.mxu0 %v118
    %1131 = vmatprep.subr.mxu0 %v127
    %1132 = vmatpush1.msra.mxu0 %v126
    %1133 = vmatprep.subr.mxu0 %v135
    %1134 = vmatpush1.msra.mxu0 %v134
    %1135 = vmatprep.subr.mxu0 %v143
    %1136 = vmatpush1.msra.mxu0 %v142
    %1137 = vmatprep.subr.mxu0 %v151
    %1138 = vmatpush1.msra.mxu0 %v150
    %1139 = vmatprep.subr.mxu0 %v159
    %1140 = vmatpush1.msra.mxu0 %v158
    %1141 = vmatprep.subr.mxu0 %v167
    %1142 = vmatpush1.msra.mxu0 %v166
    %1143 = vmatprep.subr.mxu0 %v175
    %1144 = vmatpush1.msra.mxu0 %v174
    %1145 = vmatprep.subr.mxu0 %v183
    %1146 = vmatpush1.msra.mxu0 %v182
    %1147 = vmatprep.subr.mxu0 %v191
    %1148 = vmatpush1.msra.mxu0 %v190
    %1149 = vmatprep.subr.mxu0 %v199
    %1150 = vmatpush1.msra.mxu0 %v198
    %1151 = vmatprep.subr.mxu0 %v207
    %1152 = vmatpush1.msra.mxu0 %v206
    %1153 = vmatprep.subr.mxu0 %v215
    %1154 = vmatpush1.msra.mxu0 %v214
    %1155 = vmatprep.subr.mxu0 %v223
    %1156 = vmatpush1.msra.mxu0 %v222
    %1157 = vmatprep.subr.mxu0 %v231
    %1158 = vmatpush1.msra.mxu0 %v230
    %1159 = vmatprep.subr.mxu0 %v239
    %1160 = vmatpush1.msra.mxu0 %v238
    %1161 = vmatprep.subr.mxu0 %v247
    %1162 = vmatpush1.msra.mxu0 %v246
    %1163 = vmatprep.subr.mxu0 %v255
    %1164 = vmatpush1.msra.mxu0 %v254
    %1165 = vmatprep.subr.mxu0 %v263
    %1166 = vmatpush1.msra.mxu0 %v262
    %1167 = vmatprep.subr.mxu0 %v271
    %1168 = vmatpush1.msra.mxu0 %v270
    %1169 = vmatprep.subr.mxu0 %v279
    %1170 = vmatpush1.msra.mxu0 %v278
    %1171 = vmatprep.subr.mxu0 %v287
    %1172 = vmatpush1.msra.mxu0 %v286
    %1173 = vmatprep.subr.mxu0 %v295
    %1174 = vmatpush1.msra.mxu0 %v294
    %1175 = vmatprep.subr.mxu0 %v303
    %1176 = vmatpush1.msra.mxu0 %v302
    %1177 = vmatprep.subr.mxu0 %v311
    %1178 = vmatpush1.msra.mxu0 %v310
    %1179 = vmatprep.subr.mxu0 %v319
    %1180 = vmatpush1.msra.mxu0 %v318
    %1181 = vmatprep.subr.mxu0 %v327
    %1182 = vmatpush1.msra.mxu0 %v326
    %1183 = vmatprep.subr.mxu0 %v335
    %1184 = vmatpush1.msra.mxu0 %v334
    %1185 = vmatprep.mubr.f32.mxu0 %v878
    %1186 = vmatmul.mubr.f32.gmra.mrb[0].mxu0 %v907
    %v1187 = vpop.f32.mrb[0].mxu0
    %v1188 = vadd.f32 0.0, %v1187
    %v1189 = vpop.f32.mrb[0].mxu0
    %v1190 = vadd.f32 0.0, %v1189
    %1191 = vdwg.mxu0
    %v1192 = vadd.f32 %v1117, %v834
    %v1193 = vadd.f32 %v1119, %v838
    %v1194 = vadd.f32 %v1188, %v842
    %v1195 = vadd.f32 %v1190, %v846
    %v1196 = vxor.u32 %v1192, 2147483648
    %v1197 = vmul.f32 %v1196, 1.442695
    %v1198 = vpow.pop %v1197
    %v1199 = vadd.f32 %v1198, 1.0
    %v1200 = vrcp.pop %v1199
    %v1201 = vmul.f32 1.0, %v1200
    %v1202 = vxor.u32 %v1193, 2147483648
    %v1203 = vmul.f32 %v1202, 1.442695
    %v1204 = vpow.pop %v1203
    %v1205 = vadd.f32 %v1204, 1.0
    %v1206 = vrcp.pop %v1205
    %v1207 = vmul.f32 1.0, %v1206
    %v1208 = vtanh.pop %v1194
    %v1209 = vxor.u32 %v1195, 2147483648
    %v1210 = vmul.f32 %v1209, 1.442695
    %v1211 = vpow.pop %v1210
    %v1212 = vadd.f32 %v1211, 1.0
    %v1213 = vrcp.pop %v1212
    %v1214 = vmul.f32 1.0, %v1213
    %v1215 = vmul.f32 %v1207, %v876
    %v1216 = vmul.f32 %v1201, %v1208
    %v1217 = vadd.f32 %v1215, %v1216
    %v1218 = vtanh.pop %v1217
    %v1219 = vmul.f32 %v1214, %v1218
    %1220 = vst [vmem:[#allocation2 + $0x1] sm:$0x1] %v1219
    %v1221 = vadd.f32 %v975, %v447
    %v1222 = vadd.f32 %v977, %v449
    %v1223 = vadd.f32 %v1046, %v518
    %v1224 = vadd.f32 %v1048, %v520
    %v1225 = vxor.u32 %v1221, 2147483648
    %v1226 = vmul.f32 %v1225, 1.442695
    %v1227 = vpow.pop %v1226
    %v1228 = vadd.f32 %v1227, 1.0
    %v1229 = vrcp.pop %v1228
    %v1230 = vmul.f32 1.0, %v1229
    %v1231 = vxor.u32 %v1222, 2147483648
    %v1232 = vmul.f32 %v1231, 1.442695
    %v1233 = vpow.pop %v1232
    %v1234 = vadd.f32 %v1233, 1.0
    %v1235 = vrcp.pop %v1234
    %v1236 = vmul.f32 1.0, %v1235
    %v1237 = vtanh.pop %v1223
    %v1238 = vxor.u32 %v1224, 2147483648
    %v1239 = vmul.f32 %v1238, 1.442695
    %v1240 = vpow.pop %v1239
    %v1241 = vadd.f32 %v1240, 1.0
    %v1242 = vrcp.pop %v1241
    %v1243 = vmul.f32 1.0, %v1242
    %v1244 = vmul.f32 %v1236, %v905
    %v1245 = vmul.f32 %v1230, %v1237
    %v1246 = vadd.f32 %v1244, %v1245
    %v1247 = vtanh.pop %v1246
    %v1248 = vmul.f32 %v1243, %v1247
    %1249 = vmatprep.subr.mxu0 %v81
    %1250 = vmatpush1.msra.mxu0 %v80
    %1251 = vmatprep.subr.mxu0 %v89
    %1252 = vmatpush1.msra.mxu0 %v88
    %1253 = vmatprep.subr.mxu0 %v97
    %1254 = vmatpush1.msra.mxu0 %v96
    %1255 = vmatprep.subr.mxu0 %v105
    %1256 = vmatpush1.msra.mxu0 %v104
    %1257 = vmatprep.subr.mxu0 %v113
    %1258 = vmatpush1.msra.mxu0 %v112
    %1259 = vmatprep.subr.mxu0 %v121
    %1260 = vmatpush1.msra.mxu0 %v120
    %1261 = vmatprep.subr.mxu0 %v129
    %1262 = vmatpush1.msra.mxu0 %v128
    %1263 = vmatprep.subr.mxu0 %v137
    %1264 = vmatpush1.msra.mxu0 %v136
    %1265 = vmatprep.subr.mxu0 %v145
    %1266 = vmatpush1.msra.mxu0 %v144
    %1267 = vmatprep.subr.mxu0 %v153
    %1268 = vmatpush1.msra.mxu0 %v152
    %1269 = vmatprep.subr.mxu0 %v161
    %1270 = vmatpush1.msra.mxu0 %v160
    %1271 = vmatprep.subr.mxu0 %v169
    %1272 = vmatpush1.msra.mxu0 %v168
    %1273 = vmatprep.subr.mxu0 %v177
    %1274 = vmatpush1.msra.mxu0 %v176
    %1275 = vmatprep.subr.mxu0 %v185
    %1276 = vmatpush1.msra.mxu0 %v184
    %1277 = vmatprep.subr.mxu0 %v193
    %1278 = vmatpush1.msra.mxu0 %v192
    %1279 = vmatprep.subr.mxu0 %v201
    %1280 = vmatpush1.msra.mxu0 %v200
    %1281 = vmatprep.subr.mxu0 %v209
    %1282 = vmatpush1.msra.mxu0 %v208
    %1283 = vmatprep.subr.mxu0 %v217
    %1284 = vmatpush1.msra.mxu0 %v216
    %1285 = vmatprep.subr.mxu0 %v225
    %1286 = vmatpush1.msra.mxu0 %v224
    %1287 = vmatprep.subr.mxu0 %v233
    %1288 = vmatpush1.msra.mxu0 %v232
    %1289 = vmatprep.subr.mxu0 %v241
    %1290 = vmatpush1.msra.mxu0 %v240
    %1291 = vmatprep.subr.mxu0 %v249
    %1292 = vmatpush1.msra.mxu0 %v248
    %1293 = vmatprep.subr.mxu0 %v257
    %1294 = vmatpush1.msra.mxu0 %v256
    %1295 = vmatprep.subr.mxu0 %v265
    %1296 = vmatpush1.msra.mxu0 %v264
    %1297 = vmatprep.subr.mxu0 %v273
    %1298 = vmatpush1.msra.mxu0 %v272
    %1299 = vmatprep.subr.mxu0 %v281
    %1300 = vmatpush1.msra.mxu0 %v280
    %1301 = vmatprep.subr.mxu0 %v289
    %1302 = vmatpush1.msra.mxu0 %v288
    %1303 = vmatprep.subr.mxu0 %v297
    %1304 = vmatpush1.msra.mxu0 %v296
    %1305 = vmatprep.subr.mxu0 %v305
    %1306 = vmatpush1.msra.mxu0 %v304
    %1307 = vmatprep.subr.mxu0 %v313
    %1308 = vmatpush1.msra.mxu0 %v312
    %1309 = vmatprep.subr.mxu0 %v321
    %1310 = vmatpush1.msra.mxu0 %v320
    %1311 = vmatprep.subr.mxu0 %v329
    %1312 = vmatpush1.msra.mxu0 %v328
    %1313 = vmatprep.mubr.f32.mxu0 %v1219
    %1314 = vmatmul.mubr.f32.gmra.mrb[0].mxu0 %v1248
    %v1315 = vpop.f32.mrb[0].mxu0
    %v1316 = vadd.f32 0.0, %v1315
    %v1317 = vpop.f32.mrb[0].mxu0
    %v1318 = vadd.f32 0.0, %v1317
    %1319 = vdwg.mxu0
    %1320 = vmatprep.subr.mxu0 %v83
    %1321 = vmatpush1.msra.mxu0 %v82
    %1322 = vmatprep.subr.mxu0 %v91
    %1323 = vmatpush1.msra.mxu0 %v90
    %1324 = vmatprep.subr.mxu0 %v99
    %1325 = vmatpush1.msra.mxu0 %v98
    %1326 = vmatprep.subr.mxu0 %v107
    %1327 = vmatpush1.msra.mxu0 %v106
    %1328 = vmatprep.subr.mxu0 %v115
    %1329 = vmatpush1.msra.mxu0 %v114
    %1330 = vmatprep.subr.mxu0 %v123
    %1331 = vmatpush1.msra.mxu0 %v122
    %1332 = vmatprep.subr.mxu0 %v131
    %1333 = vmatpush1.msra.mxu0 %v130
    %1334 = vmatprep.subr.mxu0 %v139
    %1335 = vmatpush1.msra.mxu0 %v138
    %1336 = vmatprep.subr.mxu0 %v147
    %1337 = vmatpush1.msra.mxu0 %v146
    %1338 = vmatprep.subr.mxu0 %v155
    %1339 = vmatpush1.msra.mxu0 %v154
    %1340 = vmatprep.subr.mxu0 %v163
    %1341 = vmatpush1.msra.mxu0 %v162
    %1342 = vmatprep.subr.mxu0 %v171
    %1343 = vmatpush1.msra.mxu0 %v170
    %1344 = vmatprep.subr.mxu0 %v179
    %1345 = vmatpush1.msra.mxu0 %v178
    %1346 = vmatprep.subr.mxu0 %v187
    %1347 = vmatpush1.msra.mxu0 %v186
    %1348 = vmatprep.subr.mxu0 %v195
    %1349 = vmatpush1.msra.mxu0 %v194
    %1350 = vmatprep.subr.mxu0 %v203
    %1351 = vmatpush1.msra.mxu0 %v202
    %1352 = vmatprep.subr.mxu0 %v211
    %1353 = vmatpush1.msra.mxu0 %v210
    %1354 = vmatprep.subr.mxu0 %v219
    %1355 = vmatpush1.msra.mxu0 %v218
    %1356 = vmatprep.subr.mxu0 %v227
    %1357 = vmatpush1.msra.mxu0 %v226
    %1358 = vmatprep.subr.mxu0 %v235
    %1359 = vmatpush1.msra.mxu0 %v234
    %1360 = vmatprep.subr.mxu0 %v243
    %1361 = vmatpush1.msra.mxu0 %v242
    %1362 = vmatprep.subr.mxu0 %v251
    %1363 = vmatpush1.msra.mxu0 %v250
    %1364 = vmatprep.subr.mxu0 %v259
    %1365 = vmatpush1.msra.mxu0 %v258
    %1366 = vmatprep.subr.mxu0 %v267
    %1367 = vmatpush1.msra.mxu0 %v266
    %1368 = vmatprep.subr.mxu0 %v275
    %1369 = vmatpush1.msra.mxu0 %v274
    %1370 = vmatprep.subr.mxu0 %v283
    %1371 = vmatpush1.msra.mxu0 %v282
    %1372 = vmatprep.subr.mxu0 %v291
    %1373 = vmatpush1.msra.mxu0 %v290
    %1374 = vmatprep.subr.mxu0 %v299
    %1375 = vmatpush1.msra.mxu0 %v298
    %1376 = vmatprep.subr.mxu0 %v307
    %1377 = vmatpush1.msra.mxu0 %v306
    %1378 = vmatprep.subr.mxu0 %v315
    %1379 = vmatpush1.msra.mxu0 %v314
    %1380 = vmatprep.subr.mxu0 %v323
    %1381 = vmatpush1.msra.mxu0 %v322
    %1382 = vmatprep.subr.mxu0 %v331
    %1383 = vmatpush1.msra.mxu0 %v330
    %1384 = vmatprep.mubr.f32.mxu0 %v1219
    %1385 = vmatmul.mubr.f32.gmra.mrb[0].mxu0 %v1248
    %v1386 = vpop.f32.mrb[0].mxu0
    %v1387 = vadd.f32 0.0, %v1386
    %v1388 = vpop.f32.mrb[0].mxu0
    %v1389 = vadd.f32 0.0, %v1388
    %1390 = vdwg.mxu0
    %1391 = vmatprep.subr.mxu0 %v85
    %1392 = vmatpush1.msra.mxu0 %v84
    %1393 = vmatprep.subr.mxu0 %v93
    %1394 = vmatpush1.msra.mxu0 %v92
    %1395 = vmatprep.subr.mxu0 %v101
    %1396 = vmatpush1.msra.mxu0 %v100
    %1397 = vmatprep.subr.mxu0 %v109
    %1398 = vmatpush1.msra.mxu0 %v108
    %1399 = vmatprep.subr.mxu0 %v117
    %1400 = vmatpush1.msra.mxu0 %v116
    %1401 = vmatprep.subr.mxu0 %v125
    %1402 = vmatpush1.msra.mxu0 %v124
    %1403 = vmatprep.subr.mxu0 %v133
    %1404 = vmatpush1.msra.mxu0 %v132
    %1405 = vmatprep.subr.mxu0 %v141
    %1406 = vmatpush1.msra.mxu0 %v140
    %1407 = vmatprep.subr.mxu0 %v149
    %1408 = vmatpush1.msra.mxu0 %v148
    %1409 = vmatprep.subr.mxu0 %v157
    %1410 = vmatpush1.msra.mxu0 %v156
    %1411 = vmatprep.subr.mxu0 %v165
    %1412 = vmatpush1.msra.mxu0 %v164
    %1413 = vmatprep.subr.mxu0 %v173
    %1414 = vmatpush1.msra.mxu0 %v172
    %1415 = vmatprep.subr.mxu0 %v181
    %1416 = vmatpush1.msra.mxu0 %v180
    %1417 = vmatprep.subr.mxu0 %v189
    %1418 = vmatpush1.msra.mxu0 %v188
    %1419 = vmatprep.subr.mxu0 %v197
    %1420 = vmatpush1.msra.mxu0 %v196
    %1421 = vmatprep.subr.mxu0 %v205
    %1422 = vmatpush1.msra.mxu0 %v204
    %1423 = vmatprep.subr.mxu0 %v213
    %1424 = vmatpush1.msra.mxu0 %v212
    %1425 = vmatprep.subr.mxu0 %v221
    %1426 = vmatpush1.msra.mxu0 %v220
    %1427 = vmatprep.subr.mxu0 %v229
    %1428 = vmatpush1.msra.mxu0 %v228
    %1429 = vmatprep.subr.mxu0 %v237
    %1430 = vmatpush1.msra.mxu0 %v236
    %1431 = vmatprep.subr.mxu0 %v245
    %1432 = vmatpush1.msra.mxu0 %v244
    %1433 = vmatprep.subr.mxu0 %v253
    %1434 = vmatpush1.msra.mxu0 %v252
    %1435 = vmatprep.subr.mxu0 %v261
    %1436 = vmatpush1.msra.mxu0 %v260
    %1437 = vmatprep.subr.mxu0 %v269
    %1438 = vmatpush1.msra.mxu0 %v268
    %1439 = vmatprep.subr.mxu0 %v277
    %1440 = vmatpush1.msra.mxu0 %v276
    %1441 = vmatprep.subr.mxu0 %v285
    %1442 = vmatpush1.msra.mxu0 %v284
    %1443 = vmatprep.subr.mxu0 %v293
    %1444 = vmatpush1.msra.mxu0 %v292
    %1445 = vmatprep.subr.mxu0 %v301
    %1446 = vmatpush1.msra.mxu0 %v300
    %1447 = vmatprep.subr.mxu0 %v309
    %1448 = vmatpush1.msra.mxu0 %v308
    %1449 = vmatprep.subr.mxu0 %v317
    %1450 = vmatpush1.msra.mxu0 %v316
    %1451 = vmatprep.subr.mxu0 %v325
    %1452 = vmatpush1.msra.mxu0 %v324
    %1453 = vmatprep.subr.mxu0 %v333
    %1454 = vmatpush1.msra.mxu0 %v332
    %1455 = vmatprep.mubr.f32.mxu0 %v1219
    %1456 = vmatmul.mubr.f32.gmra.mrb[0].mxu0 %v1248
    %v1457 = vpop.f32.mrb[0].mxu0
    %v1458 = vadd.f32 0.0, %v1457
    %v1459 = vpop.f32.mrb[0].mxu0
    %v1460 = vadd.f32 0.0, %v1459
    %1461 = vdwg.mxu0
    %1462 = vmatprep.subr.mxu0 %v87
    %1463 = vmatpush1.msra.mxu0 %v86
    %1464 = vmatprep.subr.mxu0 %v95
    %1465 = vmatpush1.msra.mxu0 %v94
    %1466 = vmatprep.subr.mxu0 %v103
    %1467 = vmatpush1.msra.mxu0 %v102
    %1468 = vmatprep.subr.mxu0 %v111
    %1469 = vmatpush1.msra.mxu0 %v110
    %1470 = vmatprep.subr.mxu0 %v119
    %1471 = vmatpush1.msra.mxu0 %v118
    %1472 = vmatprep.subr.mxu0 %v127
    %1473 = vmatpush1.msra.mxu0 %v126
    %1474 = vmatprep.subr.mxu0 %v135
    %1475 = vmatpush1.msra.mxu0 %v134
    %1476 = vmatprep.subr.mxu0 %v143
    %1477 = vmatpush1.msra.mxu0 %v142
    %1478 = vmatprep.subr.mxu0 %v151
    %1479 = vmatpush1.msra.mxu0 %v150
    %1480 = vmatprep.subr.mxu0 %v159
    %1481 = vmatpush1.msra.mxu0 %v158
    %1482 = vmatprep.subr.mxu0 %v167
    %1483 = vmatpush1.msra.mxu0 %v166
    %1484 = vmatprep.subr.mxu0 %v175
    %1485 = vmatpush1.msra.mxu0 %v174
    %1486 = vmatprep.subr.mxu0 %v183
    %1487 = vmatpush1.msra.mxu0 %v182
    %1488 = vmatprep.subr.mxu0 %v191
    %1489 = vmatpush1.msra.mxu0 %v190
    %1490 = vmatprep.subr.mxu0 %v199
    %1491 = vmatpush1.msra.mxu0 %v198
    %1492 = vmatprep.subr.mxu0 %v207
    %1493 = vmatpush1.msra.mxu0 %v206
    %1494 = vmatprep.subr.mxu0 %v215
    %1495 = vmatpush1.msra.mxu0 %v214
    %1496 = vmatprep.subr.mxu0 %v223
    %1497 = vmatpush1.msra.mxu0 %v222
    %1498 = vmatprep.subr.mxu0 %v231
    %1499 = vmatpush1.msra.mxu0 %v230
    %1500 = vmatprep.subr.mxu0 %v239
    %1501 = vmatpush1.msra.mxu0 %v238
    %1502 = vmatprep.subr.mxu0 %v247
    %1503 = vmatpush1.msra.mxu0 %v246
    %1504 = vmatprep.subr.mxu0 %v255
    %1505 = vmatpush1.msra.mxu0 %v254
    %1506 = vmatprep.subr.mxu0 %v263
    %1507 = vmatpush1.msra.mxu0 %v262
    %1508 = vmatprep.subr.mxu0 %v271
    %1509 = vmatpush1.msra.mxu0 %v270
    %1510 = vmatprep.subr.mxu0 %v279
    %1511 = vmatpush1.msra.mxu0 %v278
    %1512 = vmatprep.subr.mxu0 %v287
    %1513 = vmatpush1.msra.mxu0 %v286
    %1514 = vmatprep.subr.mxu0 %v295
    %1515 = vmatpush1.msra.mxu0 %v294
    %1516 = vmatprep.subr.mxu0 %v303
    %1517 = vmatpush1.msra.mxu0 %v302
    %1518 = vmatprep.subr.mxu0 %v311
    %1519 = vmatpush1.msra.mxu0 %v310
    %1520 = vmatprep.subr.mxu0 %v319
    %1521 = vmatpush1.msra.mxu0 %v318
    %1522 = vmatprep.subr.mxu0 %v327
    %1523 = vmatpush1.msra.mxu0 %v326
    %1524 = vmatprep.subr.mxu0 %v335
    %1525 = vmatpush1.msra.mxu0 %v334
    %1526 = vmatprep.mubr.f32.mxu0 %v1219
    %1527 = vmatmul.mubr.f32.gmra.mrb[0].mxu0 %v1248
    %v1528 = vpop.f32.mrb[0].mxu0
    %v1529 = vadd.f32 0.0, %v1528
    %v1530 = vpop.f32.mrb[0].mxu0
    %v1531 = vadd.f32 0.0, %v1530
    %1532 = vdwg.mxu0
    %v1533 = vadd.f32 %v1458, %v834
    %v1534 = vadd.f32 %v1460, %v838
    %v1535 = vadd.f32 %v1529, %v842
    %v1536 = vadd.f32 %v1531, %v846
    %v1537 = vxor.u32 %v1533, 2147483648
    %v1538 = vmul.f32 %v1537, 1.442695
    %v1539 = vpow.pop %v1538
    %v1540 = vadd.f32 %v1539, 1.0
    %v1541 = vrcp.pop %v1540
    %v1542 = vmul.f32 1.0, %v1541
    %v1543 = vxor.u32 %v1534, 2147483648
    %v1544 = vmul.f32 %v1543, 1.442695
    %v1545 = vpow.pop %v1544
    %v1546 = vadd.f32 %v1545, 1.0
    %v1547 = vrcp.pop %v1546
    %v1548 = vmul.f32 1.0, %v1547
    %v1549 = vtanh.pop %v1535
    %v1550 = vxor.u32 %v1536, 2147483648
    %v1551 = vmul.f32 %v1550, 1.442695
    %v1552 = vpow.pop %v1551
    %v1553 = vadd.f32 %v1552, 1.0
    %v1554 = vrcp.pop %v1553
    %v1555 = vmul.f32 1.0, %v1554
    %v1556 = vmul.f32 %v1548, %v1217
    %v1557 = vmul.f32 %v1542, %v1549
    %v1558 = vadd.f32 %v1556, %v1557
    %v1559 = vtanh.pop %v1558
    %v1560 = vmul.f32 %v1555, %v1559
    %1561 = vst [vmem:[#allocation2 + $0x2] sm:$0x1] %v1560
    %v1562 = vadd.f32 %v1316, %v447
    %v1563 = vadd.f32 %v1318, %v449
    %v1564 = vadd.f32 %v1387, %v518
    %v1565 = vadd.f32 %v1389, %v520
    %v1566 = vxor.u32 %v1562, 2147483648
    %v1567 = vmul.f32 %v1566, 1.442695
    %v1568 = vpow.pop %v1567
    %v1569 = vadd.f32 %v1568, 1.0
    %v1570 = vrcp.pop %v1569
    %v1571 = vmul.f32 1.0, %v1570
    %v1572 = vxor.u32 %v1563, 2147483648
    %v1573 = vmul.f32 %v1572, 1.442695
    %v1574 = vpow.pop %v1573
    %v1575 = vadd.f32 %v1574, 1.0
    %v1576 = vrcp.pop %v1575
    %v1577 = vmul.f32 1.0, %v1576
    %v1578 = vtanh.pop %v1564
    %v1579 = vxor.u32 %v1565, 2147483648
    %v1580 = vmul.f32 %v1579, 1.442695
    %v1581 = vpow.pop %v1580
    %v1582 = vadd.f32 %v1581, 1.0
    %v1583 = vrcp.pop %v1582
    %v1584 = vmul.f32 1.0, %v1583
    %v1585 = vmul.f32 %v1577, %v1246
    %v1586 = vmul.f32 %v1571, %v1578
    %v1587 = vadd.f32 %v1585, %v1586
    %v1588 = vtanh.pop %v1587
    %v1589 = vmul.f32 %v1584, %v1588
    %1590 = vmatprep.subr.mxu0 %v81
    %1591 = vmatpush1.msra.mxu0 %v80
    %1592 = vmatprep.subr.mxu0 %v89
    %1593 = vmatpush1.msra.mxu0 %v88
    %1594 = vmatprep.subr.mxu0 %v97
    %1595 = vmatpush1.msra.mxu0 %v96
    %1596 = vmatprep.subr.mxu0 %v105
    %1597 = vmatpush1.msra.mxu0 %v104
    %1598 = vmatprep.subr.mxu0 %v113
    %1599 = vmatpush1.msra.mxu0 %v112
    %1600 = vmatprep.subr.mxu0 %v121
    %1601 = vmatpush1.msra.mxu0 %v120
    %1602 = vmatprep.subr.mxu0 %v129
    %1603 = vmatpush1.msra.mxu0 %v128
    %1604 = vmatprep.subr.mxu0 %v137
    %1605 = vmatpush1.msra.mxu0 %v136
    %1606 = vmatprep.subr.mxu0 %v145
    %1607 = vmatpush1.msra.mxu0 %v144
    %1608 = vmatprep.subr.mxu0 %v153
    %1609 = vmatpush1.msra.mxu0 %v152
    %1610 = vmatprep.subr.mxu0 %v161
    %1611 = vmatpush1.msra.mxu0 %v160
    %1612 = vmatprep.subr.mxu0 %v169
    %1613 = vmatpush1.msra.mxu0 %v168
    %1614 = vmatprep.subr.mxu0 %v177
    %1615 = vmatpush1.msra.mxu0 %v176
    %1616 = vmatprep.subr.mxu0 %v185
    %1617 = vmatpush1.msra.mxu0 %v184
    %1618 = vmatprep.subr.mxu0 %v193
    %1619 = vmatpush1.msra.mxu0 %v192
    %1620 = vmatprep.subr.mxu0 %v201
    %1621 = vmatpush1.msra.mxu0 %v200
    %1622 = vmatprep.subr.mxu0 %v209
    %1623 = vmatpush1.msra.mxu0 %v208
    %1624 = vmatprep.subr.mxu0 %v217
    %1625 = vmatpush1.msra.mxu0 %v216
    %1626 = vmatprep.subr.mxu0 %v225
    %1627 = vmatpush1.msra.mxu0 %v224
    %1628 = vmatprep.subr.mxu0 %v233
    %1629 = vmatpush1.msra.mxu0 %v232
    %1630 = vmatprep.subr.mxu0 %v241
    %1631 = vmatpush1.msra.mxu0 %v240
    %1632 = vmatprep.subr.mxu0 %v249
    %1633 = vmatpush1.msra.mxu0 %v248
    %1634 = vmatprep.subr.mxu0 %v257
    %1635 = vmatpush1.msra.mxu0 %v256
    %1636 = vmatprep.subr.mxu0 %v265
    %1637 = vmatpush1.msra.mxu0 %v264
    %1638 = vmatprep.subr.mxu0 %v273
    %1639 = vmatpush1.msra.mxu0 %v272
    %1640 = vmatprep.subr.mxu0 %v281
    %1641 = vmatpush1.msra.mxu0 %v280
    %1642 = vmatprep.subr.mxu0 %v289
    %1643 = vmatpush1.msra.mxu0 %v288
    %1644 = vmatprep.subr.mxu0 %v297
    %1645 = vmatpush1.msra.mxu0 %v296
    %1646 = vmatprep.subr.mxu0 %v305
    %1647 = vmatpush1.msra.mxu0 %v304
    %1648 = vmatprep.subr.mxu0 %v313
    %1649 = vmatpush1.msra.mxu0 %v312
    %1650 = vmatprep.subr.mxu0 %v321
    %1651 = vmatpush1.msra.mxu0 %v320
    %1652 = vmatprep.subr.mxu0 %v329
    %1653 = vmatpush1.msra.mxu0 %v328
    %1654 = vmatprep.mubr.f32.mxu0 %v1560
    %1655 = vmatmul.mubr.f32.gmra.mrb[0].mxu0 %v1589
    %v1656 = vpop.f32.mrb[0].mxu0
    %v1657 = vadd.f32 0.0, %v1656
    %v1658 = vpop.f32.mrb[0].mxu0
    %v1659 = vadd.f32 0.0, %v1658
    %1660 = vdwg.mxu0
    %1661 = vmatprep.subr.mxu0 %v83
    %1662 = vmatpush1.msra.mxu0 %v82
    %1663 = vmatprep.subr.mxu0 %v91
    %1664 = vmatpush1.msra.mxu0 %v90
    %1665 = vmatprep.subr.mxu0 %v99
    %1666 = vmatpush1.msra.mxu0 %v98
    %1667 = vmatprep.subr.mxu0 %v107
    %1668 = vmatpush1.msra.mxu0 %v106
    %1669 = vmatprep.subr.mxu0 %v115
    %1670 = vmatpush1.msra.mxu0 %v114
    %1671 = vmatprep.subr.mxu0 %v123
    %1672 = vmatpush1.msra.mxu0 %v122
    %1673 = vmatprep.subr.mxu0 %v131
    %1674 = vmatpush1.msra.mxu0 %v130
    %1675 = vmatprep.subr.mxu0 %v139
    %1676 = vmatpush1.msra.mxu0 %v138
    %1677 = vmatprep.subr.mxu0 %v147
    %1678 = vmatpush1.msra.mxu0 %v146
    %1679 = vmatprep.subr.mxu0 %v155
    %1680 = vmatpush1.msra.mxu0 %v154
    %1681 = vmatprep.subr.mxu0 %v163
    %1682 = vmatpush1.msra.mxu0 %v162
    %1683 = vmatprep.subr.mxu0 %v171
    %1684 = vmatpush1.msra.mxu0 %v170
    %1685 = vmatprep.subr.mxu0 %v179
    %1686 = vmatpush1.msra.mxu0 %v178
    %1687 = vmatprep.subr.mxu0 %v187
    %1688 = vmatpush1.msra.mxu0 %v186
    %1689 = vmatprep.subr.mxu0 %v195
    %1690 = vmatpush1.msra.mxu0 %v194
    %1691 = vmatprep.subr.mxu0 %v203
    %1692 = vmatpush1.msra.mxu0 %v202
    %1693 = vmatprep.subr.mxu0 %v211
    %1694 = vmatpush1.msra.mxu0 %v210
    %1695 = vmatprep.subr.mxu0 %v219
    %1696 = vmatpush1.msra.mxu0 %v218
    %1697 = vmatprep.subr.mxu0 %v227
    %1698 = vmatpush1.msra.mxu0 %v226
    %1699 = vmatprep.subr.mxu0 %v235
    %1700 = vmatpush1.msra.mxu0 %v234
    %1701 = vmatprep.subr.mxu0 %v243
    %1702 = vmatpush1.msra.mxu0 %v242
    %1703 = vmatprep.subr.mxu0 %v251
    %1704 = vmatpush1.msra.mxu0 %v250
    %1705 = vmatprep.subr.mxu0 %v259
    %1706 = vmatpush1.msra.mxu0 %v258
    %1707 = vmatprep.subr.mxu0 %v267
    %1708 = vmatpush1.msra.mxu0 %v266
    %1709 = vmatprep.subr.mxu0 %v275
    %1710 = vmatpush1.msra.mxu0 %v274
    %1711 = vmatprep.subr.mxu0 %v283
    %1712 = vmatpush1.msra.mxu0 %v282
    %1713 = vmatprep.subr.mxu0 %v291
    %1714 = vmatpush1.msra.mxu0 %v290
    %1715 = vmatprep.subr.mxu0 %v299
    %1716 = vmatpush1.msra.mxu0 %v298
    %1717 = vmatprep.subr.mxu0 %v307
    %1718 = vmatpush1.msra.mxu0 %v306
    %1719 = vmatprep.subr.mxu0 %v315
    %1720 = vmatpush1.msra.mxu0 %v314
    %1721 = vmatprep.subr.mxu0 %v323
    %1722 = vmatpush1.msra.mxu0 %v322
    %1723 = vmatprep.subr.mxu0 %v331
    %1724 = vmatpush1.msra.mxu0 %v330
    %1725 = vmatprep.mubr.f32.mxu0 %v1560
    %1726 = vmatmul.mubr.f32.gmra.mrb[0].mxu0 %v1589
    %v1727 = vpop.f32.mrb[0].mxu0
    %v1728 = vadd.f32 0.0, %v1727
    %v1729 = vpop.f32.mrb[0].mxu0
    %v1730 = vadd.f32 0.0, %v1729
    %1731 = vdwg.mxu0
    %1732 = vmatprep.subr.mxu0 %v85
    %1733 = vmatpush1.msra.mxu0 %v84
    %1734 = vmatprep.subr.mxu0 %v93
    %1735 = vmatpush1.msra.mxu0 %v92
    %1736 = vmatprep.subr.mxu0 %v101
    %1737 = vmatpush1.msra.mxu0 %v100
    %1738 = vmatprep.subr.mxu0 %v109
    %1739 = vmatpush1.msra.mxu0 %v108
    %1740 = vmatprep.subr.mxu0 %v117
    %1741 = vmatpush1.msra.mxu0 %v116
    %1742 = vmatprep.subr.mxu0 %v125
    %1743 = vmatpush1.msra.mxu0 %v124
    %1744 = vmatprep.subr.mxu0 %v133
    %1745 = vmatpush1.msra.mxu0 %v132
    %1746 = vmatprep.subr.mxu0 %v141
    %1747 = vmatpush1.msra.mxu0 %v140
    %1748 = vmatprep.subr.mxu0 %v149
    %1749 = vmatpush1.msra.mxu0 %v148
    %1750 = vmatprep.subr.mxu0 %v157
    %1751 = vmatpush1.msra.mxu0 %v156
    %1752 = vmatprep.subr.mxu0 %v165
    %1753 = vmatpush1.msra.mxu0 %v164
    %1754 = vmatprep.subr.mxu0 %v173
    %1755 = vmatpush1.msra.mxu0 %v172
    %1756 = vmatprep.subr.mxu0 %v181
    %1757 = vmatpush1.msra.mxu0 %v180
    %1758 = vmatprep.subr.mxu0 %v189
    %1759 = vmatpush1.msra.mxu0 %v188
    %1760 = vmatprep.subr.mxu0 %v197
    %1761 = vmatpush1.msra.mxu0 %v196
    %1762 = vmatprep.subr.mxu0 %v205
    %1763 = vmatpush1.msra.mxu0 %v204
    %1764 = vmatprep.subr.mxu0 %v213
    %1765 = vmatpush1.msra.mxu0 %v212
    %1766 = vmatprep.subr.mxu0 %v221
    %1767 = vmatpush1.msra.mxu0 %v220
    %1768 = vmatprep.subr.mxu0 %v229
    %1769 = vmatpush1.msra.mxu0 %v228
    %1770 = vmatprep.subr.mxu0 %v237
    %1771 = vmatpush1.msra.mxu0 %v236
    %1772 = vmatprep.subr.mxu0 %v245
    %1773 = vmatpush1.msra.mxu0 %v244
    %1774 = vmatprep.subr.mxu0 %v253
    %1775 = vmatpush1.msra.mxu0 %v252
    %1776 = vmatprep.subr.mxu0 %v261
    %1777 = vmatpush1.msra.mxu0 %v260
    %1778 = vmatprep.subr.mxu0 %v269
    %1779 = vmatpush1.msra.mxu0 %v268
    %1780 = vmatprep.subr.mxu0 %v277
    %1781 = vmatpush1.msra.mxu0 %v276
    %1782 = vmatprep.subr.mxu0 %v285
    %1783 = vmatpush1.msra.mxu0 %v284
    %1784 = vmatprep.subr.mxu0 %v293
    %1785 = vmatpush1.msra.mxu0 %v292
    %1786 = vmatprep.subr.mxu0 %v301
    %1787 = vmatpush1.msra.mxu0 %v300
    %1788 = vmatprep.subr.mxu0 %v309
    %1789 = vmatpush1.msra.mxu0 %v308
    %1790 = vmatprep.subr.mxu0 %v317
    %1791 = vmatpush1.msra.mxu0 %v316
    %1792 = vmatprep.subr.mxu0 %v325
    %1793 = vmatpush1.msra.mxu0 %v324
    %1794 = vmatprep.subr.mxu0 %v333
    %1795 = vmatpush1.msra.mxu0 %v332
    %1796 = vmatprep.mubr.f32.mxu0 %v1560
    %1797 = vmatmul.mubr.f32.gmra.mrb[0].mxu0 %v1589
    %v1798 = vpop.f32.mrb[0].mxu0
    %v1799 = vadd.f32 0.0, %v1798
    %v1800 = vpop.f32.mrb[0].mxu0
    %v1801 = vadd.f32 0.0, %v1800
    %1802 = vdwg.mxu0
    %1803 = vmatprep.subr.mxu0 %v87
    %1804 = vmatpush1.msra.mxu0 %v86
    %1805 = vmatprep.subr.mxu0 %v95
    %1806 = vmatpush1.msra.mxu0 %v94
    %1807 = vmatprep.subr.mxu0 %v103
    %1808 = vmatpush1.msra.mxu0 %v102
    %1809 = vmatprep.subr.mxu0 %v111
    %1810 = vmatpush1.msra.mxu0 %v110
    %1811 = vmatprep.subr.mxu0 %v119
    %1812 = vmatpush1.msra.mxu0 %v118
    %1813 = vmatprep.subr.mxu0 %v127
    %1814 = vmatpush1.msra.mxu0 %v126
    %1815 = vmatprep.subr.mxu0 %v135
    %1816 = vmatpush1.msra.mxu0 %v134
    %1817 = vmatprep.subr.mxu0 %v143
    %1818 = vmatpush1.msra.mxu0 %v142
    %1819 = vmatprep.subr.mxu0 %v151
    %1820 = vmatpush1.msra.mxu0 %v150
    %1821 = vmatprep.subr.mxu0 %v159
    %1822 = vmatpush1.msra.mxu0 %v158
    %1823 = vmatprep.subr.mxu0 %v167
    %1824 = vmatpush1.msra.mxu0 %v166
    %1825 = vmatprep.subr.mxu0 %v175
    %1826 = vmatpush1.msra.mxu0 %v174
    %1827 = vmatprep.subr.mxu0 %v183
    %1828 = vmatpush1.msra.mxu0 %v182
    %1829 = vmatprep.subr.mxu0 %v191
    %1830 = vmatpush1.msra.mxu0 %v190
    %1831 = vmatprep.subr.mxu0 %v199
    %1832 = vmatpush1.msra.mxu0 %v198
    %1833 = vmatprep.subr.mxu0 %v207
    %1834 = vmatpush1.msra.mxu0 %v206
    %1835 = vmatprep.subr.mxu0 %v215
    %1836 = vmatpush1.msra.mxu0 %v214
    %1837 = vmatprep.subr.mxu0 %v223
    %1838 = vmatpush1.msra.mxu0 %v222
    %1839 = vmatprep.subr.mxu0 %v231
    %1840 = vmatpush1.msra.mxu0 %v230
    %1841 = vmatprep.subr.mxu0 %v239
    %1842 = vmatpush1.msra.mxu0 %v238
    %1843 = vmatprep.subr.mxu0 %v247
    %1844 = vmatpush1.msra.mxu0 %v246
    %1845 = vmatprep.subr.mxu0 %v255
    %1846 = vmatpush1.msra.mxu0 %v254
    %1847 = vmatprep.subr.mxu0 %v263
    %1848 = vmatpush1.msra.mxu0 %v262
    %1849 = vmatprep.subr.mxu0 %v271
    %1850 = vmatpush1.msra.mxu0 %v270
    %1851 = vmatprep.subr.mxu0 %v279
    %1852 = vmatpush1.msra.mxu0 %v278
    %1853 = vmatprep.subr.mxu0 %v287
    %1854 = vmatpush1.msra.mxu0 %v286
    %1855 = vmatprep.subr.mxu0 %v295
    %1856 = vmatpush1.msra.mxu0 %v294
    %1857 = vmatprep.subr.mxu0 %v303
    %1858 = vmatpush1.msra.mxu0 %v302
    %1859 = vmatprep.subr.mxu0 %v311
    %1860 = vmatpush1.msra.mxu0 %v310
    %1861 = vmatprep.subr.mxu0 %v319
    %1862 = vmatpush1.msra.mxu0 %v318
    %1863 = vmatprep.subr.mxu0 %v327
    %1864 = vmatpush1.msra.mxu0 %v326
    %1865 = vmatprep.subr.mxu0 %v335
    %1866 = vmatpush1.msra.mxu0 %v334
    %1867 = vmatprep.mubr.f32.mxu0 %v1560
    %1868 = vmatmul.mubr.f32.gmra.mrb[0].mxu0 %v1589
    %v1869 = vpop.f32.mrb[0].mxu0
    %v1870 = vadd.f32 0.0, %v1869
    %v1871 = vpop.f32.mrb[0].mxu0
    %v1872 = vadd.f32 0.0, %v1871
    %1873 = vdwg.mxu0
    %v1874 = vadd.f32 %v1799, %v834
    %v1875 = vadd.f32 %v1801, %v838
    %v1876 = vadd.f32 %v1870, %v842
    %v1877 = vadd.f32 %v1872, %v846
    %v1878 = vxor.u32 %v1874, 2147483648
    %v1879 = vmul.f32 %v1878, 1.442695
    %v1880 = vpow.pop %v1879
    %v1881 = vadd.f32 %v1880, 1.0
    %v1882 = vrcp.pop %v1881
    %v1883 = vmul.f32 1.0, %v1882
    %v1884 = vxor.u32 %v1875, 2147483648
    %v1885 = vmul.f32 %v1884, 1.442695
    %v1886 = vpow.pop %v1885
    %v1887 = vadd.f32 %v1886, 1.0
    %v1888 = vrcp.pop %v1887
    %v1889 = vmul.f32 1.0, %v1888
    %v1890 = vtanh.pop %v1876
    %v1891 = vxor.u32 %v1877, 2147483648
    %v1892 = vmul.f32 %v1891, 1.442695
    %v1893 = vpow.pop %v1892
    %v1894 = vadd.f32 %v1893, 1.0
    %v1895 = vrcp.pop %v1894
    %v1896 = vmul.f32 1.0, %v1895
    %v1897 = vmul.f32 %v1889, %v1558
    %v1898 = vmul.f32 %v1883, %v1890
    %v1899 = vadd.f32 %v1897, %v1898
    %v1900 = vtanh.pop %v1899
    %v1901 = vmul.f32 %v1896, %v1900
    %1902 = vst [vmem:[#allocation2 + $0x3] sm:$0x1] %v1901
    %v1903 = vadd.f32 %v1657, %v447
    %v1904 = vadd.f32 %v1659, %v449
    %v1905 = vadd.f32 %v1728, %v518
    %v1906 = vadd.f32 %v1730, %v520
    %v1907 = vxor.u32 %v1903, 2147483648
    %v1908 = vmul.f32 %v1907, 1.442695
    %v1909 = vpow.pop %v1908
    %v1910 = vadd.f32 %v1909, 1.0
    %v1911 = vrcp.pop %v1910
    %v1912 = vmul.f32 1.0, %v1911
    %v1913 = vxor.u32 %v1904, 2147483648
    %v1914 = vmul.f32 %v1913, 1.442695
    %v1915 = vpow.pop %v1914
    %v1916 = vadd.f32 %v1915, 1.0
    %v1917 = vrcp.pop %v1916
    %v1918 = vmul.f32 1.0, %v1917
    %v1919 = vtanh.pop %v1905
    %v1920 = vxor.u32 %v1906, 2147483648
    %v1921 = vmul.f32 %v1920, 1.442695
    %v1922 = vpow.pop %v1921
    %v1923 = vadd.f32 %v1922, 1.0
    %v1924 = vrcp.pop %v1923
    %v1925 = vmul.f32 1.0, %v1924
    %v1926 = vmul.f32 %v1918, %v1587
    %v1927 = vmul.f32 %v1912, %v1919
    %v1928 = vadd.f32 %v1926, %v1927
    %v1929 = vtanh.pop %v1928
    %v1930 = vmul.f32 %v1925, %v1929
    %1931 = vmatprep.subr.mxu0 %v81
    %1932 = vmatpush1.msra.mxu0 %v80
    %1933 = vmatprep.subr.mxu0 %v89
    %1934 = vmatpush1.msra.mxu0 %v88
    %1935 = vmatprep.subr.mxu0 %v97
    %1936 = vmatpush1.msra.mxu0 %v96
    %1937 = vmatprep.subr.mxu0 %v105
    %1938 = vmatpush1.msra.mxu0 %v104
    %1939 = vmatprep.subr.mxu0 %v113
    %1940 = vmatpush1.msra.mxu0 %v112
    %1941 = vmatprep.subr.mxu0 %v121
    %1942 = vmatpush1.msra.mxu0 %v120
    %1943 = vmatprep.subr.mxu0 %v129
    %1944 = vmatpush1.msra.mxu0 %v128
    %1945 = vmatprep.subr.mxu0 %v137
    %1946 = vmatpush1.msra.mxu0 %v136
    %1947 = vmatprep.subr.mxu0 %v145
    %1948 = vmatpush1.msra.mxu0 %v144
    %1949 = vmatprep.subr.mxu0 %v153
    %1950 = vmatpush1.msra.mxu0 %v152
    %1951 = vmatprep.subr.mxu0 %v161
    %1952 = vmatpush1.msra.mxu0 %v160
    %1953 = vmatprep.subr.mxu0 %v169
    %1954 = vmatpush1.msra.mxu0 %v168
    %1955 = vmatprep.subr.mxu0 %v177
    %1956 = vmatpush1.msra.mxu0 %v176
    %1957 = vmatprep.subr.mxu0 %v185
    %1958 = vmatpush1.msra.mxu0 %v184
    %1959 = vmatprep.subr.mxu0 %v193
    %1960 = vmatpush1.msra.mxu0 %v192
    %1961 = vmatprep.subr.mxu0 %v201
    %1962 = vmatpush1.msra.mxu0 %v200
    %1963 = vmatprep.subr.mxu0 %v209
    %1964 = vmatpush1.msra.mxu0 %v208
    %1965 = vmatprep.subr.mxu0 %v217
    %1966 = vmatpush1.msra.mxu0 %v216
    %1967 = vmatprep.subr.mxu0 %v225
    %1968 = vmatpush1.msra.mxu0 %v224
    %1969 = vmatprep.subr.mxu0 %v233
    %1970 = vmatpush1.msra.mxu0 %v232
    %1971 = vmatprep.subr.mxu0 %v241
    %1972 = vmatpush1.msra.mxu0 %v240
    %1973 = vmatprep.subr.mxu0 %v249
    %1974 = vmatpush1.msra.mxu0 %v248
    %1975 = vmatprep.subr.mxu0 %v257
    %1976 = vmatpush1.msra.mxu0 %v256
    %1977 = vmatprep.subr.mxu0 %v265
    %1978 = vmatpush1.msra.mxu0 %v264
    %1979 = vmatprep.subr.mxu0 %v273
    %1980 = vmatpush1.msra.mxu0 %v272
    %1981 = vmatprep.subr.mxu0 %v281
    %1982 = vmatpush1.msra.mxu0 %v280
    %1983 = vmatprep.subr.mxu0 %v289
    %1984 = vmatpush1.msra.mxu0 %v288
    %1985 = vmatprep.subr.mxu0 %v297
    %1986 = vmatpush1.msra.mxu0 %v296
    %1987 = vmatprep.subr.mxu0 %v305
    %1988 = vmatpush1.msra.mxu0 %v304
    %1989 = vmatprep.subr.mxu0 %v313
    %1990 = vmatpush1.msra.mxu0 %v312
    %1991 = vmatprep.subr.mxu0 %v321
    %1992 = vmatpush1.msra.mxu0 %v320
    %1993 = vmatprep.subr.mxu0 %v329
    %1994 = vmatpush1.msra.mxu0 %v328
    %1995 = vmatprep.mubr.f32.mxu0 %v1901
    %1996 = vmatmul.mubr.f32.gmra.mrb[0].mxu0 %v1930
    %v1997 = vpop.f32.mrb[0].mxu0
    %v1998 = vadd.f32 0.0, %v1997
    %v1999 = vpop.f32.mrb[0].mxu0
    %v2000 = vadd.f32 0.0, %v1999
    %2001 = vdwg.mxu0
    %2002 = vmatprep.subr.mxu0 %v83
    %2003 = vmatpush1.msra.mxu0 %v82
    %2004 = vmatprep.subr.mxu0 %v91
    %2005 = vmatpush1.msra.mxu0 %v90
    %2006 = vmatprep.subr.mxu0 %v99
    %2007 = vmatpush1.msra.mxu0 %v98
    %2008 = vmatprep.subr.mxu0 %v107
    %2009 = vmatpush1.msra.mxu0 %v106
    %2010 = vmatprep.subr.mxu0 %v115
    %2011 = vmatpush1.msra.mxu0 %v114
    %2012 = vmatprep.subr.mxu0 %v123
    %2013 = vmatpush1.msra.mxu0 %v122
    %2014 = vmatprep.subr.mxu0 %v131
    %2015 = vmatpush1.msra.mxu0 %v130
    %2016 = vmatprep.subr.mxu0 %v139
    %2017 = vmatpush1.msra.mxu0 %v138
    %2018 = vmatprep.subr.mxu0 %v147
    %2019 = vmatpush1.msra.mxu0 %v146
    %2020 = vmatprep.subr.mxu0 %v155
    %2021 = vmatpush1.msra.mxu0 %v154
    %2022 = vmatprep.subr.mxu0 %v163
    %2023 = vmatpush1.msra.mxu0 %v162
    %2024 = vmatprep.subr.mxu0 %v171
    %2025 = vmatpush1.msra.mxu0 %v170
    %2026 = vmatprep.subr.mxu0 %v179
    %2027 = vmatpush1.msra.mxu0 %v178
    %2028 = vmatprep.subr.mxu0 %v187
    %2029 = vmatpush1.msra.mxu0 %v186
    %2030 = vmatprep.subr.mxu0 %v195
    %2031 = vmatpush1.msra.mxu0 %v194
    %2032 = vmatprep.subr.mxu0 %v203
    %2033 = vmatpush1.msra.mxu0 %v202
    %2034 = vmatprep.subr.mxu0 %v211
    %2035 = vmatpush1.msra.mxu0 %v210
    %2036 = vmatprep.subr.mxu0 %v219
    %2037 = vmatpush1.msra.mxu0 %v218
    %2038 = vmatprep.subr.mxu0 %v227
    %2039 = vmatpush1.msra.mxu0 %v226
    %2040 = vmatprep.subr.mxu0 %v235
    %2041 = vmatpush1.msra.mxu0 %v234
    %2042 = vmatprep.subr.mxu0 %v243
    %2043 = vmatpush1.msra.mxu0 %v242
    %2044 = vmatprep.subr.mxu0 %v251
    %2045 = vmatpush1.msra.mxu0 %v250
    %2046 = vmatprep.subr.mxu0 %v259
    %2047 = vmatpush1.msra.mxu0 %v258
    %2048 = vmatprep.subr.mxu0 %v267
    %2049 = vmatpush1.msra.mxu0 %v266
    %2050 = vmatprep.subr.mxu0 %v275
    %2051 = vmatpush1.msra.mxu0 %v274
    %2052 = vmatprep.subr.mxu0 %v283
    %2053 = vmatpush1.msra.mxu0 %v282
    %2054 = vmatprep.subr.mxu0 %v291
    %2055 = vmatpush1.msra.mxu0 %v290
    %2056 = vmatprep.subr.mxu0 %v299
    %2057 = vmatpush1.msra.mxu0 %v298
    %2058 = vmatprep.subr.mxu0 %v307
    %2059 = vmatpush1.msra.mxu0 %v306
    %2060 = vmatprep.subr.mxu0 %v315
    %2061 = vmatpush1.msra.mxu0 %v314
    %2062 = vmatprep.subr.mxu0 %v323
    %2063 = vmatpush1.msra.mxu0 %v322
    %2064 = vmatprep.subr.mxu0 %v331
    %2065 = vmatpush1.msra.mxu0 %v330
    %2066 = vmatprep.mubr.f32.mxu0 %v1901
    %2067 = vmatmul.mubr.f32.gmra.mrb[0].mxu0 %v1930
    %v2068 = vpop.f32.mrb[0].mxu0
    %v2069 = vadd.f32 0.0, %v2068
    %v2070 = vpop.f32.mrb[0].mxu0
    %v2071 = vadd.f32 0.0, %v2070
    %2072 = vdwg.mxu0
    %2073 = vmatprep.subr.mxu0 %v85
    %2074 = vmatpush1.msra.mxu0 %v84
    %2075 = vmatprep.subr.mxu0 %v93
    %2076 = vmatpush1.msra.mxu0 %v92
    %2077 = vmatprep.subr.mxu0 %v101
    %2078 = vmatpush1.msra.mxu0 %v100
    %2079 = vmatprep.subr.mxu0 %v109
    %2080 = vmatpush1.msra.mxu0 %v108
    %2081 = vmatprep.subr.mxu0 %v117
    %2082 = vmatpush1.msra.mxu0 %v116
    %2083 = vmatprep.subr.mxu0 %v125
    %2084 = vmatpush1.msra.mxu0 %v124
    %2085 = vmatprep.subr.mxu0 %v133
    %2086 = vmatpush1.msra.mxu0 %v132
    %2087 = vmatprep.subr.mxu0 %v141
    %2088 = vmatpush1.msra.mxu0 %v140
    %2089 = vmatprep.subr.mxu0 %v149
    %2090 = vmatpush1.msra.mxu0 %v148
    %2091 = vmatprep.subr.mxu0 %v157
    %2092 = vmatpush1.msra.mxu0 %v156
    %2093 = vmatprep.subr.mxu0 %v165
    %2094 = vmatpush1.msra.mxu0 %v164
    %2095 = vmatprep.subr.mxu0 %v173
    %2096 = vmatpush1.msra.mxu0 %v172
    %2097 = vmatprep.subr.mxu0 %v181
    %2098 = vmatpush1.msra.mxu0 %v180
    %2099 = vmatprep.subr.mxu0 %v189
    %2100 = vmatpush1.msra.mxu0 %v188
    %2101 = vmatprep.subr.mxu0 %v197
    %2102 = vmatpush1.msra.mxu0 %v196
    %2103 = vmatprep.subr.mxu0 %v205
    %2104 = vmatpush1.msra.mxu0 %v204
    %2105 = vmatprep.subr.mxu0 %v213
    %2106 = vmatpush1.msra.mxu0 %v212
    %2107 = vmatprep.subr.mxu0 %v221
    %2108 = vmatpush1.msra.mxu0 %v220
    %2109 = vmatprep.subr.mxu0 %v229
    %2110 = vmatpush1.msra.mxu0 %v228
    %2111 = vmatprep.subr.mxu0 %v237
    %2112 = vmatpush1.msra.mxu0 %v236
    %2113 = vmatprep.subr.mxu0 %v245
    %2114 = vmatpush1.msra.mxu0 %v244
    %2115 = vmatprep.subr.mxu0 %v253
    %2116 = vmatpush1.msra.mxu0 %v252
    %2117 = vmatprep.subr.mxu0 %v261
    %2118 = vmatpush1.msra.mxu0 %v260
    %2119 = vmatprep.subr.mxu0 %v269
    %2120 = vmatpush1.msra.mxu0 %v268
    %2121 = vmatprep.subr.mxu0 %v277
    %2122 = vmatpush1.msra.mxu0 %v276
    %2123 = vmatprep.subr.mxu0 %v285
    %2124 = vmatpush1.msra.mxu0 %v284
    %2125 = vmatprep.subr.mxu0 %v293
    %2126 = vmatpush1.msra.mxu0 %v292
    %2127 = vmatprep.subr.mxu0 %v301
    %2128 = vmatpush1.msra.mxu0 %v300
    %2129 = vmatprep.subr.mxu0 %v309
    %2130 = vmatpush1.msra.mxu0 %v308
    %2131 = vmatprep.subr.mxu0 %v317
    %2132 = vmatpush1.msra.mxu0 %v316
    %2133 = vmatprep.subr.mxu0 %v325
    %2134 = vmatpush1.msra.mxu0 %v324
    %2135 = vmatprep.subr.mxu0 %v333
    %2136 = vmatpush1.msra.mxu0 %v332
    %2137 = vmatprep.mubr.f32.mxu0 %v1901
    %2138 = vmatmul.mubr.f32.gmra.mrb[0].mxu0 %v1930
    %v2139 = vpop.f32.mrb[0].mxu0
    %v2140 = vadd.f32 0.0, %v2139
    %v2141 = vpop.f32.mrb[0].mxu0
    %v2142 = vadd.f32 0.0, %v2141
    %2143 = vdwg.mxu0
    %2144 = vmatprep.subr.mxu0 %v87
    %2145 = vmatpush1.msra.mxu0 %v86
    %2146 = vmatprep.subr.mxu0 %v95
    %2147 = vmatpush1.msra.mxu0 %v94
    %2148 = vmatprep.subr.mxu0 %v103
    %2149 = vmatpush1.msra.mxu0 %v102
    %2150 = vmatprep.subr.mxu0 %v111
    %2151 = vmatpush1.msra.mxu0 %v110
    %2152 = vmatprep.subr.mxu0 %v119
    %2153 = vmatpush1.msra.mxu0 %v118
    %2154 = vmatprep.subr.mxu0 %v127
    %2155 = vmatpush1.msra.mxu0 %v126
    %2156 = vmatprep.subr.mxu0 %v135
    %2157 = vmatpush1.msra.mxu0 %v134
    %2158 = vmatprep.subr.mxu0 %v143
    %2159 = vmatpush1.msra.mxu0 %v142
    %2160 = vmatprep.subr.mxu0 %v151
    %2161 = vmatpush1.msra.mxu0 %v150
    %2162 = vmatprep.subr.mxu0 %v159
    %2163 = vmatpush1.msra.mxu0 %v158
    %2164 = vmatprep.subr.mxu0 %v167
    %2165 = vmatpush1.msra.mxu0 %v166
    %2166 = vmatprep.subr.mxu0 %v175
    %2167 = vmatpush1.msra.mxu0 %v174
    %2168 = vmatprep.subr.mxu0 %v183
    %2169 = vmatpush1.msra.mxu0 %v182
    %2170 = vmatprep.subr.mxu0 %v191
    %2171 = vmatpush1.msra.mxu0 %v190
    %2172 = vmatprep.subr.mxu0 %v199
    %2173 = vmatpush1.msra.mxu0 %v198
    %2174 = vmatprep.subr.mxu0 %v207
    %2175 = vmatpush1.msra.mxu0 %v206
    %2176 = vmatprep.subr.mxu0 %v215
    %2177 = vmatpush1.msra.mxu0 %v214
    %2178 = vmatprep.subr.mxu0 %v223
    %2179 = vmatpush1.msra.mxu0 %v222
    %2180 = vmatprep.subr.mxu0 %v231
    %2181 = vmatpush1.msra.mxu0 %v230
    %2182 = vmatprep.subr.mxu0 %v239
    %2183 = vmatpush1.msra.mxu0 %v238
    %2184 = vmatprep.subr.mxu0 %v247
    %2185 = vmatpush1.msra.mxu0 %v246
    %2186 = vmatprep.subr.mxu0 %v255
    %2187 = vmatpush1.msra.mxu0 %v254
    %2188 = vmatprep.subr.mxu0 %v263
    %2189 = vmatpush1.msra.mxu0 %v262
    %2190 = vmatprep.subr.mxu0 %v271
    %2191 = vmatpush1.msra.mxu0 %v270
    %2192 = vmatprep.subr.mxu0 %v279
    %2193 = vmatpush1.msra.mxu0 %v278
    %2194 = vmatprep.subr.mxu0 %v287
    %2195 = vmatpush1.msra.mxu0 %v286
    %2196 = vmatprep.subr.mxu0 %v295
    %2197 = vmatpush1.msra.mxu0 %v294
    %2198 = vmatprep.subr.mxu0 %v303
    %2199 = vmatpush1.msra.mxu0 %v302
    %2200 = vmatprep.subr.mxu0 %v311
    %2201 = vmatpush1.msra.mxu0 %v310
    %2202 = vmatprep.subr.mxu0 %v319
    %2203 = vmatpush1.msra.mxu0 %v318
    %2204 = vmatprep.subr.mxu0 %v327
    %2205 = vmatpush1.msra.mxu0 %v326
    %2206 = vmatprep.subr.mxu0 %v335
    %2207 = vmatpush1.msra.mxu0 %v334
    %2208 = vmatprep.mubr.f32.mxu0 %v1901
    %2209 = vmatmul.mubr.f32.gmra.mrb[0].mxu0 %v1930
    %v2210 = vpop.f32.mrb[0].mxu0
    %v2211 = vadd.f32 0.0, %v2210
    %v2212 = vpop.f32.mrb[0].mxu0
    %v2213 = vadd.f32 0.0, %v2212
    %2214 = vdwg.mxu0
    %v2215 = vadd.f32 %v2140, %v834
    %v2216 = vadd.f32 %v2142, %v838
    %v2217 = vadd.f32 %v2211, %v842
    %v2218 = vadd.f32 %v2213, %v846
    %v2219 = vxor.u32 %v2215, 2147483648
    %v2220 = vmul.f32 %v2219, 1.442695
    %v2221 = vpow.pop %v2220
    %v2222 = vadd.f32 %v2221, 1.0
    %v2223 = vrcp.pop %v2222
    %v2224 = vmul.f32 1.0, %v2223
    %v2225 = vxor.u32 %v2216, 2147483648
    %v2226 = vmul.f32 %v2225, 1.442695
    %v2227 = vpow.pop %v2226
    %v2228 = vadd.f32 %v2227, 1.0
    %v2229 = vrcp.pop %v2228
    %v2230 = vmul.f32 1.0, %v2229
    %v2231 = vtanh.pop %v2217
    %v2232 = vxor.u32 %v2218, 2147483648
    %v2233 = vmul.f32 %v2232, 1.442695
    %v2234 = vpow.pop %v2233
    %v2235 = vadd.f32 %v2234, 1.0
    %v2236 = vrcp.pop %v2235
    %v2237 = vmul.f32 1.0, %v2236
    %v2238 = vmul.f32 %v2230, %v1899
    %v2239 = vmul.f32 %v2224, %v2231
    %v2240 = vadd.f32 %v2238, %v2239
    %v2241 = vtanh.pop %v2240
    %v2242 = vmul.f32 %v2237, %v2241
    %2243 = vst [vmem:[#allocation2 + $0x4] sm:$0x1] %v2242
    %v2244 = vadd.f32 %v1998, %v447
    %v2245 = vadd.f32 %v2000, %v449
    %v2246 = vadd.f32 %v2069, %v518
    %v2247 = vadd.f32 %v2071, %v520
    %v2248 = vxor.u32 %v2244, 2147483648
    %v2249 = vmul.f32 %v2248, 1.442695
    %v2250 = vpow.pop %v2249
    %v2251 = vadd.f32 %v2250, 1.0
    %v2252 = vrcp.pop %v2251
    %v2253 = vmul.f32 1.0, %v2252
    %v2254 = vxor.u32 %v2245, 2147483648
    %v2255 = vmul.f32 %v2254, 1.442695
    %v2256 = vpow.pop %v2255
    %v2257 = vadd.f32 %v2256, 1.0
    %v2258 = vrcp.pop %v2257
    %v2259 = vmul.f32 1.0, %v2258
    %v2260 = vtanh.pop %v2246
    %v2261 = vxor.u32 %v2247, 2147483648
    %v2262 = vmul.f32 %v2261, 1.442695
    %v2263 = vpow.pop %v2262
    %v2264 = vadd.f32 %v2263, 1.0
    %v2265 = vrcp.pop %v2264
    %v2266 = vmul.f32 1.0, %v2265
    %v2267 = vmul.f32 %v2259, %v1928
    %v2268 = vmul.f32 %v2253, %v2260
    %v2269 = vadd.f32 %v2267, %v2268
    %v2270 = vtanh.pop %v2269
    %v2271 = vmul.f32 %v2266, %v2270
    %2272 = vmatprep.subr.mxu0 %v81
    %2273 = vmatpush1.msra.mxu0 %v80
    %2274 = vmatprep.subr.mxu0 %v89
    %2275 = vmatpush1.msra.mxu0 %v88
    %2276 = vmatprep.subr.mxu0 %v97
    %2277 = vmatpush1.msra.mxu0 %v96
    %2278 = vmatprep.subr.mxu0 %v105
    %2279 = vmatpush1.msra.mxu0 %v104
    %2280 = vmatprep.subr.mxu0 %v113
    %2281 = vmatpush1.msra.mxu0 %v112
    %2282 = vmatprep.subr.mxu0 %v121
    %2283 = vmatpush1.msra.mxu0 %v120
    %2284 = vmatprep.subr.mxu0 %v129
    %2285 = vmatpush1.msra.mxu0 %v128
    %2286 = vmatprep.subr.mxu0 %v137
    %2287 = vmatpush1.msra.mxu0 %v136
    %2288 = vmatprep.subr.mxu0 %v145
    %2289 = vmatpush1.msra.mxu0 %v144
    %2290 = vmatprep.subr.mxu0 %v153
    %2291 = vmatpush1.msra.mxu0 %v152
    %2292 = vmatprep.subr.mxu0 %v161
    %2293 = vmatpush1.msra.mxu0 %v160
    %2294 = vmatprep.subr.mxu0 %v169
    %2295 = vmatpush1.msra.mxu0 %v168
    %2296 = vmatprep.subr.mxu0 %v177
    %2297 = vmatpush1.msra.mxu0 %v176
    %2298 = vmatprep.subr.mxu0 %v185
    %2299 = vmatpush1.msra.mxu0 %v184
    %2300 = vmatprep.subr.mxu0 %v193
    %2301 = vmatpush1.msra.mxu0 %v192
    %2302 = vmatprep.subr.mxu0 %v201
    %2303 = vmatpush1.msra.mxu0 %v200
    %2304 = vmatprep.subr.mxu0 %v209
    %2305 = vmatpush1.msra.mxu0 %v208
    %2306 = vmatprep.subr.mxu0 %v217
    %2307 = vmatpush1.msra.mxu0 %v216
    %2308 = vmatprep.subr.mxu0 %v225
    %2309 = vmatpush1.msra.mxu0 %v224
    %2310 = vmatprep.subr.mxu0 %v233
    %2311 = vmatpush1.msra.mxu0 %v232
    %2312 = vmatprep.subr.mxu0 %v241
    %2313 = vmatpush1.msra.mxu0 %v240
    %2314 = vmatprep.subr.mxu0 %v249
    %2315 = vmatpush1.msra.mxu0 %v248
    %2316 = vmatprep.subr.mxu0 %v257
    %2317 = vmatpush1.msra.mxu0 %v256
    %2318 = vmatprep.subr.mxu0 %v265
    %2319 = vmatpush1.msra.mxu0 %v264
    %2320 = vmatprep.subr.mxu0 %v273
    %2321 = vmatpush1.msra.mxu0 %v272
    %2322 = vmatprep.subr.mxu0 %v281
    %2323 = vmatpush1.msra.mxu0 %v280
    %2324 = vmatprep.subr.mxu0 %v289
    %2325 = vmatpush1.msra.mxu0 %v288
    %2326 = vmatprep.subr.mxu0 %v297
    %2327 = vmatpush1.msra.mxu0 %v296
    %2328 = vmatprep.subr.mxu0 %v305
    %2329 = vmatpush1.msra.mxu0 %v304
    %2330 = vmatprep.subr.mxu0 %v313
    %2331 = vmatpush1.msra.mxu0 %v312
    %2332 = vmatprep.subr.mxu0 %v321
    %2333 = vmatpush1.msra.mxu0 %v320
    %2334 = vmatprep.subr.mxu0 %v329
    %2335 = vmatpush1.msra.mxu0 %v328
    %2336 = vmatprep.mubr.f32.mxu0 %v2242
    %2337 = vmatmul.mubr.f32.gmra.mrb[0].mxu0 %v2271
    %v2338 = vpop.f32.mrb[0].mxu0
    %v2339 = vadd.f32 0.0, %v2338
    %v2340 = vpop.f32.mrb[0].mxu0
    %v2341 = vadd.f32 0.0, %v2340
    %2342 = vdwg.mxu0
    %2343 = vmatprep.subr.mxu0 %v83
    %2344 = vmatpush1.msra.mxu0 %v82
    %2345 = vmatprep.subr.mxu0 %v91
    %2346 = vmatpush1.msra.mxu0 %v90
    %2347 = vmatprep.subr.mxu0 %v99
    %2348 = vmatpush1.msra.mxu0 %v98
    %2349 = vmatprep.subr.mxu0 %v107
    %2350 = vmatpush1.msra.mxu0 %v106
    %2351 = vmatprep.subr.mxu0 %v115
    %2352 = vmatpush1.msra.mxu0 %v114
    %2353 = vmatprep.subr.mxu0 %v123
    %2354 = vmatpush1.msra.mxu0 %v122
    %2355 = vmatprep.subr.mxu0 %v131
    %2356 = vmatpush1.msra.mxu0 %v130
    %2357 = vmatprep.subr.mxu0 %v139
    %2358 = vmatpush1.msra.mxu0 %v138
    %2359 = vmatprep.subr.mxu0 %v147
    %2360 = vmatpush1.msra.mxu0 %v146
    %2361 = vmatprep.subr.mxu0 %v155
    %2362 = vmatpush1.msra.mxu0 %v154
    %2363 = vmatprep.subr.mxu0 %v163
    %2364 = vmatpush1.msra.mxu0 %v162
    %2365 = vmatprep.subr.mxu0 %v171
    %2366 = vmatpush1.msra.mxu0 %v170
    %2367 = vmatprep.subr.mxu0 %v179
    %2368 = vmatpush1.msra.mxu0 %v178
    %2369 = vmatprep.subr.mxu0 %v187
    %2370 = vmatpush1.msra.mxu0 %v186
    %2371 = vmatprep.subr.mxu0 %v195
    %2372 = vmatpush1.msra.mxu0 %v194
    %2373 = vmatprep.subr.mxu0 %v203
    %2374 = vmatpush1.msra.mxu0 %v202
    %2375 = vmatprep.subr.mxu0 %v211
    %2376 = vmatpush1.msra.mxu0 %v210
    %2377 = vmatprep.subr.mxu0 %v219
    %2378 = vmatpush1.msra.mxu0 %v218
    %2379 = vmatprep.subr.mxu0 %v227
    %2380 = vmatpush1.msra.mxu0 %v226
    %2381 = vmatprep.subr.mxu0 %v235
    %2382 = vmatpush1.msra.mxu0 %v234
    %2383 = vmatprep.subr.mxu0 %v243
    %2384 = vmatpush1.msra.mxu0 %v242
    %2385 = vmatprep.subr.mxu0 %v251
    %2386 = vmatpush1.msra.mxu0 %v250
    %2387 = vmatprep.subr.mxu0 %v259
    %2388 = vmatpush1.msra.mxu0 %v258
    %2389 = vmatprep.subr.mxu0 %v267
    %2390 = vmatpush1.msra.mxu0 %v266
    %2391 = vmatprep.subr.mxu0 %v275
    %2392 = vmatpush1.msra.mxu0 %v274
    %2393 = vmatprep.subr.mxu0 %v283
    %2394 = vmatpush1.msra.mxu0 %v282
    %2395 = vmatprep.subr.mxu0 %v291
    %2396 = vmatpush1.msra.mxu0 %v290
    %2397 = vmatprep.subr.mxu0 %v299
    %2398 = vmatpush1.msra.mxu0 %v298
    %2399 = vmatprep.subr.mxu0 %v307
    %2400 = vmatpush1.msra.mxu0 %v306
    %2401 = vmatprep.subr.mxu0 %v315
    %2402 = vmatpush1.msra.mxu0 %v314
    %2403 = vmatprep.subr.mxu0 %v323
    %2404 = vmatpush1.msra.mxu0 %v322
    %2405 = vmatprep.subr.mxu0 %v331
    %2406 = vmatpush1.msra.mxu0 %v330
    %2407 = vmatprep.mubr.f32.mxu0 %v2242
    %2408 = vmatmul.mubr.f32.gmra.mrb[0].mxu0 %v2271
    %v2409 = vpop.f32.mrb[0].mxu0
    %v2410 = vadd.f32 0.0, %v2409
    %v2411 = vpop.f32.mrb[0].mxu0
    %v2412 = vadd.f32 0.0, %v2411
    %2413 = vdwg.mxu0
    %2414 = vmatprep.subr.mxu0 %v85
    %2415 = vmatpush1.msra.mxu0 %v84
    %2416 = vmatprep.subr.mxu0 %v93
    %2417 = vmatpush1.msra.mxu0 %v92
    %2418 = vmatprep.subr.mxu0 %v101
    %2419 = vmatpush1.msra.mxu0 %v100
    %2420 = vmatprep.subr.mxu0 %v109
    %2421 = vmatpush1.msra.mxu0 %v108
    %2422 = vmatprep.subr.mxu0 %v117
    %2423 = vmatpush1.msra.mxu0 %v116
    %2424 = vmatprep.subr.mxu0 %v125
    %2425 = vmatpush1.msra.mxu0 %v124
    %2426 = vmatprep.subr.mxu0 %v133
    %2427 = vmatpush1.msra.mxu0 %v132
    %2428 = vmatprep.subr.mxu0 %v141
    %2429 = vmatpush1.msra.mxu0 %v140
    %2430 = vmatprep.subr.mxu0 %v149
    %2431 = vmatpush1.msra.mxu0 %v148
    %2432 = vmatprep.subr.mxu0 %v157
    %2433 = vmatpush1.msra.mxu0 %v156
    %2434 = vmatprep.subr.mxu0 %v165
    %2435 = vmatpush1.msra.mxu0 %v164
    %2436 = vmatprep.subr.mxu0 %v173
    %2437 = vmatpush1.msra.mxu0 %v172
    %2438 = vmatprep.subr.mxu0 %v181
    %2439 = vmatpush1.msra.mxu0 %v180
    %2440 = vmatprep.subr.mxu0 %v189
    %2441 = vmatpush1.msra.mxu0 %v188
    %2442 = vmatprep.subr.mxu0 %v197
    %2443 = vmatpush1.msra.mxu0 %v196
    %2444 = vmatprep.subr.mxu0 %v205
    %2445 = vmatpush1.msra.mxu0 %v204
    %2446 = vmatprep.subr.mxu0 %v213
    %2447 = vmatpush1.msra.mxu0 %v212
    %2448 = vmatprep.subr.mxu0 %v221
    %2449 = vmatpush1.msra.mxu0 %v220
    %2450 = vmatprep.subr.mxu0 %v229
    %2451 = vmatpush1.msra.mxu0 %v228
    %2452 = vmatprep.subr.mxu0 %v237
    %2453 = vmatpush1.msra.mxu0 %v236
    %2454 = vmatprep.subr.mxu0 %v245
    %2455 = vmatpush1.msra.mxu0 %v244
    %2456 = vmatprep.subr.mxu0 %v253
    %2457 = vmatpush1.msra.mxu0 %v252
    %2458 = vmatprep.subr.mxu0 %v261
    %2459 = vmatpush1.msra.mxu0 %v260
    %2460 = vmatprep.subr.mxu0 %v269
    %2461 = vmatpush1.msra.mxu0 %v268
    %2462 = vmatprep.subr.mxu0 %v277
    %2463 = vmatpush1.msra.mxu0 %v276
    %2464 = vmatprep.subr.mxu0 %v285
    %2465 = vmatpush1.msra.mxu0 %v284
    %2466 = vmatprep.subr.mxu0 %v293
    %2467 = vmatpush1.msra.mxu0 %v292
    %2468 = vmatprep.subr.mxu0 %v301
    %2469 = vmatpush1.msra.mxu0 %v300
    %2470 = vmatprep.subr.mxu0 %v309
    %2471 = vmatpush1.msra.mxu0 %v308
    %2472 = vmatprep.subr.mxu0 %v317
    %2473 = vmatpush1.msra.mxu0 %v316
    %2474 = vmatprep.subr.mxu0 %v325
    %2475 = vmatpush1.msra.mxu0 %v324
    %2476 = vmatprep.subr.mxu0 %v333
    %2477 = vmatpush1.msra.mxu0 %v332
    %2478 = vmatprep.mubr.f32.mxu0 %v2242
    %2479 = vmatmul.mubr.f32.gmra.mrb[0].mxu0 %v2271
    %v2480 = vpop.f32.mrb[0].mxu0
    %v2481 = vadd.f32 0.0, %v2480
    %v2482 = vpop.f32.mrb[0].mxu0
    %v2483 = vadd.f32 0.0, %v2482
    %2484 = vdwg.mxu0
    %2485 = vmatprep.subr.mxu0 %v87
    %2486 = vmatpush1.msra.mxu0 %v86
    %2487 = vmatprep.subr.mxu0 %v95
    %2488 = vmatpush1.msra.mxu0 %v94
    %2489 = vmatprep.subr.mxu0 %v103
    %2490 = vmatpush1.msra.mxu0 %v102
    %2491 = vmatprep.subr.mxu0 %v111
    %2492 = vmatpush1.msra.mxu0 %v110
    %2493 = vmatprep.subr.mxu0 %v119
    %2494 = vmatpush1.msra.mxu0 %v118
    %2495 = vmatprep.subr.mxu0 %v127
    %2496 = vmatpush1.msra.mxu0 %v126
    %2497 = vmatprep.subr.mxu0 %v135
    %2498 = vmatpush1.msra.mxu0 %v134
    %2499 = vmatprep.subr.mxu0 %v143
    %2500 = vmatpush1.msra.mxu0 %v142
    %2501 = vmatprep.subr.mxu0 %v151
    %2502 = vmatpush1.msra.mxu0 %v150
    %2503 = vmatprep.subr.mxu0 %v159
    %2504 = vmatpush1.msra.mxu0 %v158
    %2505 = vmatprep.subr.mxu0 %v167
    %2506 = vmatpush1.msra.mxu0 %v166
    %2507 = vmatprep.subr.mxu0 %v175
    %2508 = vmatpush1.msra.mxu0 %v174
    %2509 = vmatprep.subr.mxu0 %v183
    %2510 = vmatpush1.msra.mxu0 %v182
    %2511 = vmatprep.subr.mxu0 %v191
    %2512 = vmatpush1.msra.mxu0 %v190
    %2513 = vmatprep.subr.mxu0 %v199
    %2514 = vmatpush1.msra.mxu0 %v198
    %2515 = vmatprep.subr.mxu0 %v207
    %2516 = vmatpush1.msra.mxu0 %v206
    %2517 = vmatprep.subr.mxu0 %v215
    %2518 = vmatpush1.msra.mxu0 %v214
    %2519 = vmatprep.subr.mxu0 %v223
    %2520 = vmatpush1.msra.mxu0 %v222
    %2521 = vmatprep.subr.mxu0 %v231
    %2522 = vmatpush1.msra.mxu0 %v230
    %2523 = vmatprep.subr.mxu0 %v239
    %2524 = vmatpush1.msra.mxu0 %v238
    %2525 = vmatprep.subr.mxu0 %v247
    %2526 = vmatpush1.msra.mxu0 %v246
    %2527 = vmatprep.subr.mxu0 %v255
    %2528 = vmatpush1.msra.mxu0 %v254
    %2529 = vmatprep.subr.mxu0 %v263
    %2530 = vmatpush1.msra.mxu0 %v262
    %2531 = vmatprep.subr.mxu0 %v271
    %2532 = vmatpush1.msra.mxu0 %v270
    %2533 = vmatprep.subr.mxu0 %v279
    %2534 = vmatpush1.msra.mxu0 %v278
    %2535 = vmatprep.subr.mxu0 %v287
    %2536 = vmatpush1.msra.mxu0 %v286
    %2537 = vmatprep.subr.mxu0 %v295
    %2538 = vmatpush1.msra.mxu0 %v294
    %2539 = vmatprep.subr.mxu0 %v303
    %2540 = vmatpush1.msra.mxu0 %v302
    %2541 = vmatprep.subr.mxu0 %v311
    %2542 = vmatpush1.msra.mxu0 %v310
    %2543 = vmatprep.subr.mxu0 %v319
    %2544 = vmatpush1.msra.mxu0 %v318
    %2545 = vmatprep.subr.mxu0 %v327
    %2546 = vmatpush1.msra.mxu0 %v326
    %2547 = vmatprep.subr.mxu0 %v335
    %2548 = vmatpush1.msra.mxu0 %v334
    %2549 = vmatprep.mubr.f32.mxu0 %v2242
    %2550 = vmatmul.mubr.f32.gmra.mrb[0].mxu0 %v2271
    %v2551 = vpop.f32.mrb[0].mxu0
    %v2552 = vadd.f32 0.0, %v2551
    %v2553 = vpop.f32.mrb[0].mxu0
    %v2554 = vadd.f32 0.0, %v2553
    %2555 = vdwg.mxu0
    %v2556 = vadd.f32 %v2481, %v834
    %v2557 = vadd.f32 %v2483, %v838
    %v2558 = vadd.f32 %v2552, %v842
    %v2559 = vadd.f32 %v2554, %v846
    %v2560 = vxor.u32 %v2556, 2147483648
    %v2561 = vmul.f32 %v2560, 1.442695
    %v2562 = vpow.pop %v2561
    %v2563 = vadd.f32 %v2562, 1.0
    %v2564 = vrcp.pop %v2563
    %v2565 = vmul.f32 1.0, %v2564
    %v2566 = vxor.u32 %v2557, 2147483648
    %v2567 = vmul.f32 %v2566, 1.442695
    %v2568 = vpow.pop %v2567
    %v2569 = vadd.f32 %v2568, 1.0
    %v2570 = vrcp.pop %v2569
    %v2571 = vmul.f32 1.0, %v2570
    %v2572 = vtanh.pop %v2558
    %v2573 = vxor.u32 %v2559, 2147483648
    %v2574 = vmul.f32 %v2573, 1.442695
    %v2575 = vpow.pop %v2574
    %v2576 = vadd.f32 %v2575, 1.0
    %v2577 = vrcp.pop %v2576
    %v2578 = vmul.f32 1.0, %v2577
    %v2579 = vmul.f32 %v2571, %v2240
    %v2580 = vmul.f32 %v2565, %v2572
    %v2581 = vadd.f32 %v2579, %v2580
    %v2582 = vtanh.pop %v2581
    %v2583 = vmul.f32 %v2578, %v2582
    %2584 = vst [vmem:[#allocation2 + $0x5] sm:$0x1] %v2583
    %v2585 = vadd.f32 %v2339, %v447
    %v2586 = vadd.f32 %v2341, %v449
    %v2587 = vadd.f32 %v2410, %v518
    %v2588 = vadd.f32 %v2412, %v520
    %v2589 = vxor.u32 %v2585, 2147483648
    %v2590 = vmul.f32 %v2589, 1.442695
    %v2591 = vpow.pop %v2590
    %v2592 = vadd.f32 %v2591, 1.0
    %v2593 = vrcp.pop %v2592
    %v2594 = vmul.f32 1.0, %v2593
    %v2595 = vxor.u32 %v2586, 2147483648
    %v2596 = vmul.f32 %v2595, 1.442695
    %v2597 = vpow.pop %v2596
    %v2598 = vadd.f32 %v2597, 1.0
    %v2599 = vrcp.pop %v2598
    %v2600 = vmul.f32 1.0, %v2599
    %v2601 = vtanh.pop %v2587
    %v2602 = vxor.u32 %v2588, 2147483648
    %v2603 = vmul.f32 %v2602, 1.442695
    %v2604 = vpow.pop %v2603
    %v2605 = vadd.f32 %v2604, 1.0
    %v2606 = vrcp.pop %v2605
    %v2607 = vmul.f32 1.0, %v2606
    %v2608 = vmul.f32 %v2600, %v2269
    %v2609 = vmul.f32 %v2594, %v2601
    %v2610 = vadd.f32 %v2608, %v2609
    %v2611 = vtanh.pop %v2610
    %v2612 = vmul.f32 %v2607, %v2611
    %2613 = vmatprep.subr.mxu0 %v81
    %2614 = vmatpush1.msra.mxu0 %v80
    %2615 = vmatprep.subr.mxu0 %v89
    %2616 = vmatpush1.msra.mxu0 %v88
    %2617 = vmatprep.subr.mxu0 %v97
    %2618 = vmatpush1.msra.mxu0 %v96
    %2619 = vmatprep.subr.mxu0 %v105
    %2620 = vmatpush1.msra.mxu0 %v104
    %2621 = vmatprep.subr.mxu0 %v113
    %2622 = vmatpush1.msra.mxu0 %v112
    %2623 = vmatprep.subr.mxu0 %v121
    %2624 = vmatpush1.msra.mxu0 %v120
    %2625 = vmatprep.subr.mxu0 %v129
    %2626 = vmatpush1.msra.mxu0 %v128
    %2627 = vmatprep.subr.mxu0 %v137
    %2628 = vmatpush1.msra.mxu0 %v136
    %2629 = vmatprep.subr.mxu0 %v145
    %2630 = vmatpush1.msra.mxu0 %v144
    %2631 = vmatprep.subr.mxu0 %v153
    %2632 = vmatpush1.msra.mxu0 %v152
    %2633 = vmatprep.subr.mxu0 %v161
    %2634 = vmatpush1.msra.mxu0 %v160
    %2635 = vmatprep.subr.mxu0 %v169
    %2636 = vmatpush1.msra.mxu0 %v168
    %2637 = vmatprep.subr.mxu0 %v177
    %2638 = vmatpush1.msra.mxu0 %v176
    %2639 = vmatprep.subr.mxu0 %v185
    %2640 = vmatpush1.msra.mxu0 %v184
    %2641 = vmatprep.subr.mxu0 %v193
    %2642 = vmatpush1.msra.mxu0 %v192
    %2643 = vmatprep.subr.mxu0 %v201
    %2644 = vmatpush1.msra.mxu0 %v200
    %2645 = vmatprep.subr.mxu0 %v209
    %2646 = vmatpush1.msra.mxu0 %v208
    %2647 = vmatprep.subr.mxu0 %v217
    %2648 = vmatpush1.msra.mxu0 %v216
    %2649 = vmatprep.subr.mxu0 %v225
    %2650 = vmatpush1.msra.mxu0 %v224
    %2651 = vmatprep.subr.mxu0 %v233
    %2652 = vmatpush1.msra.mxu0 %v232
    %2653 = vmatprep.subr.mxu0 %v241
    %2654 = vmatpush1.msra.mxu0 %v240
    %2655 = vmatprep.subr.mxu0 %v249
    %2656 = vmatpush1.msra.mxu0 %v248
    %2657 = vmatprep.subr.mxu0 %v257
    %2658 = vmatpush1.msra.mxu0 %v256
    %2659 = vmatprep.subr.mxu0 %v265
    %2660 = vmatpush1.msra.mxu0 %v264
    %2661 = vmatprep.subr.mxu0 %v273
    %2662 = vmatpush1.msra.mxu0 %v272
    %2663 = vmatprep.subr.mxu0 %v281
    %2664 = vmatpush1.msra.mxu0 %v280
    %2665 = vmatprep.subr.mxu0 %v289
    %2666 = vmatpush1.msra.mxu0 %v288
    %2667 = vmatprep.subr.mxu0 %v297
    %2668 = vmatpush1.msra.mxu0 %v296
    %2669 = vmatprep.subr.mxu0 %v305
    %2670 = vmatpush1.msra.mxu0 %v304
    %2671 = vmatprep.subr.mxu0 %v313
    %2672 = vmatpush1.msra.mxu0 %v312
    %2673 = vmatprep.subr.mxu0 %v321
    %2674 = vmatpush1.msra.mxu0 %v320
    %2675 = vmatprep.subr.mxu0 %v329
    %2676 = vmatpush1.msra.mxu0 %v328
    %2677 = vmatprep.mubr.f32.mxu0 %v2583
    %2678 = vmatmul.mubr.f32.gmra.mrb[0].mxu0 %v2612
    %v2679 = vpop.f32.mrb[0].mxu0
    %v2680 = vadd.f32 0.0, %v2679
    %v2681 = vpop.f32.mrb[0].mxu0
    %v2682 = vadd.f32 0.0, %v2681
    %2683 = vdwg.mxu0
    %2684 = vmatprep.subr.mxu0 %v83
    %2685 = vmatpush1.msra.mxu0 %v82
    %2686 = vmatprep.subr.mxu0 %v91
    %2687 = vmatpush1.msra.mxu0 %v90
    %2688 = vmatprep.subr.mxu0 %v99
    %2689 = vmatpush1.msra.mxu0 %v98
    %2690 = vmatprep.subr.mxu0 %v107
    %2691 = vmatpush1.msra.mxu0 %v106
    %2692 = vmatprep.subr.mxu0 %v115
    %2693 = vmatpush1.msra.mxu0 %v114
    %2694 = vmatprep.subr.mxu0 %v123
    %2695 = vmatpush1.msra.mxu0 %v122
    %2696 = vmatprep.subr.mxu0 %v131
    %2697 = vmatpush1.msra.mxu0 %v130
    %2698 = vmatprep.subr.mxu0 %v139
    %2699 = vmatpush1.msra.mxu0 %v138
    %2700 = vmatprep.subr.mxu0 %v147
    %2701 = vmatpush1.msra.mxu0 %v146
    %2702 = vmatprep.subr.mxu0 %v155
    %2703 = vmatpush1.msra.mxu0 %v154
    %2704 = vmatprep.subr.mxu0 %v163
    %2705 = vmatpush1.msra.mxu0 %v162
    %2706 = vmatprep.subr.mxu0 %v171
    %2707 = vmatpush1.msra.mxu0 %v170
    %2708 = vmatprep.subr.mxu0 %v179
    %2709 = vmatpush1.msra.mxu0 %v178
    %2710 = vmatprep.subr.mxu0 %v187
    %2711 = vmatpush1.msra.mxu0 %v186
    %2712 = vmatprep.subr.mxu0 %v195
    %2713 = vmatpush1.msra.mxu0 %v194
    %2714 = vmatprep.subr.mxu0 %v203
    %2715 = vmatpush1.msra.mxu0 %v202
    %2716 = vmatprep.subr.mxu0 %v211
    %2717 = vmatpush1.msra.mxu0 %v210
    %2718 = vmatprep.subr.mxu0 %v219
    %2719 = vmatpush1.msra.mxu0 %v218
    %2720 = vmatprep.subr.mxu0 %v227
    %2721 = vmatpush1.msra.mxu0 %v226
    %2722 = vmatprep.subr.mxu0 %v235
    %2723 = vmatpush1.msra.mxu0 %v234
    %2724 = vmatprep.subr.mxu0 %v243
    %2725 = vmatpush1.msra.mxu0 %v242
    %2726 = vmatprep.subr.mxu0 %v251
    %2727 = vmatpush1.msra.mxu0 %v250
    %2728 = vmatprep.subr.mxu0 %v259
    %2729 = vmatpush1.msra.mxu0 %v258
    %2730 = vmatprep.subr.mxu0 %v267
    %2731 = vmatpush1.msra.mxu0 %v266
    %2732 = vmatprep.subr.mxu0 %v275
    %2733 = vmatpush1.msra.mxu0 %v274
    %2734 = vmatprep.subr.mxu0 %v283
    %2735 = vmatpush1.msra.mxu0 %v282
    %2736 = vmatprep.subr.mxu0 %v291
    %2737 = vmatpush1.msra.mxu0 %v290
    %2738 = vmatprep.subr.mxu0 %v299
    %2739 = vmatpush1.msra.mxu0 %v298
    %2740 = vmatprep.subr.mxu0 %v307
    %2741 = vmatpush1.msra.mxu0 %v306
    %2742 = vmatprep.subr.mxu0 %v315
    %2743 = vmatpush1.msra.mxu0 %v314
    %2744 = vmatprep.subr.mxu0 %v323
    %2745 = vmatpush1.msra.mxu0 %v322
    %2746 = vmatprep.subr.mxu0 %v331
    %2747 = vmatpush1.msra.mxu0 %v330
    %2748 = vmatprep.mubr.f32.mxu0 %v2583
    %2749 = vmatmul.mubr.f32.gmra.mrb[0].mxu0 %v2612
    %v2750 = vpop.f32.mrb[0].mxu0
    %v2751 = vadd.f32 0.0, %v2750
    %v2752 = vpop.f32.mrb[0].mxu0
    %v2753 = vadd.f32 0.0, %v2752
    %2754 = vdwg.mxu0
    %2755 = vmatprep.subr.mxu0 %v85
    %2756 = vmatpush1.msra.mxu0 %v84
    %2757 = vmatprep.subr.mxu0 %v93
    %2758 = vmatpush1.msra.mxu0 %v92
    %2759 = vmatprep.subr.mxu0 %v101
    %2760 = vmatpush1.msra.mxu0 %v100
    %2761 = vmatprep.subr.mxu0 %v109
    %2762 = vmatpush1.msra.mxu0 %v108
    %2763 = vmatprep.subr.mxu0 %v117
    %2764 = vmatpush1.msra.mxu0 %v116
    %2765 = vmatprep.subr.mxu0 %v125
    %2766 = vmatpush1.msra.mxu0 %v124
    %2767 = vmatprep.subr.mxu0 %v133
    %2768 = vmatpush1.msra.mxu0 %v132
    %2769 = vmatprep.subr.mxu0 %v141
    %2770 = vmatpush1.msra.mxu0 %v140
    %2771 = vmatprep.subr.mxu0 %v149
    %2772 = vmatpush1.msra.mxu0 %v148
    %2773 = vmatprep.subr.mxu0 %v157
    %2774 = vmatpush1.msra.mxu0 %v156
    %2775 = vmatprep.subr.mxu0 %v165
    %2776 = vmatpush1.msra.mxu0 %v164
    %2777 = vmatprep.subr.mxu0 %v173
    %2778 = vmatpush1.msra.mxu0 %v172
    %2779 = vmatprep.subr.mxu0 %v181
    %2780 = vmatpush1.msra.mxu0 %v180
    %2781 = vmatprep.subr.mxu0 %v189
    %2782 = vmatpush1.msra.mxu0 %v188
    %2783 = vmatprep.subr.mxu0 %v197
    %2784 = vmatpush1.msra.mxu0 %v196
    %2785 = vmatprep.subr.mxu0 %v205
    %2786 = vmatpush1.msra.mxu0 %v204
    %2787 = vmatprep.subr.mxu0 %v213
    %2788 = vmatpush1.msra.mxu0 %v212
    %2789 = vmatprep.subr.mxu0 %v221
    %2790 = vmatpush1.msra.mxu0 %v220
    %2791 = vmatprep.subr.mxu0 %v229
    %2792 = vmatpush1.msra.mxu0 %v228
    %2793 = vmatprep.subr.mxu0 %v237
    %2794 = vmatpush1.msra.mxu0 %v236
    %2795 = vmatprep.subr.mxu0 %v245
    %2796 = vmatpush1.msra.mxu0 %v244
    %2797 = vmatprep.subr.mxu0 %v253
    %2798 = vmatpush1.msra.mxu0 %v252
    %2799 = vmatprep.subr.mxu0 %v261
    %2800 = vmatpush1.msra.mxu0 %v260
    %2801 = vmatprep.subr.mxu0 %v269
    %2802 = vmatpush1.msra.mxu0 %v268
    %2803 = vmatprep.subr.mxu0 %v277
    %2804 = vmatpush1.msra.mxu0 %v276
    %2805 = vmatprep.subr.mxu0 %v285
    %2806 = vmatpush1.msra.mxu0 %v284
    %2807 = vmatprep.subr.mxu0 %v293
    %2808 = vmatpush1.msra.mxu0 %v292
    %2809 = vmatprep.subr.mxu0 %v301
    %2810 = vmatpush1.msra.mxu0 %v300
    %2811 = vmatprep.subr.mxu0 %v309
    %2812 = vmatpush1.msra.mxu0 %v308
    %2813 = vmatprep.subr.mxu0 %v317
    %2814 = vmatpush1.msra.mxu0 %v316
    %2815 = vmatprep.subr.mxu0 %v325
    %2816 = vmatpush1.msra.mxu0 %v324
    %2817 = vmatprep.subr.mxu0 %v333
    %2818 = vmatpush1.msra.mxu0 %v332
    %2819 = vmatprep.mubr.f32.mxu0 %v2583
    %2820 = vmatmul.mubr.f32.gmra.mrb[0].mxu0 %v2612
    %v2821 = vpop.f32.mrb[0].mxu0
    %v2822 = vadd.f32 0.0, %v2821
    %v2823 = vpop.f32.mrb[0].mxu0
    %v2824 = vadd.f32 0.0, %v2823
    %2825 = vdwg.mxu0
    %2826 = vmatprep.subr.mxu0 %v87
    %2827 = vmatpush1.msra.mxu0 %v86
    %2828 = vmatprep.subr.mxu0 %v95
    %2829 = vmatpush1.msra.mxu0 %v94
    %2830 = vmatprep.subr.mxu0 %v103
    %2831 = vmatpush1.msra.mxu0 %v102
    %2832 = vmatprep.subr.mxu0 %v111
    %2833 = vmatpush1.msra.mxu0 %v110
    %2834 = vmatprep.subr.mxu0 %v119
    %2835 = vmatpush1.msra.mxu0 %v118
    %2836 = vmatprep.subr.mxu0 %v127
    %2837 = vmatpush1.msra.mxu0 %v126
    %2838 = vmatprep.subr.mxu0 %v135
    %2839 = vmatpush1.msra.mxu0 %v134
    %2840 = vmatprep.subr.mxu0 %v143
    %2841 = vmatpush1.msra.mxu0 %v142
    %2842 = vmatprep.subr.mxu0 %v151
    %2843 = vmatpush1.msra.mxu0 %v150
    %2844 = vmatprep.subr.mxu0 %v159
    %2845 = vmatpush1.msra.mxu0 %v158
    %2846 = vmatprep.subr.mxu0 %v167
    %2847 = vmatpush1.msra.mxu0 %v166
    %2848 = vmatprep.subr.mxu0 %v175
    %2849 = vmatpush1.msra.mxu0 %v174
    %2850 = vmatprep.subr.mxu0 %v183
    %2851 = vmatpush1.msra.mxu0 %v182
    %2852 = vmatprep.subr.mxu0 %v191
    %2853 = vmatpush1.msra.mxu0 %v190
    %2854 = vmatprep.subr.mxu0 %v199
    %2855 = vmatpush1.msra.mxu0 %v198
    %2856 = vmatprep.subr.mxu0 %v207
    %2857 = vmatpush1.msra.mxu0 %v206
    %2858 = vmatprep.subr.mxu0 %v215
    %2859 = vmatpush1.msra.mxu0 %v214
    %2860 = vmatprep.subr.mxu0 %v223
    %2861 = vmatpush1.msra.mxu0 %v222
    %2862 = vmatprep.subr.mxu0 %v231
    %2863 = vmatpush1.msra.mxu0 %v230
    %2864 = vmatprep.subr.mxu0 %v239
    %2865 = vmatpush1.msra.mxu0 %v238
    %2866 = vmatprep.subr.mxu0 %v247
    %2867 = vmatpush1.msra.mxu0 %v246
    %2868 = vmatprep.subr.mxu0 %v255
    %2869 = vmatpush1.msra.mxu0 %v254
    %2870 = vmatprep.subr.mxu0 %v263
    %2871 = vmatpush1.msra.mxu0 %v262
    %2872 = vmatprep.subr.mxu0 %v271
    %2873 = vmatpush1.msra.mxu0 %v270
    %2874 = vmatprep.subr.mxu0 %v279
    %2875 = vmatpush1.msra.mxu0 %v278
    %2876 = vmatprep.subr.mxu0 %v287
    %2877 = vmatpush1.msra.mxu0 %v286
    %2878 = vmatprep.subr.mxu0 %v295
    %2879 = vmatpush1.msra.mxu0 %v294
    %2880 = vmatprep.subr.mxu0 %v303
    %2881 = vmatpush1.msra.mxu0 %v302
    %2882 = vmatprep.subr.mxu0 %v311
    %2883 = vmatpush1.msra.mxu0 %v310
    %2884 = vmatprep.subr.mxu0 %v319
    %2885 = vmatpush1.msra.mxu0 %v318
    %2886 = vmatprep.subr.mxu0 %v327
    %2887 = vmatpush1.msra.mxu0 %v326
    %2888 = vmatprep.subr.mxu0 %v335
    %2889 = vmatpush1.msra.mxu0 %v334
    %2890 = vmatprep.mubr.f32.mxu0 %v2583
    %2891 = vmatmul.mubr.f32.gmra.mrb[0].mxu0 %v2612
    %v2892 = vpop.f32.mrb[0].mxu0
    %v2893 = vadd.f32 0.0, %v2892
    %v2894 = vpop.f32.mrb[0].mxu0
    %v2895 = vadd.f32 0.0, %v2894
    %2896 = vdwg.mxu0
    %v2897 = vadd.f32 %v2822, %v834
    %v2898 = vadd.f32 %v2824, %v838
    %v2899 = vadd.f32 %v2893, %v842
    %v2900 = vadd.f32 %v2895, %v846
    %v2901 = vxor.u32 %v2897, 2147483648
    %v2902 = vmul.f32 %v2901, 1.442695
    %v2903 = vpow.pop %v2902
    %v2904 = vadd.f32 %v2903, 1.0
    %v2905 = vrcp.pop %v2904
    %v2906 = vmul.f32 1.0, %v2905
    %v2907 = vxor.u32 %v2898, 2147483648
    %v2908 = vmul.f32 %v2907, 1.442695
    %v2909 = vpow.pop %v2908
    %v2910 = vadd.f32 %v2909, 1.0
    %v2911 = vrcp.pop %v2910
    %v2912 = vmul.f32 1.0, %v2911
    %v2913 = vtanh.pop %v2899
    %v2914 = vxor.u32 %v2900, 2147483648
    %v2915 = vmul.f32 %v2914, 1.442695
    %v2916 = vpow.pop %v2915
    %v2917 = vadd.f32 %v2916, 1.0
    %v2918 = vrcp.pop %v2917
    %v2919 = vmul.f32 1.0, %v2918
    %v2920 = vmul.f32 %v2912, %v2581
    %v2921 = vmul.f32 %v2906, %v2913
    %v2922 = vadd.f32 %v2920, %v2921
    %v2923 = vtanh.pop %v2922
    %v2924 = vmul.f32 %v2919, %v2923
    %2925 = vst [vmem:[#allocation2 + $0x6] sm:$0x1] %v2924
    %v2926 = vadd.f32 %v2680, %v447
    %v2927 = vadd.f32 %v2682, %v449
    %v2928 = vadd.f32 %v2751, %v518
    %v2929 = vadd.f32 %v2753, %v520
    %v2930 = vxor.u32 %v2926, 2147483648
    %v2931 = vmul.f32 %v2930, 1.442695
    %v2932 = vpow.pop %v2931
    %v2933 = vadd.f32 %v2932, 1.0
    %v2934 = vrcp.pop %v2933
    %v2935 = vmul.f32 1.0, %v2934
    %v2936 = vxor.u32 %v2927, 2147483648
    %v2937 = vmul.f32 %v2936, 1.442695
    %v2938 = vpow.pop %v2937
    %v2939 = vadd.f32 %v2938, 1.0
    %v2940 = vrcp.pop %v2939
    %v2941 = vmul.f32 1.0, %v2940
    %v2942 = vtanh.pop %v2928
    %v2943 = vxor.u32 %v2929, 2147483648
    %v2944 = vmul.f32 %v2943, 1.442695
    %v2945 = vpow.pop %v2944
    %v2946 = vadd.f32 %v2945, 1.0
    %v2947 = vrcp.pop %v2946
    %v2948 = vmul.f32 1.0, %v2947
    %v2949 = vmul.f32 %v2941, %v2610
    %v2950 = vmul.f32 %v2935, %v2942
    %v2951 = vadd.f32 %v2949, %v2950
    %v2952 = vtanh.pop %v2951
    %v2953 = vmul.f32 %v2948, %v2952
    %2954 = vmatprep.subr.mxu0 %v85
    %2955 = vmatpush1.msra.mxu0 %v84
    %2956 = vmatprep.subr.mxu0 %v93
    %2957 = vmatpush1.msra.mxu0 %v92
    %2958 = vmatprep.subr.mxu0 %v101
    %2959 = vmatpush1.msra.mxu0 %v100
    %2960 = vmatprep.subr.mxu0 %v109
    %2961 = vmatpush1.msra.mxu0 %v108
    %2962 = vmatprep.subr.mxu0 %v117
    %2963 = vmatpush1.msra.mxu0 %v116
    %2964 = vmatprep.subr.mxu0 %v125
    %2965 = vmatpush1.msra.mxu0 %v124
    %2966 = vmatprep.subr.mxu0 %v133
    %2967 = vmatpush1.msra.mxu0 %v132
    %2968 = vmatprep.subr.mxu0 %v141
    %2969 = vmatpush1.msra.mxu0 %v140
    %2970 = vmatprep.subr.mxu0 %v149
    %2971 = vmatpush1.msra.mxu0 %v148
    %2972 = vmatprep.subr.mxu0 %v157
    %2973 = vmatpush1.msra.mxu0 %v156
    %2974 = vmatprep.subr.mxu0 %v165
    %2975 = vmatpush1.msra.mxu0 %v164
    %2976 = vmatprep.subr.mxu0 %v173
    %2977 = vmatpush1.msra.mxu0 %v172
    %2978 = vmatprep.subr.mxu0 %v181
    %2979 = vmatpush1.msra.mxu0 %v180
    %2980 = vmatprep.subr.mxu0 %v189
    %2981 = vmatpush1.msra.mxu0 %v188
    %2982 = vmatprep.subr.mxu0 %v197
    %2983 = vmatpush1.msra.mxu0 %v196
    %2984 = vmatprep.subr.mxu0 %v205
    %2985 = vmatpush1.msra.mxu0 %v204
    %2986 = vmatprep.subr.mxu0 %v213
    %2987 = vmatpush1.msra.mxu0 %v212
    %2988 = vmatprep.subr.mxu0 %v221
    %2989 = vmatpush1.msra.mxu0 %v220
    %2990 = vmatprep.subr.mxu0 %v229
    %2991 = vmatpush1.msra.mxu0 %v228
    %2992 = vmatprep.subr.mxu0 %v237
    %2993 = vmatpush1.msra.mxu0 %v236
    %2994 = vmatprep.subr.mxu0 %v245
    %2995 = vmatpush1.msra.mxu0 %v244
    %2996 = vmatprep.subr.mxu0 %v253
    %2997 = vmatpush1.msra.mxu0 %v252
    %2998 = vmatprep.subr.mxu0 %v261
    %2999 = vmatpush1.msra.mxu0 %v260
    %3000 = vmatprep.subr.mxu0 %v269
    %3001 = vmatpush1.msra.mxu0 %v268
    %3002 = vmatprep.subr.mxu0 %v277
    %3003 = vmatpush1.msra.mxu0 %v276
    %3004 = vmatprep.subr.mxu0 %v285
    %3005 = vmatpush1.msra.mxu0 %v284
    %3006 = vmatprep.subr.mxu0 %v293
    %3007 = vmatpush1.msra.mxu0 %v292
    %3008 = vmatprep.subr.mxu0 %v301
    %3009 = vmatpush1.msra.mxu0 %v300
    %3010 = vmatprep.subr.mxu0 %v309
    %3011 = vmatpush1.msra.mxu0 %v308
    %3012 = vmatprep.subr.mxu0 %v317
    %3013 = vmatpush1.msra.mxu0 %v316
    %3014 = vmatprep.subr.mxu0 %v325
    %3015 = vmatpush1.msra.mxu0 %v324
    %3016 = vmatprep.subr.mxu0 %v333
    %3017 = vmatpush1.msra.mxu0 %v332
    %3018 = vmatprep.mubr.f32.mxu0 %v2924
    %3019 = vmatmul.mubr.f32.gmra.mrb[0].mxu0 %v2953
    %v3020 = vpop.f32.mrb[0].mxu0
    %v3021 = vadd.f32 0.0, %v3020
    %v3022 = vpop.f32.mrb[0].mxu0
    %v3023 = vadd.f32 0.0, %v3022
    %3024 = vdwg.mxu0
    %3025 = vmatprep.subr.mxu0 %v87
    %3026 = vmatpush1.msra.mxu0 %v86
    %3027 = vmatprep.subr.mxu0 %v95
    %3028 = vmatpush1.msra.mxu0 %v94
    %3029 = vmatprep.subr.mxu0 %v103
    %3030 = vmatpush1.msra.mxu0 %v102
    %3031 = vmatprep.subr.mxu0 %v111
    %3032 = vmatpush1.msra.mxu0 %v110
    %3033 = vmatprep.subr.mxu0 %v119
    %3034 = vmatpush1.msra.mxu0 %v118
    %3035 = vmatprep.subr.mxu0 %v127
    %3036 = vmatpush1.msra.mxu0 %v126
    %3037 = vmatprep.subr.mxu0 %v135
    %3038 = vmatpush1.msra.mxu0 %v134
    %3039 = vmatprep.subr.mxu0 %v143
    %3040 = vmatpush1.msra.mxu0 %v142
    %3041 = vmatprep.subr.mxu0 %v151
    %3042 = vmatpush1.msra.mxu0 %v150
    %3043 = vmatprep.subr.mxu0 %v159
    %3044 = vmatpush1.msra.mxu0 %v158
    %3045 = vmatprep.subr.mxu0 %v167
    %3046 = vmatpush1.msra.mxu0 %v166
    %3047 = vmatprep.subr.mxu0 %v175
    %3048 = vmatpush1.msra.mxu0 %v174
    %3049 = vmatprep.subr.mxu0 %v183
    %3050 = vmatpush1.msra.mxu0 %v182
    %3051 = vmatprep.subr.mxu0 %v191
    %3052 = vmatpush1.msra.mxu0 %v190
    %3053 = vmatprep.subr.mxu0 %v199
    %3054 = vmatpush1.msra.mxu0 %v198
    %3055 = vmatprep.subr.mxu0 %v207
    %3056 = vmatpush1.msra.mxu0 %v206
    %3057 = vmatprep.subr.mxu0 %v215
    %3058 = vmatpush1.msra.mxu0 %v214
    %3059 = vmatprep.subr.mxu0 %v223
    %3060 = vmatpush1.msra.mxu0 %v222
    %3061 = vmatprep.subr.mxu0 %v231
    %3062 = vmatpush1.msra.mxu0 %v230
    %3063 = vmatprep.subr.mxu0 %v239
    %3064 = vmatpush1.msra.mxu0 %v238
    %3065 = vmatprep.subr.mxu0 %v247
    %3066 = vmatpush1.msra.mxu0 %v246
    %3067 = vmatprep.subr.mxu0 %v255
    %3068 = vmatpush1.msra.mxu0 %v254
    %3069 = vmatprep.subr.mxu0 %v263
    %3070 = vmatpush1.msra.mxu0 %v262
    %3071 = vmatprep.subr.mxu0 %v271
    %3072 = vmatpush1.msra.mxu0 %v270
    %3073 = vmatprep.subr.mxu0 %v279
    %3074 = vmatpush1.msra.mxu0 %v278
    %3075 = vmatprep.subr.mxu0 %v287
    %3076 = vmatpush1.msra.mxu0 %v286
    %3077 = vmatprep.subr.mxu0 %v295
    %3078 = vmatpush1.msra.mxu0 %v294
    %3079 = vmatprep.subr.mxu0 %v303
    %3080 = vmatpush1.msra.mxu0 %v302
    %3081 = vmatprep.subr.mxu0 %v311
    %3082 = vmatpush1.msra.mxu0 %v310
    %3083 = vmatprep.subr.mxu0 %v319
    %3084 = vmatpush1.msra.mxu0 %v318
    %3085 = vmatprep.subr.mxu0 %v327
    %3086 = vmatpush1.msra.mxu0 %v326
    %3087 = vmatprep.subr.mxu0 %v335
    %3088 = vmatpush1.msra.mxu0 %v334
    %3089 = vmatprep.mubr.f32.mxu0 %v2924
    %3090 = vmatmul.mubr.f32.gmra.mrb[0].mxu0 %v2953
    %v3091 = vpop.f32.mrb[0].mxu0
    %v3092 = vadd.f32 0.0, %v3091
    %v3093 = vpop.f32.mrb[0].mxu0
    %v3094 = vadd.f32 0.0, %v3093
    %3095 = vdwg.mxu0
    %v3096 = vadd.f32 %v3021, %v834
    %v3097 = vadd.f32 %v3023, %v838
    %v3098 = vadd.f32 %v3092, %v842
    %v3099 = vadd.f32 %v3094, %v846
    %v3100 = vxor.u32 %v3096, 2147483648
    %v3101 = vmul.f32 %v3100, 1.442695
    %v3102 = vpow.pop %v3101
    %v3103 = vadd.f32 %v3102, 1.0
    %v3104 = vrcp.pop %v3103
    %v3105 = vmul.f32 1.0, %v3104
    %v3106 = vxor.u32 %v3097, 2147483648
    %v3107 = vmul.f32 %v3106, 1.442695
    %v3108 = vpow.pop %v3107
    %v3109 = vadd.f32 %v3108, 1.0
    %v3110 = vrcp.pop %v3109
    %v3111 = vmul.f32 1.0, %v3110
    %v3112 = vtanh.pop %v3098
    %v3113 = vxor.u32 %v3099, 2147483648
    %v3114 = vmul.f32 %v3113, 1.442695
    %v3115 = vpow.pop %v3114
    %v3116 = vadd.f32 %v3115, 1.0
    %v3117 = vrcp.pop %v3116
    %v3118 = vmul.f32 1.0, %v3117
    %v3119 = vmul.f32 %v3111, %v2922
    %v3120 = vmul.f32 %v3105, %v3112
    %v3121 = vadd.f32 %v3119, %v3120
    %v3122 = vtanh.pop %v3121
    %v3123 = vmul.f32 %v3118, %v3122
    %3124 = vst [vmem:[#allocation2 + $0x7] sm:$0x1] %v3123
    %v3125 = vld [vmem:[#allocation2] sm:$0xff]
    %v3126 = vld [vmem:[#allocation9] sm:$0xff]
    %v3127 = vld [vmem:[#allocation9 + $0x8] sm:$0xff]
    %v3128 = vld [vmem:[#allocation9 + $0x10] sm:$0xff]
    %v3129 = vld [vmem:[#allocation9 + $0x18] sm:$0xff]
    %v3130 = vld [vmem:[#allocation9 + $0x20] sm:$0xff]
    %v3131 = vld [vmem:[#allocation9 + $0x28] sm:$0xff]
    %v3132 = vld [vmem:[#allocation9 + $0x30] sm:$0xff]
    %v3133 = vld [vmem:[#allocation9 + $0x38] sm:$0xff]
    %v3134 = vld [vmem:[#allocation9 + $0x40] sm:$0xff]
    %v3135 = vld [vmem:[#allocation9 + $0x48] sm:$0xff]
    %v3136 = vld [vmem:[#allocation9 + $0x50] sm:$0xff]
    %v3137 = vld [vmem:[#allocation9 + $0x58] sm:$0xff]
    %v3138 = vld [vmem:[#allocation9 + $0x60] sm:$0xff]
    %v3139 = vld [vmem:[#allocation9 + $0x68] sm:$0xff]
    %v3140 = vld [vmem:[#allocation9 + $0x70] sm:$0xff]
    %v3141 = vld [vmem:[#allocation9 + $0x78] sm:$0xff]
    %v3142 = vld [vmem:[%s6] sm:$0x1]
    %v3144 = vlaneseq
    %v3145 = vshrl.u32 %v3144, 7
    %v3146 = vsub.s32 0, %v3145
    %v3147 = vrot.slane %v3142, %v3146
    %3149 = vmatprep.subr.mxu0 0.0
    %3150 = vmatpush1.msra.mxu0 %v3126
    %3151 = vmatprep.subr.mxu0 0.0
    %3152 = vmatpush1.msra.mxu0 %v3127
    %3153 = vmatprep.subr.mxu0 0.0
    %3154 = vmatpush1.msra.mxu0 %v3128
    %3155 = vmatprep.subr.mxu0 0.0
    %3156 = vmatpush1.msra.mxu0 %v3129
    %3157 = vmatprep.subr.mxu0 0.0
    %3158 = vmatpush1.msra.mxu0 %v3130
    %3159 = vmatprep.subr.mxu0 0.0
    %3160 = vmatpush1.msra.mxu0 %v3131
    %3161 = vmatprep.subr.mxu0 0.0
    %3162 = vmatpush1.msra.mxu0 %v3132
    %3163 = vmatprep.subr.mxu0 0.0
    %3164 = vmatpush1.msra.mxu0 %v3133
    %3165 = vmatprep.subr.mxu0 0.0
    %3166 = vmatpush1.msra.mxu0 %v3134
    %3167 = vmatprep.subr.mxu0 0.0
    %3168 = vmatpush1.msra.mxu0 %v3135
    %3169 = vmatprep.subr.mxu0 0.0
    %3170 = vmatpush1.msra.mxu0 %v3136
    %3171 = vmatprep.subr.mxu0 0.0
    %3172 = vmatpush1.msra.mxu0 %v3137
    %3173 = vmatprep.subr.mxu0 0.0
    %3174 = vmatpush1.msra.mxu0 %v3138
    %3175 = vmatprep.subr.mxu0 0.0
    %3176 = vmatpush1.msra.mxu0 %v3139
    %3177 = vmatprep.subr.mxu0 0.0
    %3178 = vmatpush1.msra.mxu0 %v3140
    %3179 = vmatprep.subr.mxu0 0.0
    %3180 = vmatpush1.msra.mxu0 %v3141
    %3181 = vmatprep.subr.mxu0 0.0
    %3182 = vmatpush1.msra.mxu0 0.0
    %3183 = vmatprep.subr.mxu0 0.0
    %3184 = vmatpush1.msra.mxu0 0.0
    %3185 = vmatprep.subr.mxu0 0.0
    %3186 = vmatpush1.msra.mxu0 0.0
    %3187 = vmatprep.subr.mxu0 0.0
    %3188 = vmatpush1.msra.mxu0 0.0
    %3189 = vmatprep.subr.mxu0 0.0
    %3190 = vmatpush1.msra.mxu0 0.0
    %3191 = vmatprep.subr.mxu0 0.0
    %3192 = vmatpush1.msra.mxu0 0.0
    %3193 = vmatprep.subr.mxu0 0.0
    %3194 = vmatpush1.msra.mxu0 0.0
    %3195 = vmatprep.subr.mxu0 0.0
    %3196 = vmatpush1.msra.mxu0 0.0
    %3197 = vmatprep.subr.mxu0 0.0
    %3198 = vmatpush1.msra.mxu0 0.0
    %3199 = vmatprep.subr.mxu0 0.0
    %3200 = vmatpush1.msra.mxu0 0.0
    %3201 = vmatprep.subr.mxu0 0.0
    %3202 = vmatpush1.msra.mxu0 0.0
    %3203 = vmatprep.subr.mxu0 0.0
    %3204 = vmatpush1.msra.mxu0 0.0
    %3205 = vmatprep.subr.mxu0 0.0
    %3206 = vmatpush1.msra.mxu0 0.0
    %3207 = vmatprep.subr.mxu0 0.0
    %3208 = vmatpush1.msra.mxu0 0.0
    %3209 = vmatprep.subr.mxu0 0.0
    %3210 = vmatpush1.msra.mxu0 0.0
    %3211 = vmatprep.subr.mxu0 0.0
    %3212 = vmatpush1.msra.mxu0 0.0
    %3213 = vmatprep.mubr.f32.mxu0 0.0
    %3214 = vmatmul.mubr.f32.gmra.mrb[0].mxu0 %v3125
    %v3215 = vpop.f32.mrb[0].mxu0
    %v3216 = vadd.f32 %v3147, %v3215
    %v3217 = vpop.f32.mrb[0].mxu0
    %3218 = vdwg.mxu0
    %3219 = vst [vmem:[#allocation11] sm:$0xff] %v3216
    // Predicated region
    $region46: #{tpu_custom_call.1} parent=1 // pred_check
      _
    $region47: #{tpu_custom_call.1} parent=1 // pred_check_branch
      %3221 = sbr.rel (0) target = $region49
    $region48: #{tpu_custom_call.1} parent=1 // pred_region
      %s3223 = ssub.s32 128, 128
      %3224 = vsyncadd [#allocation5], %s3223
      %s3226 = sshll.u32 [#allocation11], 4
      %s3227 = int_to_ptr.vmem [resolvable:$true] %s3226
      %3229 = dma.vmem_to_hbm [thread:$0]  %s3227, 128, %s7, [#allocation5]
    $region49: #{tpu_custom_call.1} parent=1 // pred_fallthru
      _
    // Predicated region
    $region50: #{tpu_custom_call.1} parent=1 // pred_check
      _
    $region51: #{tpu_custom_call.1} parent=1 // pred_check_branch
      %3231 = sbr.rel (0) target = $region53
    $region52: #{tpu_custom_call.1} parent=1 // pred_region
      %3232 = dma.done [#allocation5], 128
    $region53: #{tpu_custom_call.1} parent=1 // pred_fallthru
      _
    %3233 = vsyncpa [#allocation4], 1
    %3234 = vsyncpa [#allocation7], 1
    %3235 = vsyncpa [#allocation10], 1
    %3236 = vsyncpa [#allocation5], 1

</llo_original>
